<compile_context>
chip_gen: v7x
topology: tpu7x:2x2x1
jax: 0.10.0
libtpu: 0.0.40
codegen_flags: <defaults>
</compile_context>

<pallas_src>
import functools
import math

import jax
import jax.numpy as jnp
from jax.experimental import pallas as pl
from jax.experimental.pallas import tpu as pltpu

BN_EPS = 1e-5


# ------------------------------ Pallas kernel ------------------------------ #

def conv_block_kernel(xf_ref, mask_ref, w1_ref, s1_ref, b1_ref,
                      w2_ref, s2_ref, b2_ref, out_ref,
                      lhs1_ref, mid_ref, lhs2_ref, *, wp):
    """One grid step = (image n, row-tile i): both 3x3 convs fused.

    xf_ref   : (ROWS_IN, Cin)  f32   zero-padded image, flattened (y*Wp + x),
                                     with Wp+1 extra zero rows on each end.
    mask_ref : (Hp*Wp, 1)      f32   1.0 on interior pixels, 0.0 on the pad ring.
    w1_ref   : (9*Cin, Cmid)   bf16  conv1 weights, taps flattened into K.
    s1/b1    : (1, Cmid)       f32   folded BatchNorm scale / bias (conv bias folded in).
    w2_ref   : (9*Cmid, Cout)  bf16
    s2/b2    : (1, Cout)       f32
    out_ref  : (TILE_H*Wp, Cout) f32  one full-width slab of padded output rows.
    scratch  : lhs1 (R_mid, 9*Cin) bf16, mid (R_mid+16, Cmid) f32,
               lhs2 (R_out, 9*Cmid) bf16.
    """
    cin = xf_ref.shape[-1]
    cmid = mid_ref.shape[-1]
    r_mid = lhs1_ref.shape[0]          # (TILE_H + 2) * Wp   rows of intermediate
    r_out = out_ref.shape[0]           # TILE_H * Wp         rows of output

    i = pl.program_id(1)
    base = i * r_out                   # flat offset of this row tile
    if r_out % 8 == 0:
        base = pl.multiple_of(base, 8)

    # ---- conv1: gather the 9 taps into a (R_mid, 9*Cin) im2col slab in VMEM,
    #      then ONE MXU matmul with K = 9*Cin. ----
    for k in range(9):
        ky, kx = divmod(k, 3)
        tap = xf_ref[pl.ds(base + ky * wp + kx, r_mid), :]
        lhs1_ref[:, k * cin:(k + 1) * cin] = tap.astype(jnp.bfloat16)
    y1 = jnp.dot(lhs1_ref[...], w1_ref[...], preferred_element_type=jnp.float32)
    y1 = jnp.maximum(y1 * s1_ref[...] + b1_ref[...], 0.0)
    # Zero the padding-ring positions so conv2 sees true zero padding.
    y1 = y1 * mask_ref[pl.ds(base, r_mid), :]

    # Intermediate activation stays in VMEM scratch (no HBM round-trip).
    zeros8 = jnp.zeros((8, cmid), mid_ref.dtype)
    mid_ref[0:8, :] = zeros8                       # top halo (only row 7 is read)
    mid_ref[r_mid + 8:r_mid + 16, :] = zeros8      # bottom halo
    mid_ref[8:8 + r_mid, :] = y1                   # 8-aligned main store

    # ---- conv2 over the VMEM-resident intermediate: same single-matmul form. ----
    for k in range(9):
        ky, kx = divmod(k, 3)
        off = ky * wp + kx + 7                     # static row offsets into mid
        lhs2_ref[:, k * cmid:(k + 1) * cmid] = (
            mid_ref[off:off + r_out, :].astype(jnp.bfloat16))
    y2 = jnp.dot(lhs2_ref[...], w2_ref[...], preferred_element_type=jnp.float32)
    y2 = jnp.maximum(y2 * s2_ref[...] + b2_ref[...], 0.0)
    out_ref[...] = y2.astype(out_ref.dtype)


# ------------------------------ host wrapper ------------------------------- #

def _fold_bn(p):
    """Fold conv bias + inference-mode BatchNorm into (bf16 weight, scale, bias)."""
    w, b, gamma, beta, mean, var = p               # w: (Cout, Cin, 3, 3) torch layout
    cout, cin = w.shape[0], w.shape[1]
    wf = jnp.transpose(w, (2, 3, 1, 0)).reshape(9 * cin, cout).astype(jnp.bfloat16)
    s = gamma / jnp.sqrt(var + BN_EPS)
    scale = s.reshape(1, cout).astype(jnp.float32)
    bias = ((b - mean) * s + beta).reshape(1, cout).astype(jnp.float32)
    return wf, scale, bias


def conv_block_forward(x_nchw, params, *, tile_h=None):
    """Forward pass of conv_block_old.  x_nchw: (N, Cin, H, W) f32 -> (N, Cout, H, W)."""
    p1, p2 = params
    N, Cin, H, W = x_nchw.shape
    Cmid = p1[0].shape[0]
    Cout = p2[0].shape[0]
    Hp, Wp = H + 2, W + 2

    if tile_h is None:
        tile_h = H if H <= 32 else 32              # VMEM-sizing knob (v7x: keep small)
    TH = tile_h
    assert H % TH == 0, "tile_h must divide H"
    assert TH == H or (TH * Wp) % 8 == 0, "row-tile must be 8-row aligned"

    R_mid = (TH + 2) * Wp                          # intermediate rows per tile (+halo)
    R_out = TH * Wp                                # output rows per tile (padded width)
    ROWS_IN = Hp * Wp + 2 * (Wp + 1)               # flattened padded input rows

    # NCHW -> NHWC, zero-pad the spatial ring, flatten rows = y*Wp + x, and add
    # Wp+1 extra zero rows on each end so every tap slice of every tile is in bounds.
    x = jnp.transpose(x_nchw, (0, 2, 3, 1))
    xpad = jnp.pad(x, ((0, 0), (1, 1), (1, 1), (0, 0)))
    xf = xpad.reshape(N, Hp * Wp, Cin)
    xf = jnp.pad(xf, ((0, 0), (Wp + 1, Wp + 1), (0, 0)))

    # Interior mask over the padded grid (1 on real pixels, 0 on the pad ring).
    idx = jnp.arange(Hp * Wp, dtype=jnp.int32)
    interior = ((idx % Wp >= 1) & (idx % Wp <= W) &
                (idx // Wp >= 1) & (idx // Wp <= H))
    mask = interior.astype(jnp.float32)[:, None]   # (Hp*Wp, 1)

    w1, s1, b1 = _fold_bn(p1)
    w2, s2, b2 = _fold_bn(p2)

    kernel = functools.partial(conv_block_kernel, wp=Wp)

    out = pl.pallas_call(
        kernel,
        out_shape=jax.ShapeDtypeStruct((N, H * Wp, Cout), jnp.float32),
        grid_spec=pltpu.PrefetchScalarGridSpec(
            num_scalar_prefetch=0,
            grid=(N, H // TH),
            in_specs=[
                # Whole padded image per batch element: block index is constant
                # across the row-tile axis, so it is DMA'd once per image and
                # reused from VMEM by every tile.
                pl.BlockSpec((None, ROWS_IN, Cin), lambda n, i: (n, 0, 0)),
                pl.BlockSpec((Hp * Wp, 1), lambda n, i: (0, 0)),
                pl.BlockSpec((9 * Cin, Cmid), lambda n, i: (0, 0)),
                pl.BlockSpec((1, Cmid), lambda n, i: (0, 0)),
                pl.BlockSpec((1, Cmid), lambda n, i: (0, 0)),
                pl.BlockSpec((9 * Cmid, Cout), lambda n, i: (0, 0)),
                pl.BlockSpec((1, Cout), lambda n, i: (0, 0)),
                pl.BlockSpec((1, Cout), lambda n, i: (0, 0)),
            ],
            out_specs=pl.BlockSpec((None, R_out, Cout), lambda n, i: (n, i, 0)),
            scratch_shapes=[
                pltpu.VMEM((R_mid, 9 * Cin), jnp.bfloat16),      # conv1 im2col slab
                pltpu.VMEM((R_mid + 16, Cmid), jnp.float32),     # intermediate (+halo)
                pltpu.VMEM((R_out, 9 * Cmid), jnp.bfloat16),     # conv2 im2col slab
            ]),
        compiler_params=pltpu.CompilerParams(
            dimension_semantics=("parallel", "parallel")),
    )(xf, mask, w1, s1, b1, w2, s2, b2)

    # Drop the two padded columns, back to NCHW.
    out = out.reshape(N, H, Wp, Cout)[:, :, 1:W + 1, :]
    return jnp.transpose(out, (0, 3, 1, 2))


# --------------------------- pure-JAX reference ----------------------------- #

def conv_block_reference(x_nchw, params):
    """Reference with the same numerics (bf16 operands, f32 accumulation)."""
    def layer(x, p):
        w, b, gamma, beta, mean, var = p
        w_hwio = jnp.transpose(w, (2, 3, 1, 0)).astype(jnp.bfloat16)
        y = jax.lax.conv_general_dilated(
            x.astype(jnp.bfloat16), w_hwio, window_strides=(1, 1),
            padding=((1, 1), (1, 1)),
            dimension_numbers=("NHWC", "HWIO", "NHWC"),
            preferred_element_type=jnp.float32)
        s = gamma / jnp.sqrt(var + BN_EPS)
        y = y * s.reshape(1, 1, 1, -1) + ((b - mean) * s + beta).reshape(1, 1, 1, -1)
        return jnp.maximum(y, 0.0)

    x = jnp.transpose(x_nchw, (0, 2, 3, 1))
    h = layer(x, params[0])
    y = layer(h, params[1])          # Dropout(p=0.0) between layers is identity
    return jnp.transpose(y, (0, 3, 1, 2))


# ------------------------------ parameter init ------------------------------ #

def init_conv_bn(key, cin, cout):
    kw, kb, kg, kbe, km, kv = jax.random.split(key, 6)
    bound = 1.0 / math.sqrt(cin * 9)
    w = jax.random.uniform(kw, (cout, cin, 3, 3), jnp.float32, -bound, bound)
    b = jax.random.uniform(kb, (cout,), jnp.float32, -bound, bound)
    gamma = jax.random.uniform(kg, (cout,), jnp.float32, 0.8, 1.2)
    beta = jax.random.uniform(kbe, (cout,), jnp.float32, -0.1, 0.1)
    mean = jax.random.uniform(km, (cout,), jnp.float32, -0.1, 0.1)
    var = jax.random.uniform(kv, (cout,), jnp.float32, 0.5, 1.5)
    return (w, b, gamma, beta, mean, var)


def init_conv_block(key, in_ch, out_ch):
    k1, k2 = jax.random.split(key)
    return (init_conv_bn(k1, in_ch, out_ch), init_conv_bn(k2, out_ch, out_ch))


# ----------------------------------- main ----------------------------------- #

if __name__ == "__main__":
    key = jax.random.PRNGKey(0)
    k_param, k_x = jax.random.split(key)

    N, IN_CH, OUT_CH, H, W = 2, 4, 32, 16, 16
    x = jax.random.normal(k_x, (N, IN_CH, H, W), jnp.float32)   # NCHW like PyTorch
    params = init_conv_block(k_param, IN_CH, OUT_CH)

    fwd = jax.jit(functools.partial(conv_block_forward, tile_h=8))
    out = jax.block_until_ready(fwd(x, params))

    assert out.shape == (N, OUT_CH, H, W), out.shape
    assert bool(jnp.all(jnp.isfinite(out)))

    ref = jax.block_until_ready(jax.jit(conv_block_reference)(x, params))
    max_err = float(jnp.max(jnp.abs(out - ref)))
    assert max_err < 5e-2, f"max abs error vs reference: {max_err}"

    print("KERNEL_OK")
</pallas_src>

<mosaic_0001>
module attributes {stable_mosaic.version = 11 : i64} {
  func.func @conv_block_kernel(%arg0: i32, %arg1: i32, %arg2: memref<1x362x4xf32, #tpu.memory_space<vmem>>, %arg3: memref<324x1xf32, #tpu.memory_space<vmem>>, %arg4: memref<36x32xbf16, #tpu.memory_space<vmem>>, %arg5: memref<1x32xf32, #tpu.memory_space<vmem>>, %arg6: memref<1x32xf32, #tpu.memory_space<vmem>>, %arg7: memref<288x32xbf16, #tpu.memory_space<vmem>>, %arg8: memref<1x32xf32, #tpu.memory_space<vmem>>, %arg9: memref<1x32xf32, #tpu.memory_space<vmem>>, %arg10: memref<1x144x32xf32, #tpu.memory_space<vmem>>, %arg11: memref<180x36xbf16, #tpu.memory_space<vmem>>, %arg12: memref<196x32xf32, #tpu.memory_space<vmem>>, %arg13: memref<144x288xbf16, #tpu.memory_space<vmem>>) attributes {dimension_semantics = [#tpu.dimension_semantics<parallel>, #tpu.dimension_semantics<parallel>], iteration_bounds = array<i64: 2, 2>, scalar_prefetch = 0 : i64, scratch_operands = 3 : i64, tpu.core_type = #tpu.core_type<tc>, window_params = [{transform_indices = @transform_0, window_bounds = array<i64: 1, 362, 4>}, {pipeline_mode = #tpu.pipeline_mode<synchronous>, transform_indices = @transform_1, window_bounds = array<i64: 324, 1>}, {pipeline_mode = #tpu.pipeline_mode<synchronous>, transform_indices = @transform_2, window_bounds = array<i64: 36, 32>}, {pipeline_mode = #tpu.pipeline_mode<synchronous>, transform_indices = @transform_3, window_bounds = array<i64: 1, 32>}, {pipeline_mode = #tpu.pipeline_mode<synchronous>, transform_indices = @transform_4, window_bounds = array<i64: 1, 32>}, {pipeline_mode = #tpu.pipeline_mode<synchronous>, transform_indices = @transform_5, window_bounds = array<i64: 288, 32>}, {pipeline_mode = #tpu.pipeline_mode<synchronous>, transform_indices = @transform_6, window_bounds = array<i64: 1, 32>}, {pipeline_mode = #tpu.pipeline_mode<synchronous>, transform_indices = @transform_7, window_bounds = array<i64: 1, 32>}, {transform_indices = @transform_8, window_bounds = array<i64: 1, 144, 32>}]} {
    %c144_i32 = arith.constant 144 : i32
    %0 = arith.muli %arg1, %c144_i32 : i32
    %1 = tpu.assume_multiple %0, 8 : i32
    %c0_i32 = arith.constant 0 : i32
    %2 = arith.addi %1, %c0_i32 : i32
    %c0_i32_0 = arith.constant 0 : i32
    %3 = arith.addi %2, %c0_i32_0 : i32
    %c0 = arith.constant 0 : index
    %4 = arith.index_cast %3 : i32 to index
    %c0_1 = arith.constant 0 : index
    %5 = vector.load %arg2[%c0, %4, %c0_1] : memref<1x362x4xf32, #tpu.memory_space<vmem>>, vector<1x180x4xf32>
    %6 = vector.shape_cast %5 : vector<1x180x4xf32> to vector<180x4xf32>
    %7 = arith.truncf %6 : vector<180x4xf32> to vector<180x4xbf16>
    %c0_2 = arith.constant 0 : index
    %c0_3 = arith.constant 0 : index
    %8 = vector.load %arg11[%c0_2, %c0_3] : memref<180x36xbf16, #tpu.memory_space<vmem>>, vector<180x4xbf16>
    tpu.vector_store %arg11[%c0_2, %c0_3], %7 {strides = array<i32>} : memref<180x36xbf16, #tpu.memory_space<vmem>>, vector<180x4xbf16>,
    %c0_i32_4 = arith.constant 0 : i32
    %9 = arith.addi %1, %c0_i32_4 : i32
    %c1_i32 = arith.constant 1 : i32
    %10 = arith.addi %9, %c1_i32 : i32
    %c0_5 = arith.constant 0 : index
    %11 = arith.index_cast %10 : i32 to index
    %c0_6 = arith.constant 0 : index
    %12 = vector.load %arg2[%c0_5, %11, %c0_6] : memref<1x362x4xf32, #tpu.memory_space<vmem>>, vector<1x180x4xf32>
    %13 = vector.shape_cast %12 : vector<1x180x4xf32> to vector<180x4xf32>
    %14 = arith.truncf %13 : vector<180x4xf32> to vector<180x4xbf16>
    %c0_7 = arith.constant 0 : index
    %c4 = arith.constant 4 : index
    %15 = vector.load %arg11[%c0_7, %c4] : memref<180x36xbf16, #tpu.memory_space<vmem>>, vector<180x4xbf16>
    tpu.vector_store %arg11[%c0_7, %c4], %14 {strides = array<i32>} : memref<180x36xbf16, #tpu.memory_space<vmem>>, vector<180x4xbf16>,
    %c0_i32_8 = arith.constant 0 : i32
    %16 = arith.addi %1, %c0_i32_8 : i32
    %c2_i32 = arith.constant 2 : i32
    %17 = arith.addi %16, %c2_i32 : i32
    %c0_9 = arith.constant 0 : index
    %18 = arith.index_cast %17 : i32 to index
    %c0_10 = arith.constant 0 : index
    %19 = vector.load %arg2[%c0_9, %18, %c0_10] : memref<1x362x4xf32, #tpu.memory_space<vmem>>, vector<1x180x4xf32>
    %20 = vector.shape_cast %19 : vector<1x180x4xf32> to vector<180x4xf32>
    %21 = arith.truncf %20 : vector<180x4xf32> to vector<180x4xbf16>
    %c0_11 = arith.constant 0 : index
    %c8 = arith.constant 8 : index
    %22 = vector.load %arg11[%c0_11, %c8] : memref<180x36xbf16, #tpu.memory_space<vmem>>, vector<180x4xbf16>
    tpu.vector_store %arg11[%c0_11, %c8], %21 {strides = array<i32>} : memref<180x36xbf16, #tpu.memory_space<vmem>>, vector<180x4xbf16>,
    %c18_i32 = arith.constant 18 : i32
    %23 = arith.addi %1, %c18_i32 : i32
    %c0_i32_12 = arith.constant 0 : i32
    %24 = arith.addi %23, %c0_i32_12 : i32
    %c0_13 = arith.constant 0 : index
    %25 = arith.index_cast %24 : i32 to index
    %c0_14 = arith.constant 0 : index
    %26 = vector.load %arg2[%c0_13, %25, %c0_14] : memref<1x362x4xf32, #tpu.memory_space<vmem>>, vector<1x180x4xf32>
    %27 = vector.shape_cast %26 : vector<1x180x4xf32> to vector<180x4xf32>
    %28 = arith.truncf %27 : vector<180x4xf32> to vector<180x4xbf16>
    %c0_15 = arith.constant 0 : index
    %c12 = arith.constant 12 : index
    %29 = vector.load %arg11[%c0_15, %c12] : memref<180x36xbf16, #tpu.memory_space<vmem>>, vector<180x4xbf16>
    tpu.vector_store %arg11[%c0_15, %c12], %28 {strides = array<i32>} : memref<180x36xbf16, #tpu.memory_space<vmem>>, vector<180x4xbf16>,
    %c18_i32_16 = arith.constant 18 : i32
    %30 = arith.addi %1, %c18_i32_16 : i32
    %c1_i32_17 = arith.constant 1 : i32
    %31 = arith.addi %30, %c1_i32_17 : i32
    %c0_18 = arith.constant 0 : index
    %32 = arith.index_cast %31 : i32 to index
    %c0_19 = arith.constant 0 : index
    %33 = vector.load %arg2[%c0_18, %32, %c0_19] : memref<1x362x4xf32, #tpu.memory_space<vmem>>, vector<1x180x4xf32>
    %34 = vector.shape_cast %33 : vector<1x180x4xf32> to vector<180x4xf32>
    %35 = arith.truncf %34 : vector<180x4xf32> to vector<180x4xbf16>
    %c0_20 = arith.constant 0 : index
    %c16 = arith.constant 16 : index
    %36 = vector.load %arg11[%c0_20, %c16] : memref<180x36xbf16, #tpu.memory_space<vmem>>, vector<180x4xbf16>
    tpu.vector_store %arg11[%c0_20, %c16], %35 {strides = array<i32>} : memref<180x36xbf16, #tpu.memory_space<vmem>>, vector<180x4xbf16>,
    %c18_i32_21 = arith.constant 18 : i32
    %37 = arith.addi %1, %c18_i32_21 : i32
    %c2_i32_22 = arith.constant 2 : i32
    %38 = arith.addi %37, %c2_i32_22 : i32
    %c0_23 = arith.constant 0 : index
    %39 = arith.index_cast %38 : i32 to index
    %c0_24 = arith.constant 0 : index
    %40 = vector.load %arg2[%c0_23, %39, %c0_24] : memref<1x362x4xf32, #tpu.memory_space<vmem>>, vector<1x180x4xf32>
    %41 = vector.shape_cast %40 : vector<1x180x4xf32> to vector<180x4xf32>
    %42 = arith.truncf %41 : vector<180x4xf32> to vector<180x4xbf16>
    %c0_25 = arith.constant 0 : index
    %c20 = arith.constant 20 : index
    %43 = vector.load %arg11[%c0_25, %c20] : memref<180x36xbf16, #tpu.memory_space<vmem>>, vector<180x4xbf16>
    tpu.vector_store %arg11[%c0_25, %c20], %42 {strides = array<i32>} : memref<180x36xbf16, #tpu.memory_space<vmem>>, vector<180x4xbf16>,
    %c36_i32 = arith.constant 36 : i32
    %44 = arith.addi %1, %c36_i32 : i32
    %c0_i32_26 = arith.constant 0 : i32
    %45 = arith.addi %44, %c0_i32_26 : i32
    %c0_27 = arith.constant 0 : index
    %46 = arith.index_cast %45 : i32 to index
    %c0_28 = arith.constant 0 : index
    %47 = vector.load %arg2[%c0_27, %46, %c0_28] : memref<1x362x4xf32, #tpu.memory_space<vmem>>, vector<1x180x4xf32>
    %48 = vector.shape_cast %47 : vector<1x180x4xf32> to vector<180x4xf32>
    %49 = arith.truncf %48 : vector<180x4xf32> to vector<180x4xbf16>
    %c0_29 = arith.constant 0 : index
    %c24 = arith.constant 24 : index
    %50 = vector.load %arg11[%c0_29, %c24] : memref<180x36xbf16, #tpu.memory_space<vmem>>, vector<180x4xbf16>
    tpu.vector_store %arg11[%c0_29, %c24], %49 {strides = array<i32>} : memref<180x36xbf16, #tpu.memory_space<vmem>>, vector<180x4xbf16>,
    %c36_i32_30 = arith.constant 36 : i32
    %51 = arith.addi %1, %c36_i32_30 : i32
    %c1_i32_31 = arith.constant 1 : i32
    %52 = arith.addi %51, %c1_i32_31 : i32
    %c0_32 = arith.constant 0 : index
    %53 = arith.index_cast %52 : i32 to index
    %c0_33 = arith.constant 0 : index
    %54 = vector.load %arg2[%c0_32, %53, %c0_33] : memref<1x362x4xf32, #tpu.memory_space<vmem>>, vector<1x180x4xf32>
    %55 = vector.shape_cast %54 : vector<1x180x4xf32> to vector<180x4xf32>
    %56 = arith.truncf %55 : vector<180x4xf32> to vector<180x4xbf16>
    %c0_34 = arith.constant 0 : index
    %c28 = arith.constant 28 : index
    %57 = vector.load %arg11[%c0_34, %c28] : memref<180x36xbf16, #tpu.memory_space<vmem>>, vector<180x4xbf16>
    tpu.vector_store %arg11[%c0_34, %c28], %56 {strides = array<i32>} : memref<180x36xbf16, #tpu.memory_space<vmem>>, vector<180x4xbf16>,
    %c36_i32_35 = arith.constant 36 : i32
    %58 = arith.addi %1, %c36_i32_35 : i32
    %c2_i32_36 = arith.constant 2 : i32
    %59 = arith.addi %58, %c2_i32_36 : i32
    %c0_37 = arith.constant 0 : index
    %60 = arith.index_cast %59 : i32 to index
    %c0_38 = arith.constant 0 : index
    %61 = vector.load %arg2[%c0_37, %60, %c0_38] : memref<1x362x4xf32, #tpu.memory_space<vmem>>, vector<1x180x4xf32>
    %62 = vector.shape_cast %61 : vector<1x180x4xf32> to vector<180x4xf32>
    %63 = arith.truncf %62 : vector<180x4xf32> to vector<180x4xbf16>
    %c0_39 = arith.constant 0 : index
    %c32 = arith.constant 32 : index
    %64 = vector.load %arg11[%c0_39, %c32] : memref<180x36xbf16, #tpu.memory_space<vmem>>, vector<180x4xbf16>
    tpu.vector_store %arg11[%c0_39, %c32], %63 {strides = array<i32>} : memref<180x36xbf16, #tpu.memory_space<vmem>>, vector<180x4xbf16>,
    %c0_40 = arith.constant 0 : index
    %c0_41 = arith.constant 0 : index
    %65 = vector.load %arg11[%c0_40, %c0_41] : memref<180x36xbf16, #tpu.memory_space<vmem>>, vector<180x36xbf16>
    %c0_42 = arith.constant 0 : index
    %c0_43 = arith.constant 0 : index
    %66 = vector.load %arg4[%c0_42, %c0_43] : memref<36x32xbf16, #tpu.memory_space<vmem>>, vector<36x32xbf16>
    %cst = arith.constant dense<0.000000e+00> : vector<180x32xf32>
    %67 = tpu.matmul %65, %66, %cst {dimension_numbers = #tpu.dot_dimension_numbers<[1], [0], [0], [1], [0, 0, 1, 1], [], []>} : vector<180x36xbf16>, vector<36x32xbf16>, vector<180x32xf32> -> vector<180x32xf32>
    %c0_44 = arith.constant 0 : index
    %c0_45 = arith.constant 0 : index
    %68 = vector.load %arg5[%c0_44, %c0_45] : memref<1x32xf32, #tpu.memory_space<vmem>>, vector<1x32xf32>
    %69 = vector.broadcast %68 : vector<1x32xf32> to vector<180x32xf32>
    %70 = arith.mulf %67, %69 : vector<180x32xf32>
    %c0_46 = arith.constant 0 : index
    %c0_47 = arith.constant 0 : index
    %71 = vector.load %arg6[%c0_46, %c0_47] : memref<1x32xf32, #tpu.memory_space<vmem>>, vector<1x32xf32>
    %72 = vector.broadcast %71 : vector<1x32xf32> to vector<180x32xf32>
    %73 = arith.addf %70, %72 : vector<180x32xf32>
    %cst_48 = arith.constant 0.000000e+00 : f32
    %74 = vector.broadcast %cst_48 : f32 to vector<180x32xf32>
    %75 = arith.maximumf %73, %74 : vector<180x32xf32>
    %76 = arith.index_cast %1 : i32 to index
    %c0_49 = arith.constant 0 : index
    %77 = vector.load %arg3[%76, %c0_49] : memref<324x1xf32, #tpu.memory_space<vmem>>, vector<180x1xf32>
    %78 = vector.broadcast %77 : vector<180x1xf32> to vector<180x32xf32>
    %79 = arith.mulf %75, %78 : vector<180x32xf32>
    %cst_50 = arith.constant 0.000000e+00 : f32
    %80 = vector.broadcast %cst_50 : f32 to vector<8x32xf32>
    %c0_51 = arith.constant 0 : index
    %c0_52 = arith.constant 0 : index
    %81 = vector.load %arg12[%c0_51, %c0_52] : memref<196x32xf32, #tpu.memory_space<vmem>>, vector<8x32xf32>
    tpu.vector_store %arg12[%c0_51, %c0_52], %80 {strides = array<i32>} : memref<196x32xf32, #tpu.memory_space<vmem>>, vector<8x32xf32>,
    %c188 = arith.constant 188 : index
    %c0_53 = arith.constant 0 : index
    %82 = vector.load %arg12[%c188, %c0_53] : memref<196x32xf32, #tpu.memory_space<vmem>>, vector<8x32xf32>
    tpu.vector_store %arg12[%c188, %c0_53], %80 {strides = array<i32>} : memref<196x32xf32, #tpu.memory_space<vmem>>, vector<8x32xf32>,
    %c8_54 = arith.constant 8 : index
    %c0_55 = arith.constant 0 : index
    %83 = vector.load %arg12[%c8_54, %c0_55] : memref<196x32xf32, #tpu.memory_space<vmem>>, vector<180x32xf32>
    tpu.vector_store %arg12[%c8_54, %c0_55], %79 {strides = array<i32>} : memref<196x32xf32, #tpu.memory_space<vmem>>, vector<180x32xf32>,
    %c7 = arith.constant 7 : index
    %c0_56 = arith.constant 0 : index
    %84 = vector.load %arg12[%c7, %c0_56] : memref<196x32xf32, #tpu.memory_space<vmem>>, vector<144x32xf32>
    %85 = arith.truncf %84 : vector<144x32xf32> to vector<144x32xbf16>
    %c0_57 = arith.constant 0 : index
    %c0_58 = arith.constant 0 : index
    %86 = vector.load %arg13[%c0_57, %c0_58] : memref<144x288xbf16, #tpu.memory_space<vmem>>, vector<144x32xbf16>
    tpu.vector_store %arg13[%c0_57, %c0_58], %85 {strides = array<i32>} : memref<144x288xbf16, #tpu.memory_space<vmem>>, vector<144x32xbf16>,
    %c8_59 = arith.constant 8 : index
    %c0_60 = arith.constant 0 : index
    %87 = vector.load %arg12[%c8_59, %c0_60] : memref<196x32xf32, #tpu.memory_space<vmem>>, vector<144x32xf32>
    %88 = arith.truncf %87 : vector<144x32xf32> to vector<144x32xbf16>
    %c0_61 = arith.constant 0 : index
    %c32_62 = arith.constant 32 : index
    %89 = vector.load %arg13[%c0_61, %c32_62] : memref<144x288xbf16, #tpu.memory_space<vmem>>, vector<144x32xbf16>
    tpu.vector_store %arg13[%c0_61, %c32_62], %88 {strides = array<i32>} : memref<144x288xbf16, #tpu.memory_space<vmem>>, vector<144x32xbf16>,
    %c9 = arith.constant 9 : index
    %c0_63 = arith.constant 0 : index
    %90 = vector.load %arg12[%c9, %c0_63] : memref<196x32xf32, #tpu.memory_space<vmem>>, vector<144x32xf32>
    %91 = arith.truncf %90 : vector<144x32xf32> to vector<144x32xbf16>
    %c0_64 = arith.constant 0 : index
    %c64 = arith.constant 64 : index
    %92 = vector.load %arg13[%c0_64, %c64] : memref<144x288xbf16, #tpu.memory_space<vmem>>, vector<144x32xbf16>
    tpu.vector_store %arg13[%c0_64, %c64], %91 {strides = array<i32>} : memref<144x288xbf16, #tpu.memory_space<vmem>>, vector<144x32xbf16>,
    %c25 = arith.constant 25 : index
    %c0_65 = arith.constant 0 : index
    %93 = vector.load %arg12[%c25, %c0_65] : memref<196x32xf32, #tpu.memory_space<vmem>>, vector<144x32xf32>
    %94 = arith.truncf %93 : vector<144x32xf32> to vector<144x32xbf16>
    %c0_66 = arith.constant 0 : index
    %c96 = arith.constant 96 : index
    %95 = vector.load %arg13[%c0_66, %c96] : memref<144x288xbf16, #tpu.memory_space<vmem>>, vector<144x32xbf16>
    tpu.vector_store %arg13[%c0_66, %c96], %94 {strides = array<i32>} : memref<144x288xbf16, #tpu.memory_space<vmem>>, vector<144x32xbf16>,
    %c26 = arith.constant 26 : index
    %c0_67 = arith.constant 0 : index
    %96 = vector.load %arg12[%c26, %c0_67] : memref<196x32xf32, #tpu.memory_space<vmem>>, vector<144x32xf32>
    %97 = arith.truncf %96 : vector<144x32xf32> to vector<144x32xbf16>
    %c0_68 = arith.constant 0 : index
    %c128 = arith.constant 128 : index
    %98 = vector.load %arg13[%c0_68, %c128] : memref<144x288xbf16, #tpu.memory_space<vmem>>, vector<144x32xbf16>
    tpu.vector_store %arg13[%c0_68, %c128], %97 {strides = array<i32>} : memref<144x288xbf16, #tpu.memory_space<vmem>>, vector<144x32xbf16>,
    %c27 = arith.constant 27 : index
    %c0_69 = arith.constant 0 : index
    %99 = vector.load %arg12[%c27, %c0_69] : memref<196x32xf32, #tpu.memory_space<vmem>>, vector<144x32xf32>
    %100 = arith.truncf %99 : vector<144x32xf32> to vector<144x32xbf16>
    %c0_70 = arith.constant 0 : index
    %c160 = arith.constant 160 : index
    %101 = vector.load %arg13[%c0_70, %c160] : memref<144x288xbf16, #tpu.memory_space<vmem>>, vector<144x32xbf16>
    tpu.vector_store %arg13[%c0_70, %c160], %100 {strides = array<i32>} : memref<144x288xbf16, #tpu.memory_space<vmem>>, vector<144x32xbf16>,
    %c43 = arith.constant 43 : index
    %c0_71 = arith.constant 0 : index
    %102 = vector.load %arg12[%c43, %c0_71] : memref<196x32xf32, #tpu.memory_space<vmem>>, vector<144x32xf32>
    %103 = arith.truncf %102 : vector<144x32xf32> to vector<144x32xbf16>
    %c0_72 = arith.constant 0 : index
    %c192 = arith.constant 192 : index
    %104 = vector.load %arg13[%c0_72, %c192] : memref<144x288xbf16, #tpu.memory_space<vmem>>, vector<144x32xbf16>
    tpu.vector_store %arg13[%c0_72, %c192], %103 {strides = array<i32>} : memref<144x288xbf16, #tpu.memory_space<vmem>>, vector<144x32xbf16>,
    %c44 = arith.constant 44 : index
    %c0_73 = arith.constant 0 : index
    %105 = vector.load %arg12[%c44, %c0_73] : memref<196x32xf32, #tpu.memory_space<vmem>>, vector<144x32xf32>
    %106 = arith.truncf %105 : vector<144x32xf32> to vector<144x32xbf16>
    %c0_74 = arith.constant 0 : index
    %c224 = arith.constant 224 : index
    %107 = vector.load %arg13[%c0_74, %c224] : memref<144x288xbf16, #tpu.memory_space<vmem>>, vector<144x32xbf16>
    tpu.vector_store %arg13[%c0_74, %c224], %106 {strides = array<i32>} : memref<144x288xbf16, #tpu.memory_space<vmem>>, vector<144x32xbf16>,
    %c45 = arith.constant 45 : index
    %c0_75 = arith.constant 0 : index
    %108 = vector.load %arg12[%c45, %c0_75] : memref<196x32xf32, #tpu.memory_space<vmem>>, vector<144x32xf32>
    %109 = arith.truncf %108 : vector<144x32xf32> to vector<144x32xbf16>
    %c0_76 = arith.constant 0 : index
    %c256 = arith.constant 256 : index
    %110 = vector.load %arg13[%c0_76, %c256] : memref<144x288xbf16, #tpu.memory_space<vmem>>, vector<144x32xbf16>
    tpu.vector_store %arg13[%c0_76, %c256], %109 {strides = array<i32>} : memref<144x288xbf16, #tpu.memory_space<vmem>>, vector<144x32xbf16>,
    %c0_77 = arith.constant 0 : index
    %c0_78 = arith.constant 0 : index
    %111 = vector.load %arg13[%c0_77, %c0_78] : memref<144x288xbf16, #tpu.memory_space<vmem>>, vector<144x288xbf16>
    %c0_79 = arith.constant 0 : index
    %c0_80 = arith.constant 0 : index
    %112 = vector.load %arg7[%c0_79, %c0_80] : memref<288x32xbf16, #tpu.memory_space<vmem>>, vector<288x32xbf16>
    %cst_81 = arith.constant dense<0.000000e+00> : vector<144x32xf32>
    %113 = tpu.matmul %111, %112, %cst_81 {dimension_numbers = #tpu.dot_dimension_numbers<[1], [0], [0], [1], [0, 0, 1, 1], [], []>} : vector<144x288xbf16>, vector<288x32xbf16>, vector<144x32xf32> -> vector<144x32xf32>
    %c0_82 = arith.constant 0 : index
    %c0_83 = arith.constant 0 : index
    %114 = vector.load %arg8[%c0_82, %c0_83] : memref<1x32xf32, #tpu.memory_space<vmem>>, vector<1x32xf32>
    %115 = vector.broadcast %114 : vector<1x32xf32> to vector<144x32xf32>
    %116 = arith.mulf %113, %115 : vector<144x32xf32>
    %c0_84 = arith.constant 0 : index
    %c0_85 = arith.constant 0 : index
    %117 = vector.load %arg9[%c0_84, %c0_85] : memref<1x32xf32, #tpu.memory_space<vmem>>, vector<1x32xf32>
    %118 = vector.broadcast %117 : vector<1x32xf32> to vector<144x32xf32>
    %119 = arith.addf %116, %118 : vector<144x32xf32>
    %cst_86 = arith.constant 0.000000e+00 : f32
    %120 = vector.broadcast %cst_86 : f32 to vector<144x32xf32>
    %121 = arith.maximumf %119, %120 : vector<144x32xf32>
    %c0_87 = arith.constant 0 : index
    %c0_88 = arith.constant 0 : index
    %c0_89 = arith.constant 0 : index
    %122 = vector.load %arg10[%c0_87, %c0_88, %c0_89] : memref<1x144x32xf32, #tpu.memory_space<vmem>>, vector<1x144x32xf32>
    %123 = vector.shape_cast %122 : vector<1x144x32xf32> to vector<144x32xf32>
    %124 = vector.shape_cast %121 : vector<144x32xf32> to vector<1x144x32xf32>
    tpu.vector_store %arg10[%c0_87, %c0_88, %c0_89], %124 {strides = array<i32>} : memref<1x144x32xf32, #tpu.memory_space<vmem>>, vector<1x144x32xf32>,
    return
  }
  func.func @transform_0(%arg0: i32, %arg1: i32) -> (i32, i32, i32) {
    %c0_i32 = arith.constant 0 : i32
    %c0_i32_0 = arith.constant 0 : i32
    %c0_i32_1 = arith.constant 0 : i32
    return %arg0, %c0_i32, %c0_i32_0 : i32, i32, i32
  }
  func.func @transform_1(%arg0: i32, %arg1: i32) -> (i32, i32) {
    %c0_i32 = arith.constant 0 : i32
    %c0_i32_0 = arith.constant 0 : i32
    %c0_i32_1 = arith.constant 0 : i32
    return %c0_i32, %c0_i32_0 : i32, i32
  }
  func.func @transform_2(%arg0: i32, %arg1: i32) -> (i32, i32) {
    %c0_i32 = arith.constant 0 : i32
    %c0_i32_0 = arith.constant 0 : i32
    %c0_i32_1 = arith.constant 0 : i32
    return %c0_i32, %c0_i32_0 : i32, i32
  }
  func.func @transform_3(%arg0: i32, %arg1: i32) -> (i32, i32) {
    %c0_i32 = arith.constant 0 : i32
    %c0_i32_0 = arith.constant 0 : i32
    %c0_i32_1 = arith.constant 0 : i32
    return %c0_i32, %c0_i32_0 : i32, i32
  }
  func.func @transform_4(%arg0: i32, %arg1: i32) -> (i32, i32) {
    %c0_i32 = arith.constant 0 : i32
    %c0_i32_0 = arith.constant 0 : i32
    %c0_i32_1 = arith.constant 0 : i32
    return %c0_i32, %c0_i32_0 : i32, i32
  }
  func.func @transform_5(%arg0: i32, %arg1: i32) -> (i32, i32) {
    %c0_i32 = arith.constant 0 : i32
    %c0_i32_0 = arith.constant 0 : i32
    %c0_i32_1 = arith.constant 0 : i32
    return %c0_i32, %c0_i32_0 : i32, i32
  }
  func.func @transform_6(%arg0: i32, %arg1: i32) -> (i32, i32) {
    %c0_i32 = arith.constant 0 : i32
    %c0_i32_0 = arith.constant 0 : i32
    %c0_i32_1 = arith.constant 0 : i32
    return %c0_i32, %c0_i32_0 : i32, i32
  }
  func.func @transform_7(%arg0: i32, %arg1: i32) -> (i32, i32) {
    %c0_i32 = arith.constant 0 : i32
    %c0_i32_0 = arith.constant 0 : i32
    %c0_i32_1 = arith.constant 0 : i32
    return %c0_i32, %c0_i32_0 : i32, i32
  }
  func.func @transform_8(%arg0: i32, %arg1: i32) -> (i32, i32, i32) {
    %c0_i32 = arith.constant 0 : i32
    %c0_i32_0 = arith.constant 0 : i32
    return %arg0, %arg1, %c0_i32 : i32, i32, i32
  }
}

</mosaic_0001>

<llo_original>
// kernel: conv_block_forward.1
$region0: #{conv_block_forward.1}
  #allocation0 [shape = 'u32[]', space=smem, size = 0x4, offset = 0x4, fixed_abs, tag = 'smem constant byte address 0x4 - core index']
  #allocation1 [shape = 'u32[144,128]{1,0:T(1,128)}', space=vmem, size = 0x12000, scoped, tag = 'internal scratch']
  #allocation2 [shape = 'bf16[180,36]{1,0:T(8,128)(2,1)}', space=vmem, size = 0xb800, scoped, tag = 'scratch operand']
  #allocation3 [shape = 'f32[196,32]{1,0:T(8,128)}', space=vmem, size = 0x19000, scoped, tag = 'scratch operand']
  #allocation4 [shape = 'bf16[144,288]{1,0:T(16,128)(2,1)}', space=vmem, size = 0x1b000, scoped, tag = 'scratch operand']
  %s0 = inlined_call_operand.vmem [shape: f32[2,362,4], index: 0, kind: input, shape index: {}]
  %s1 = inlined_call_operand.vmem [shape: f32[324,1], index: 1, kind: input, shape index: {}]
  %s2 = inlined_call_operand.vmem [shape: bf16[36,32], index: 2, kind: input, shape index: {}]
  %s3 = inlined_call_operand.vmem [shape: f32[1,32], index: 3, kind: input, shape index: {}]
  %s4 = inlined_call_operand.vmem [shape: f32[1,32], index: 4, kind: input, shape index: {}]
  %s5 = inlined_call_operand.vmem [shape: bf16[288,32], index: 5, kind: input, shape index: {}]
  %s6 = inlined_call_operand.vmem [shape: f32[1,32], index: 6, kind: input, shape index: {}]
  %s7 = inlined_call_operand.vmem [shape: f32[1,32], index: 7, kind: input, shape index: {}]
  %s8 = inlined_call_operand.vmem [shape: f32[2,288,32], index: 8, kind: output, shape index: {}]
  %s9 = sld [smem:[#allocation0]]
  $region65: #{conv_block_forward.1} parent=0
    _
  %s11 = ssub.s32 1, %s9
  %s12 = scalar_select 0, %s11, %s9
  loop: start=0, step=1, limit=6
  $region2: #{conv_block_forward.1} parent=0 // loop_pre_header
    _
  $region3: #{conv_block_forward.1} parent=0 // loop_header
    %s14 = sphi 0, %s18
    %p15 = scmp.ge.s32.totalorder %s14, 6
    %s21 = sphi 0, %s33
    %s22 = sphi 0, %s29
    %s23 = sphi 0, %s21
    %s24 = sphi 0, %s22
    %s25 = sphi 0, %s23
    %s26 = sphi 0, %s24
    %s36 = sphi 0, %s38
    %s39 = sphi 0, %s36
    %s40 = sphi 0, %s39
    %s56 = sphi 0, %s40
    %s60 = sphi 0, %s60
    %s62 = sphi 0, %s60
    %s63 = sphi 0, %s62
    %s77 = sphi 0, %s63
    %s81 = sphi 0, %s81
    %s83 = sphi 0, %s81
    %s84 = sphi 0, %s83
    %s98 = sphi 0, %s84
    %s102 = sphi 0, %s102
    %s104 = sphi 0, %s102
    %s105 = sphi 0, %s104
    %s119 = sphi 0, %s105
    %s123 = sphi 0, %s123
    %s125 = sphi 0, %s123
    %s126 = sphi 0, %s125
    %s140 = sphi 0, %s126
    %s144 = sphi 0, %s144
    %s146 = sphi 0, %s144
    %s147 = sphi 0, %s146
    %s161 = sphi 0, %s147
    %s165 = sphi 0, %s165
    %s167 = sphi 0, %s165
    %s168 = sphi 0, %s167
    %s182 = sphi 0, %s168
    %s186 = sphi 0, %s186
    %s188 = sphi 0, %s186
    %s189 = sphi 0, %s188
    %s203 = sphi 0, %s189
    %s211 = sphi 0, %s213
    %s214 = sphi 0, %s211
    %s215 = sphi 0, %s214
    %s231 = sphi 0, %s215
  $region4: #{conv_block_forward.1} parent=0 // loop_header_branch
    %17 = sbr.rel (%p15) target = $region8
  $region5: #{conv_block_forward.1} parent=0 // loop_body
    %s19 = ssub.s32 %s14, 1
    %s20 = ssub.s32 %s14, 2
    %s27 = sadd.s32 1, %s22
    %p28 = scmp.ge.s32.totalorder %s27, 2
    %s29 = scalar_select %p28, 0, %s27
    %s30 = sadd.s32 1, %s21
    %s31 = scalar_select %p28, %s30, %s21
    %p32 = scmp.ge.s32.totalorder %s31, 2
    %s33 = scalar_select %p32, 0, %s31
    %s34 = ssub.s32 %s21, %s33
    %p35 = scmp.eq.s32.totalorder %s34, 0
    %s37 = sadd.s32 %s36, 1
    %s38 = scalar_select %p35, %s36, %s37
    %p41 = pneg %p35
    %p42 = scmp.eq.s32.totalorder %s14, 3
    %p43 = por %p41, %p42
    %p44 = scmp.ne.s32.totalorder %s36, %s39
    %p45 = scmp.eq.s32.totalorder %s14, 0
    %p46 = por %p44, %p45
    %p47 = scmp.ne.s32.totalorder %s36, %s39
    %p48 = scmp.eq.s32.totalorder %s19, 3
    %p49 = por %p47, %p48
    %p50 = scmp.ne.s32.totalorder %s39, %s40
    %p51 = scmp.eq.s32.totalorder %s19, 0
    %p52 = por %p50, %p51
    %p53 = scmp.ne.s32.totalorder %s39, %s40
    %p54 = scmp.eq.s32.totalorder %s20, 3
    %p55 = por %p53, %p54
    %p57 = scmp.ne.s32.totalorder %s40, %s56
    %p58 = scmp.eq.s32.totalorder %s20, 0
    %p59 = por %p57, %p58
    %s61 = sadd.s32 %s60, 1
    %p64 = scmp.eq.s32.totalorder %s14, 3
    %p65 = scmp.ne.s32.totalorder %s60, %s62
    %p66 = scmp.eq.s32.totalorder %s14, 0
    %p67 = por %p65, %p66
    %p68 = scmp.ne.s32.totalorder %s60, %s62
    %p69 = scmp.eq.s32.totalorder %s19, 3
    %p70 = por %p68, %p69
    %p71 = scmp.ne.s32.totalorder %s62, %s63
    %p72 = scmp.eq.s32.totalorder %s19, 0
    %p73 = por %p71, %p72
    %p74 = scmp.ne.s32.totalorder %s62, %s63
    %p75 = scmp.eq.s32.totalorder %s20, 3
    %p76 = por %p74, %p75
    %p78 = scmp.ne.s32.totalorder %s63, %s77
    %p79 = scmp.eq.s32.totalorder %s20, 0
    %p80 = por %p78, %p79
    %s82 = sadd.s32 %s81, 1
    %p85 = scmp.eq.s32.totalorder %s14, 3
    %p86 = scmp.ne.s32.totalorder %s81, %s83
    %p87 = scmp.eq.s32.totalorder %s14, 0
    %p88 = por %p86, %p87
    %p89 = scmp.ne.s32.totalorder %s81, %s83
    %p90 = scmp.eq.s32.totalorder %s19, 3
    %p91 = por %p89, %p90
    %p92 = scmp.ne.s32.totalorder %s83, %s84
    %p93 = scmp.eq.s32.totalorder %s19, 0
    %p94 = por %p92, %p93
    %p95 = scmp.ne.s32.totalorder %s83, %s84
    %p96 = scmp.eq.s32.totalorder %s20, 3
    %p97 = por %p95, %p96
    %p99 = scmp.ne.s32.totalorder %s84, %s98
    %p100 = scmp.eq.s32.totalorder %s20, 0
    %p101 = por %p99, %p100
    %s103 = sadd.s32 %s102, 1
    %p106 = scmp.eq.s32.totalorder %s14, 3
    %p107 = scmp.ne.s32.totalorder %s102, %s104
    %p108 = scmp.eq.s32.totalorder %s14, 0
    %p109 = por %p107, %p108
    %p110 = scmp.ne.s32.totalorder %s102, %s104
    %p111 = scmp.eq.s32.totalorder %s19, 3
    %p112 = por %p110, %p111
    %p113 = scmp.ne.s32.totalorder %s104, %s105
    %p114 = scmp.eq.s32.totalorder %s19, 0
    %p115 = por %p113, %p114
    %p116 = scmp.ne.s32.totalorder %s104, %s105
    %p117 = scmp.eq.s32.totalorder %s20, 3
    %p118 = por %p116, %p117
    %p120 = scmp.ne.s32.totalorder %s105, %s119
    %p121 = scmp.eq.s32.totalorder %s20, 0
    %p122 = por %p120, %p121
    %s124 = sadd.s32 %s123, 1
    %p127 = scmp.eq.s32.totalorder %s14, 3
    %p128 = scmp.ne.s32.totalorder %s123, %s125
    %p129 = scmp.eq.s32.totalorder %s14, 0
    %p130 = por %p128, %p129
    %p131 = scmp.ne.s32.totalorder %s123, %s125
    %p132 = scmp.eq.s32.totalorder %s19, 3
    %p133 = por %p131, %p132
    %p134 = scmp.ne.s32.totalorder %s125, %s126
    %p135 = scmp.eq.s32.totalorder %s19, 0
    %p136 = por %p134, %p135
    %p137 = scmp.ne.s32.totalorder %s125, %s126
    %p138 = scmp.eq.s32.totalorder %s20, 3
    %p139 = por %p137, %p138
    %p141 = scmp.ne.s32.totalorder %s126, %s140
    %p142 = scmp.eq.s32.totalorder %s20, 0
    %p143 = por %p141, %p142
    %s145 = sadd.s32 %s144, 1
    %p148 = scmp.eq.s32.totalorder %s14, 3
    %p149 = scmp.ne.s32.totalorder %s144, %s146
    %p150 = scmp.eq.s32.totalorder %s14, 0
    %p151 = por %p149, %p150
    %p152 = scmp.ne.s32.totalorder %s144, %s146
    %p153 = scmp.eq.s32.totalorder %s19, 3
    %p154 = por %p152, %p153
    %p155 = scmp.ne.s32.totalorder %s146, %s147
    %p156 = scmp.eq.s32.totalorder %s19, 0
    %p157 = por %p155, %p156
    %p158 = scmp.ne.s32.totalorder %s146, %s147
    %p159 = scmp.eq.s32.totalorder %s20, 3
    %p160 = por %p158, %p159
    %p162 = scmp.ne.s32.totalorder %s147, %s161
    %p163 = scmp.eq.s32.totalorder %s20, 0
    %p164 = por %p162, %p163
    %s166 = sadd.s32 %s165, 1
    %p169 = scmp.eq.s32.totalorder %s14, 3
    %p170 = scmp.ne.s32.totalorder %s165, %s167
    %p171 = scmp.eq.s32.totalorder %s14, 0
    %p172 = por %p170, %p171
    %p173 = scmp.ne.s32.totalorder %s165, %s167
    %p174 = scmp.eq.s32.totalorder %s19, 3
    %p175 = por %p173, %p174
    %p176 = scmp.ne.s32.totalorder %s167, %s168
    %p177 = scmp.eq.s32.totalorder %s19, 0
    %p178 = por %p176, %p177
    %p179 = scmp.ne.s32.totalorder %s167, %s168
    %p180 = scmp.eq.s32.totalorder %s20, 3
    %p181 = por %p179, %p180
    %p183 = scmp.ne.s32.totalorder %s168, %s182
    %p184 = scmp.eq.s32.totalorder %s20, 0
    %p185 = por %p183, %p184
    %s187 = sadd.s32 %s186, 1
    %p190 = scmp.eq.s32.totalorder %s14, 3
    %p191 = scmp.ne.s32.totalorder %s186, %s188
    %p192 = scmp.eq.s32.totalorder %s14, 0
    %p193 = por %p191, %p192
    %p194 = scmp.ne.s32.totalorder %s186, %s188
    %p195 = scmp.eq.s32.totalorder %s19, 3
    %p196 = por %p194, %p195
    %p197 = scmp.ne.s32.totalorder %s188, %s189
    %p198 = scmp.eq.s32.totalorder %s19, 0
    %p199 = por %p197, %p198
    %p200 = scmp.ne.s32.totalorder %s188, %s189
    %p201 = scmp.eq.s32.totalorder %s20, 3
    %p202 = por %p200, %p201
    %p204 = scmp.ne.s32.totalorder %s189, %s203
    %p205 = scmp.eq.s32.totalorder %s20, 0
    %p206 = por %p204, %p205
    %s207 = ssub.s32 %s21, %s33
    %s208 = ssub.s32 %s22, %s29
    %s209 = sor.u32 %s207, %s208
    %p210 = scmp.eq.s32.totalorder %s209, 0
    %s212 = sadd.s32 %s211, 1
    %s213 = scalar_select %p210, %s211, %s212
    %p216 = pneg %p210
    %p217 = scmp.eq.s32.totalorder %s14, 3
    %p218 = por %p216, %p217
    %p219 = scmp.ne.s32.totalorder %s211, %s214
    %p220 = scmp.eq.s32.totalorder %s14, 0
    %p221 = por %p219, %p220
    %p222 = scmp.ne.s32.totalorder %s211, %s214
    %p223 = scmp.eq.s32.totalorder %s19, 3
    %p224 = por %p222, %p223
    %p225 = scmp.ne.s32.totalorder %s214, %s215
    %p226 = scmp.eq.s32.totalorder %s19, 0
    %p227 = por %p225, %p226
    %p228 = scmp.ne.s32.totalorder %s214, %s215
    %p229 = scmp.eq.s32.totalorder %s20, 3
    %p230 = por %p228, %p229
    %p232 = scmp.ne.s32.totalorder %s215, %s231
    %p233 = scmp.eq.s32.totalorder %s20, 0
    %p234 = por %p232, %p233
    %p235 = scmp.le.s32.totalorder 1, %s14
    %p236 = scmp.lt.s32.totalorder %s14, 5
    %p237 = pnand %p235, %p236
    %p238 = pneg %p237
    // Predicated region
    $region9: #{conv_block_forward.1} parent=5 // pred_check
      _
    $region10: #{conv_block_forward.1} parent=5 // pred_check_branch
      %240 = sbr.rel (%p237) target = $region12
    $region11: #{conv_block_forward.1} parent=5 // pred_region
      %s241 = ssub.s32 %s14, 1
      // Predicated region
      $region13: #{conv_block_forward.1} parent=11 // pred_check
        %p242 = pneg %p73
      $region14: #{conv_block_forward.1} parent=11 // pred_check_branch
        %244 = sbr.rel (%p242) target = $region16
      $region15: #{conv_block_forward.1} parent=11 // pred_region
        _
      $region16: #{conv_block_forward.1} parent=11 // pred_fallthru
        _
      // Predicated region
      $region17: #{conv_block_forward.1} parent=11 // pred_check
        %p245 = pneg %p94
      $region18: #{conv_block_forward.1} parent=11 // pred_check_branch
        %247 = sbr.rel (%p245) target = $region20
      $region19: #{conv_block_forward.1} parent=11 // pred_region
        _
      $region20: #{conv_block_forward.1} parent=11 // pred_fallthru
        _
      // Predicated region
      $region21: #{conv_block_forward.1} parent=11 // pred_check
        %p248 = pneg %p115
      $region22: #{conv_block_forward.1} parent=11 // pred_check_branch
        %250 = sbr.rel (%p248) target = $region24
      $region23: #{conv_block_forward.1} parent=11 // pred_region
        _
      $region24: #{conv_block_forward.1} parent=11 // pred_fallthru
        _
      // Predicated region
      $region25: #{conv_block_forward.1} parent=11 // pred_check
        %p251 = pneg %p136
      $region26: #{conv_block_forward.1} parent=11 // pred_check_branch
        %253 = sbr.rel (%p251) target = $region28
      $region27: #{conv_block_forward.1} parent=11 // pred_region
        _
      $region28: #{conv_block_forward.1} parent=11 // pred_fallthru
        _
      // Predicated region
      $region29: #{conv_block_forward.1} parent=11 // pred_check
        %p254 = pneg %p157
      $region30: #{conv_block_forward.1} parent=11 // pred_check_branch
        %256 = sbr.rel (%p254) target = $region32
      $region31: #{conv_block_forward.1} parent=11 // pred_region
        _
      $region32: #{conv_block_forward.1} parent=11 // pred_fallthru
        _
      // Predicated region
      $region33: #{conv_block_forward.1} parent=11 // pred_check
        %p257 = pneg %p178
      $region34: #{conv_block_forward.1} parent=11 // pred_check_branch
        %259 = sbr.rel (%p257) target = $region36
      $region35: #{conv_block_forward.1} parent=11 // pred_region
        _
      $region36: #{conv_block_forward.1} parent=11 // pred_fallthru
        _
      // Predicated region
      $region37: #{conv_block_forward.1} parent=11 // pred_check
        %p260 = pneg %p199
      $region38: #{conv_block_forward.1} parent=11 // pred_check_branch
        %262 = sbr.rel (%p260) target = $region40
      $region39: #{conv_block_forward.1} parent=11 // pred_region
        _
      $region40: #{conv_block_forward.1} parent=11 // pred_fallthru
        _
    $region12: #{conv_block_forward.1} parent=5 // pred_fallthru
      _
    %p263 = scmp.lt.s32.totalorder %s14, 4
    // Predicated region
    $region41: #{conv_block_forward.1} parent=5 // pred_check
      %p264 = pneg %p263
    $region42: #{conv_block_forward.1} parent=5 // pred_check_branch
      %266 = sbr.rel (%p264) target = $region44
    $region43: #{conv_block_forward.1} parent=5 // pred_region
      // Predicated region
      $region45: #{conv_block_forward.1} parent=43 // pred_check
        %p267 = pneg %p46
      $region46: #{conv_block_forward.1} parent=43 // pred_check_branch
        %269 = sbr.rel (%p267) target = $region48
      $region47: #{conv_block_forward.1} parent=43 // pred_region
        %p270 = scmp.lt.s32.totalorder %s21, 1
        %s271 = scalar_select %p270, %s21, 1
        %s272 = smul.addr %s271, 46
        %s273 = smul.addr %s272, 8
        %s274 = scalar_lea.vmem %s0, %s273
      $region48: #{conv_block_forward.1} parent=43 // pred_fallthru
        _
    $region44: #{conv_block_forward.1} parent=5 // pred_fallthru
      _
    %p275 = scmp.le.s32.totalorder 1, %s14
    %p276 = scmp.lt.s32.totalorder %s14, 5
    %p277 = pnand %p275, %p276
    %p278 = pneg %p277
    // Predicated region
    $region49: #{conv_block_forward.1} parent=5 // pred_check
      _
    $region50: #{conv_block_forward.1} parent=5 // pred_check_branch
      %280 = sbr.rel (%p277) target = $region52
    $region51: #{conv_block_forward.1} parent=5 // pred_region
      %s281 = ssub.s32 %s14, 1
      %p282 = scmp.lt.s32.totalorder %s23, 1
      %s283 = scalar_select %p282, %s23, 1
      %s284 = smul.addr %s283, 46
      %s285 = smul.addr %s284, 8
      %s286 = scalar_lea.vmem %s0, %s285
      %p287 = pneg %p52
      %p288 = pneg %p49
      %p289 = pneg %p73
      %p290 = pneg %p70
      %p291 = pneg %p94
      %p292 = pneg %p91
      %p293 = pneg %p115
      %p294 = pneg %p112
      %p295 = pneg %p136
      %p296 = pneg %p133
      %p297 = pneg %p157
      %p298 = pneg %p154
      %p299 = pneg %p178
      %p300 = pneg %p175
      %p301 = pneg %p199
      %p302 = pneg %p196
      %p303 = pneg %p227
      %p304 = pneg %p224
      %s305 = smul.u32 18, %s24
      %p306 = scmp.lt.s32.totalorder %s23, 1
      %s307 = scalar_select %p306, %s23, 1
      %p308 = scmp.lt.s32.totalorder %s305, 35
      %s309 = scalar_select %p308, %s305, 35
      %s310 = smul.addr %s307, 36
      %s311 = sadd.s32 %s309, %s310
      %s312 = smul.addr %s311, 8
      %s313 = scalar_lea.vmem %s8, %s312
      %p314 = scmp.lt.s32.totalorder %s23, 1
      %s315 = scalar_select %p314, %s23, 1
      %s316 = smul.addr %s315, 46
      %s317 = smul.addr %s316, 8
      %s318 = scalar_lea.vmem %s0, %s317
      %s319 = smul.u32 18, %s24
      %p320 = scmp.lt.s32.totalorder %s23, 1
      %s321 = scalar_select %p320, %s23, 1
      %p322 = scmp.lt.s32.totalorder %s319, 35
      %s323 = scalar_select %p322, %s319, 35
      %s324 = smul.addr %s321, 36
      %s325 = sadd.s32 %s323, %s324
      %s326 = smul.addr %s325, 8
      %s327 = scalar_lea.vmem %s8, %s326
      %s328 = smul.u32 18, %s24
      %s330 = smul.u32 %s24, 144
      %s331 = scalar_lea.vmem %s318, %s330
      %v332 = vld [vmem:[%s331] sm:$0xff]
      %v333 = vld [vmem:[%s331 + $0x8] sm:$0xff]
      %v334 = vld [vmem:[%s331 + $0x10] sm:$0xff]
      %v335 = vld [vmem:[%s331 + $0x18] sm:$0xff]
      %v336 = vld [vmem:[%s331 + $0x20] sm:$0xff]
      %v337 = vld [vmem:[%s331 + $0x28] sm:$0xff]
      %v338 = vld [vmem:[%s331 + $0x30] sm:$0xff]
      %v339 = vld [vmem:[%s331 + $0x38] sm:$0xff]
      %v340 = vld [vmem:[%s331 + $0x40] sm:$0xff]
      %v341 = vld [vmem:[%s331 + $0x48] sm:$0xff]
      %v342 = vld [vmem:[%s331 + $0x50] sm:$0xff]
      %v343 = vld [vmem:[%s331 + $0x58] sm:$0xff]
      %v344 = vld [vmem:[%s331 + $0x60] sm:$0xff]
      %v345 = vld [vmem:[%s331 + $0x68] sm:$0xff]
      %v346 = vld [vmem:[%s331 + $0x70] sm:$0xff]
      %v347 = vld [vmem:[%s331 + $0x78] sm:$0xff]
      %v348 = vld [vmem:[%s331 + $0x80] sm:$0xff]
      %v349 = vld [vmem:[%s331 + $0x88] sm:$0xff]
      %v350 = vld [vmem:[%s331 + $0x90] sm:$0xff]
      %v351 = vld [vmem:[%s331 + $0x98] sm:$0xff]
      %v352 = vld [vmem:[%s331 + $0xa0] sm:$0xff]
      %v353 = vld [vmem:[%s331 + $0xa8] sm:$0xff]
      %v354 = vld [vmem:[%s331 + $0xb0] sm:$0xf]
      %v355 = vpack.c.bf16 %v333, %v332
      %v356 = vpack.c.bf16 %v335, %v334
      %v357 = vpack.c.bf16 %v337, %v336
      %v358 = vpack.c.bf16 %v339, %v338
      %v359 = vpack.c.bf16 %v341, %v340
      %v360 = vpack.c.bf16 %v343, %v342
      %v361 = vpack.c.bf16 %v345, %v344
      %v362 = vpack.c.bf16 %v347, %v346
      %v363 = vpack.c.bf16 %v349, %v348
      %v364 = vpack.c.bf16 %v351, %v350
      %v365 = vpack.c.bf16 %v353, %v352
      %v366 = vpack.c.bf16 %v354, %v354
      %v379 = vunpack.c.l.b16 %v355
      %v380 = vunpack.c.h.b16 %v355
      %v381 = vunpack.c.l.b16 %v356
      %v382 = vunpack.c.h.b16 %v356
      %v383 = vunpack.c.l.b16 %v357
      %v384 = vunpack.c.h.b16 %v357
      %v385 = vunpack.c.l.b16 %v358
      %v386 = vunpack.c.h.b16 %v358
      %v387 = vunpack.c.l.b16 %v359
      %v388 = vunpack.c.h.b16 %v359
      %v389 = vunpack.c.l.b16 %v360
      %v390 = vunpack.c.h.b16 %v360
      %v391 = vunpack.c.l.b16 %v361
      %v392 = vunpack.c.h.b16 %v361
      %v393 = vunpack.c.l.b16 %v362
      %v394 = vunpack.c.h.b16 %v362
      %v395 = vunpack.c.l.b16 %v363
      %v396 = vunpack.c.h.b16 %v363
      %v397 = vunpack.c.l.b16 %v364
      %v398 = vunpack.c.h.b16 %v364
      %v399 = vunpack.c.l.b16 %v365
      %v400 = vunpack.c.h.b16 %v365
      %v401 = vunpack.c.l.b16 %v366
      %v402 = vpack.c.b16 %v379, %v379
      %v403 = vpack.c.b16 %v380, %v380
      %v404 = vpack.c.b16 %v381, %v381
      %v405 = vpack.c.b16 %v382, %v382
      %v406 = vpack.c.b16 %v383, %v383
      %v407 = vpack.c.b16 %v384, %v384
      %v408 = vpack.c.b16 %v385, %v385
      %v409 = vpack.c.b16 %v386, %v386
      %v410 = vpack.c.b16 %v387, %v387
      %v411 = vpack.c.b16 %v388, %v388
      %v412 = vpack.c.b16 %v389, %v389
      %v413 = vpack.c.b16 %v390, %v390
      %v414 = vpack.c.b16 %v391, %v391
      %v415 = vpack.c.b16 %v392, %v392
      %v416 = vpack.c.b16 %v393, %v393
      %v417 = vpack.c.b16 %v394, %v394
      %v418 = vpack.c.b16 %v395, %v395
      %v419 = vpack.c.b16 %v396, %v396
      %v420 = vpack.c.b16 %v397, %v397
      %v421 = vpack.c.b16 %v398, %v398
      %v422 = vpack.c.b16 %v399, %v399
      %v423 = vpack.c.b16 %v400, %v400
      %v424 = vpack.c.b16 %v401, %v401
      %vm448 = vcmask 27648
      %449 = vst.msk [vmem:[#allocation2] sm:$0xf] %vm448, %v402
      %450 = vst.msk [vmem:[#allocation2 + $0x4] sm:$0xf] %vm448, %v403
      %451 = vst.msk [vmem:[#allocation2 + $0x8] sm:$0xf] %vm448, %v404
      %452 = vst.msk [vmem:[#allocation2 + $0xc] sm:$0xf] %vm448, %v405
      %453 = vst.msk [vmem:[#allocation2 + $0x10] sm:$0xf] %vm448, %v406
      %454 = vst.msk [vmem:[#allocation2 + $0x14] sm:$0xf] %vm448, %v407
      %455 = vst.msk [vmem:[#allocation2 + $0x18] sm:$0xf] %vm448, %v408
      %456 = vst.msk [vmem:[#allocation2 + $0x1c] sm:$0xf] %vm448, %v409
      %457 = vst.msk [vmem:[#allocation2 + $0x20] sm:$0xf] %vm448, %v410
      %458 = vst.msk [vmem:[#allocation2 + $0x24] sm:$0xf] %vm448, %v411
      %459 = vst.msk [vmem:[#allocation2 + $0x28] sm:$0xf] %vm448, %v412
      %460 = vst.msk [vmem:[#allocation2 + $0x2c] sm:$0xf] %vm448, %v413
      %461 = vst.msk [vmem:[#allocation2 + $0x30] sm:$0xf] %vm448, %v414
      %462 = vst.msk [vmem:[#allocation2 + $0x34] sm:$0xf] %vm448, %v415
      %463 = vst.msk [vmem:[#allocation2 + $0x38] sm:$0xf] %vm448, %v416
      %464 = vst.msk [vmem:[#allocation2 + $0x3c] sm:$0xf] %vm448, %v417
      %465 = vst.msk [vmem:[#allocation2 + $0x40] sm:$0xf] %vm448, %v418
      %466 = vst.msk [vmem:[#allocation2 + $0x44] sm:$0xf] %vm448, %v419
      %467 = vst.msk [vmem:[#allocation2 + $0x48] sm:$0xf] %vm448, %v420
      %468 = vst.msk [vmem:[#allocation2 + $0x4c] sm:$0xf] %vm448, %v421
      %469 = vst.msk [vmem:[#allocation2 + $0x50] sm:$0xf] %vm448, %v422
      %470 = vst.msk [vmem:[#allocation2 + $0x54] sm:$0xf] %vm448, %v423
      %vm471 = vcmask 25600
      %472 = vst.msk [vmem:[#allocation2 + $0x58] sm:$0x3] %vm471, %v424
      %s473 = sadd.s32 %s330, 1
      %s474 = scalar_lea.vmem %s318, %s473
      %v475 = vld [vmem:[%s474] sm:$0xff]
      %v476 = vld [vmem:[%s474 + $0x8] sm:$0xff]
      %v477 = vld [vmem:[%s474 + $0x10] sm:$0xff]
      %v478 = vld [vmem:[%s474 + $0x18] sm:$0xff]
      %v479 = vld [vmem:[%s474 + $0x20] sm:$0xff]
      %v480 = vld [vmem:[%s474 + $0x28] sm:$0xff]
      %v481 = vld [vmem:[%s474 + $0x30] sm:$0xff]
      %v482 = vld [vmem:[%s474 + $0x38] sm:$0xff]
      %v483 = vld [vmem:[%s474 + $0x40] sm:$0xff]
      %v484 = vld [vmem:[%s474 + $0x48] sm:$0xff]
      %v485 = vld [vmem:[%s474 + $0x50] sm:$0xff]
      %v486 = vld [vmem:[%s474 + $0x58] sm:$0xff]
      %v487 = vld [vmem:[%s474 + $0x60] sm:$0xff]
      %v488 = vld [vmem:[%s474 + $0x68] sm:$0xff]
      %v489 = vld [vmem:[%s474 + $0x70] sm:$0xff]
      %v490 = vld [vmem:[%s474 + $0x78] sm:$0xff]
      %v491 = vld [vmem:[%s474 + $0x80] sm:$0xff]
      %v492 = vld [vmem:[%s474 + $0x88] sm:$0xff]
      %v493 = vld [vmem:[%s474 + $0x90] sm:$0xff]
      %v494 = vld [vmem:[%s474 + $0x98] sm:$0xff]
      %v495 = vld [vmem:[%s474 + $0xa0] sm:$0xff]
      %v496 = vld [vmem:[%s474 + $0xa8] sm:$0xff]
      %v497 = vld [vmem:[%s474 + $0xb0] sm:$0xf]
      %v498 = vpack.c.bf16 %v476, %v475
      %v499 = vpack.c.bf16 %v478, %v477
      %v500 = vpack.c.bf16 %v480, %v479
      %v501 = vpack.c.bf16 %v482, %v481
      %v502 = vpack.c.bf16 %v484, %v483
      %v503 = vpack.c.bf16 %v486, %v485
      %v504 = vpack.c.bf16 %v488, %v487
      %v505 = vpack.c.bf16 %v490, %v489
      %v506 = vpack.c.bf16 %v492, %v491
      %v507 = vpack.c.bf16 %v494, %v493
      %v508 = vpack.c.bf16 %v496, %v495
      %v509 = vpack.c.bf16 %v497, %v497
      %v522 = vunpack.c.l.b16 %v498
      %v523 = vunpack.c.h.b16 %v498
      %v524 = vunpack.c.l.b16 %v499
      %v525 = vunpack.c.h.b16 %v499
      %v526 = vunpack.c.l.b16 %v500
      %v527 = vunpack.c.h.b16 %v500
      %v528 = vunpack.c.l.b16 %v501
      %v529 = vunpack.c.h.b16 %v501
      %v530 = vunpack.c.l.b16 %v502
      %v531 = vunpack.c.h.b16 %v502
      %v532 = vunpack.c.l.b16 %v503
      %v533 = vunpack.c.h.b16 %v503
      %v534 = vunpack.c.l.b16 %v504
      %v535 = vunpack.c.h.b16 %v504
      %v536 = vunpack.c.l.b16 %v505
      %v537 = vunpack.c.h.b16 %v505
      %v538 = vunpack.c.l.b16 %v506
      %v539 = vunpack.c.h.b16 %v506
      %v540 = vunpack.c.l.b16 %v507
      %v541 = vunpack.c.h.b16 %v507
      %v542 = vunpack.c.l.b16 %v508
      %v543 = vunpack.c.h.b16 %v508
      %v544 = vunpack.c.l.b16 %v509
      %v545 = vpack.c.b16 %v522, %v522
      %v546 = vpack.c.b16 %v523, %v523
      %v547 = vpack.c.b16 %v524, %v524
      %v548 = vpack.c.b16 %v525, %v525
      %v549 = vpack.c.b16 %v526, %v526
      %v550 = vpack.c.b16 %v527, %v527
      %v551 = vpack.c.b16 %v528, %v528
      %v552 = vpack.c.b16 %v529, %v529
      %v553 = vpack.c.b16 %v530, %v530
      %v554 = vpack.c.b16 %v531, %v531
      %v555 = vpack.c.b16 %v532, %v532
      %v556 = vpack.c.b16 %v533, %v533
      %v557 = vpack.c.b16 %v534, %v534
      %v558 = vpack.c.b16 %v535, %v535
      %v559 = vpack.c.b16 %v536, %v536
      %v560 = vpack.c.b16 %v537, %v537
      %v561 = vpack.c.b16 %v538, %v538
      %v562 = vpack.c.b16 %v539, %v539
      %v563 = vpack.c.b16 %v540, %v540
      %v564 = vpack.c.b16 %v541, %v541
      %v565 = vpack.c.b16 %v542, %v542
      %v566 = vpack.c.b16 %v543, %v543
      %v567 = vpack.c.b16 %v544, %v544
      %568 = vrot.lane.b32.xlu0 %v545, 4
      %v569 = vpop.permute.xlu0 %568
      %570 = vrot.lane.b32.xlu0 %v546, 4
      %v571 = vpop.permute.xlu0 %570
      %572 = vrot.lane.b32.xlu0 %v547, 4
      %v573 = vpop.permute.xlu0 %572
      %574 = vrot.lane.b32.xlu0 %v548, 4
      %v575 = vpop.permute.xlu0 %574
      %576 = vrot.lane.b32.xlu0 %v549, 4
      %v577 = vpop.permute.xlu0 %576
      %578 = vrot.lane.b32.xlu0 %v550, 4
      %v579 = vpop.permute.xlu0 %578
      %580 = vrot.lane.b32.xlu0 %v551, 4
      %v581 = vpop.permute.xlu0 %580
      %582 = vrot.lane.b32.xlu0 %v552, 4
      %v583 = vpop.permute.xlu0 %582
      %584 = vrot.lane.b32.xlu0 %v553, 4
      %v585 = vpop.permute.xlu0 %584
      %586 = vrot.lane.b32.xlu0 %v554, 4
      %v587 = vpop.permute.xlu0 %586
      %588 = vrot.lane.b32.xlu0 %v555, 4
      %v589 = vpop.permute.xlu0 %588
      %590 = vrot.lane.b32.xlu0 %v556, 4
      %v591 = vpop.permute.xlu0 %590
      %592 = vrot.lane.b32.xlu0 %v557, 4
      %v593 = vpop.permute.xlu0 %592
      %594 = vrot.lane.b32.xlu0 %v558, 4
      %v595 = vpop.permute.xlu0 %594
      %596 = vrot.lane.b32.xlu0 %v559, 4
      %v597 = vpop.permute.xlu0 %596
      %598 = vrot.lane.b32.xlu0 %v560, 4
      %v599 = vpop.permute.xlu0 %598
      %600 = vrot.lane.b32.xlu0 %v561, 4
      %v601 = vpop.permute.xlu0 %600
      %602 = vrot.lane.b32.xlu0 %v562, 4
      %v603 = vpop.permute.xlu0 %602
      %604 = vrot.lane.b32.xlu0 %v563, 4
      %v605 = vpop.permute.xlu0 %604
      %606 = vrot.lane.b32.xlu0 %v564, 4
      %v607 = vpop.permute.xlu0 %606
      %608 = vrot.lane.b32.xlu0 %v565, 4
      %v609 = vpop.permute.xlu0 %608
      %610 = vrot.lane.b32.xlu0 %v566, 4
      %v611 = vpop.permute.xlu0 %610
      %612 = vrot.lane.b32.xlu0 %v567, 4
      %v613 = vpop.permute.xlu0 %612
      %vm637 = vcmask 60448
      %638 = vst.msk [vmem:[#allocation2] sm:$0xf] %vm637, %v569
      %639 = vst.msk [vmem:[#allocation2 + $0x4] sm:$0xf] %vm637, %v571
      %640 = vst.msk [vmem:[#allocation2 + $0x8] sm:$0xf] %vm637, %v573
      %641 = vst.msk [vmem:[#allocation2 + $0xc] sm:$0xf] %vm637, %v575
      %642 = vst.msk [vmem:[#allocation2 + $0x10] sm:$0xf] %vm637, %v577
      %643 = vst.msk [vmem:[#allocation2 + $0x14] sm:$0xf] %vm637, %v579
      %644 = vst.msk [vmem:[#allocation2 + $0x18] sm:$0xf] %vm637, %v581
      %645 = vst.msk [vmem:[#allocation2 + $0x1c] sm:$0xf] %vm637, %v583
      %646 = vst.msk [vmem:[#allocation2 + $0x20] sm:$0xf] %vm637, %v585
      %647 = vst.msk [vmem:[#allocation2 + $0x24] sm:$0xf] %vm637, %v587
      %648 = vst.msk [vmem:[#allocation2 + $0x28] sm:$0xf] %vm637, %v589
      %649 = vst.msk [vmem:[#allocation2 + $0x2c] sm:$0xf] %vm637, %v591
      %650 = vst.msk [vmem:[#allocation2 + $0x30] sm:$0xf] %vm637, %v593
      %651 = vst.msk [vmem:[#allocation2 + $0x34] sm:$0xf] %vm637, %v595
      %652 = vst.msk [vmem:[#allocation2 + $0x38] sm:$0xf] %vm637, %v597
      %653 = vst.msk [vmem:[#allocation2 + $0x3c] sm:$0xf] %vm637, %v599
      %654 = vst.msk [vmem:[#allocation2 + $0x40] sm:$0xf] %vm637, %v601
      %655 = vst.msk [vmem:[#allocation2 + $0x44] sm:$0xf] %vm637, %v603
      %656 = vst.msk [vmem:[#allocation2 + $0x48] sm:$0xf] %vm637, %v605
      %657 = vst.msk [vmem:[#allocation2 + $0x4c] sm:$0xf] %vm637, %v607
      %658 = vst.msk [vmem:[#allocation2 + $0x50] sm:$0xf] %vm637, %v609
      %659 = vst.msk [vmem:[#allocation2 + $0x54] sm:$0xf] %vm637, %v611
      %vm660 = vcmask 58400
      %661 = vst.msk [vmem:[#allocation2 + $0x58] sm:$0x3] %vm660, %v613
      %s662 = sadd.s32 %s330, 2
      %s663 = scalar_lea.vmem %s318, %s662
      %v664 = vld [vmem:[%s663] sm:$0xff]
      %v665 = vld [vmem:[%s663 + $0x8] sm:$0xff]
      %v666 = vld [vmem:[%s663 + $0x10] sm:$0xff]
      %v667 = vld [vmem:[%s663 + $0x18] sm:$0xff]
      %v668 = vld [vmem:[%s663 + $0x20] sm:$0xff]
      %v669 = vld [vmem:[%s663 + $0x28] sm:$0xff]
      %v670 = vld [vmem:[%s663 + $0x30] sm:$0xff]
      %v671 = vld [vmem:[%s663 + $0x38] sm:$0xff]
      %v672 = vld [vmem:[%s663 + $0x40] sm:$0xff]
      %v673 = vld [vmem:[%s663 + $0x48] sm:$0xff]
      %v674 = vld [vmem:[%s663 + $0x50] sm:$0xff]
      %v675 = vld [vmem:[%s663 + $0x58] sm:$0xff]
      %v676 = vld [vmem:[%s663 + $0x60] sm:$0xff]
      %v677 = vld [vmem:[%s663 + $0x68] sm:$0xff]
      %v678 = vld [vmem:[%s663 + $0x70] sm:$0xff]
      %v679 = vld [vmem:[%s663 + $0x78] sm:$0xff]
      %v680 = vld [vmem:[%s663 + $0x80] sm:$0xff]
      %v681 = vld [vmem:[%s663 + $0x88] sm:$0xff]
      %v682 = vld [vmem:[%s663 + $0x90] sm:$0xff]
      %v683 = vld [vmem:[%s663 + $0x98] sm:$0xff]
      %v684 = vld [vmem:[%s663 + $0xa0] sm:$0xff]
      %v685 = vld [vmem:[%s663 + $0xa8] sm:$0xff]
      %v686 = vld [vmem:[%s663 + $0xb0] sm:$0xf]
      %v687 = vpack.c.bf16 %v665, %v664
      %v688 = vpack.c.bf16 %v667, %v666
      %v689 = vpack.c.bf16 %v669, %v668
      %v690 = vpack.c.bf16 %v671, %v670
      %v691 = vpack.c.bf16 %v673, %v672
      %v692 = vpack.c.bf16 %v675, %v674
      %v693 = vpack.c.bf16 %v677, %v676
      %v694 = vpack.c.bf16 %v679, %v678
      %v695 = vpack.c.bf16 %v681, %v680
      %v696 = vpack.c.bf16 %v683, %v682
      %v697 = vpack.c.bf16 %v685, %v684
      %v698 = vpack.c.bf16 %v686, %v686
      %v711 = vunpack.c.l.b16 %v687
      %v712 = vunpack.c.h.b16 %v687
      %v713 = vunpack.c.l.b16 %v688
      %v714 = vunpack.c.h.b16 %v688
      %v715 = vunpack.c.l.b16 %v689
      %v716 = vunpack.c.h.b16 %v689
      %v717 = vunpack.c.l.b16 %v690
      %v718 = vunpack.c.h.b16 %v690
      %v719 = vunpack.c.l.b16 %v691
      %v720 = vunpack.c.h.b16 %v691
      %v721 = vunpack.c.l.b16 %v692
      %v722 = vunpack.c.h.b16 %v692
      %v723 = vunpack.c.l.b16 %v693
      %v724 = vunpack.c.h.b16 %v693
      %v725 = vunpack.c.l.b16 %v694
      %v726 = vunpack.c.h.b16 %v694
      %v727 = vunpack.c.l.b16 %v695
      %v728 = vunpack.c.h.b16 %v695
      %v729 = vunpack.c.l.b16 %v696
      %v730 = vunpack.c.h.b16 %v696
      %v731 = vunpack.c.l.b16 %v697
      %v732 = vunpack.c.h.b16 %v697
      %v733 = vunpack.c.l.b16 %v698
      %v734 = vpack.c.b16 %v711, %v711
      %v735 = vpack.c.b16 %v712, %v712
      %v736 = vpack.c.b16 %v713, %v713
      %v737 = vpack.c.b16 %v714, %v714
      %v738 = vpack.c.b16 %v715, %v715
      %v739 = vpack.c.b16 %v716, %v716
      %v740 = vpack.c.b16 %v717, %v717
      %v741 = vpack.c.b16 %v718, %v718
      %v742 = vpack.c.b16 %v719, %v719
      %v743 = vpack.c.b16 %v720, %v720
      %v744 = vpack.c.b16 %v721, %v721
      %v745 = vpack.c.b16 %v722, %v722
      %v746 = vpack.c.b16 %v723, %v723
      %v747 = vpack.c.b16 %v724, %v724
      %v748 = vpack.c.b16 %v725, %v725
      %v749 = vpack.c.b16 %v726, %v726
      %v750 = vpack.c.b16 %v727, %v727
      %v751 = vpack.c.b16 %v728, %v728
      %v752 = vpack.c.b16 %v729, %v729
      %v753 = vpack.c.b16 %v730, %v730
      %v754 = vpack.c.b16 %v731, %v731
      %v755 = vpack.c.b16 %v732, %v732
      %v756 = vpack.c.b16 %v733, %v733
      %757 = vrot.lane.b32.xlu0 %v734, 8
      %v758 = vpop.permute.xlu0 %757
      %759 = vrot.lane.b32.xlu0 %v735, 8
      %v760 = vpop.permute.xlu0 %759
      %761 = vrot.lane.b32.xlu0 %v736, 8
      %v762 = vpop.permute.xlu0 %761
      %763 = vrot.lane.b32.xlu0 %v737, 8
      %v764 = vpop.permute.xlu0 %763
      %765 = vrot.lane.b32.xlu0 %v738, 8
      %v766 = vpop.permute.xlu0 %765
      %767 = vrot.lane.b32.xlu0 %v739, 8
      %v768 = vpop.permute.xlu0 %767
      %769 = vrot.lane.b32.xlu0 %v740, 8
      %v770 = vpop.permute.xlu0 %769
      %771 = vrot.lane.b32.xlu0 %v741, 8
      %v772 = vpop.permute.xlu0 %771
      %773 = vrot.lane.b32.xlu0 %v742, 8
      %v774 = vpop.permute.xlu0 %773
      %775 = vrot.lane.b32.xlu0 %v743, 8
      %v776 = vpop.permute.xlu0 %775
      %777 = vrot.lane.b32.xlu0 %v744, 8
      %v778 = vpop.permute.xlu0 %777
      %779 = vrot.lane.b32.xlu0 %v745, 8
      %v780 = vpop.permute.xlu0 %779
      %781 = vrot.lane.b32.xlu0 %v746, 8
      %v782 = vpop.permute.xlu0 %781
      %783 = vrot.lane.b32.xlu0 %v747, 8
      %v784 = vpop.permute.xlu0 %783
      %785 = vrot.lane.b32.xlu0 %v748, 8
      %v786 = vpop.permute.xlu0 %785
      %787 = vrot.lane.b32.xlu0 %v749, 8
      %v788 = vpop.permute.xlu0 %787
      %789 = vrot.lane.b32.xlu0 %v750, 8
      %v790 = vpop.permute.xlu0 %789
      %791 = vrot.lane.b32.xlu0 %v751, 8
      %v792 = vpop.permute.xlu0 %791
      %793 = vrot.lane.b32.xlu0 %v752, 8
      %v794 = vpop.permute.xlu0 %793
      %795 = vrot.lane.b32.xlu0 %v753, 8
      %v796 = vpop.permute.xlu0 %795
      %797 = vrot.lane.b32.xlu0 %v754, 8
      %v798 = vpop.permute.xlu0 %797
      %799 = vrot.lane.b32.xlu0 %v755, 8
      %v800 = vpop.permute.xlu0 %799
      %801 = vrot.lane.b32.xlu0 %v756, 8
      %v802 = vpop.permute.xlu0 %801
      %vm826 = vcmask 93248
      %827 = vst.msk [vmem:[#allocation2] sm:$0xf] %vm826, %v758
      %828 = vst.msk [vmem:[#allocation2 + $0x4] sm:$0xf] %vm826, %v760
      %829 = vst.msk [vmem:[#allocation2 + $0x8] sm:$0xf] %vm826, %v762
      %830 = vst.msk [vmem:[#allocation2 + $0xc] sm:$0xf] %vm826, %v764
      %831 = vst.msk [vmem:[#allocation2 + $0x10] sm:$0xf] %vm826, %v766
      %832 = vst.msk [vmem:[#allocation2 + $0x14] sm:$0xf] %vm826, %v768
      %833 = vst.msk [vmem:[#allocation2 + $0x18] sm:$0xf] %vm826, %v770
      %834 = vst.msk [vmem:[#allocation2 + $0x1c] sm:$0xf] %vm826, %v772
      %835 = vst.msk [vmem:[#allocation2 + $0x20] sm:$0xf] %vm826, %v774
      %836 = vst.msk [vmem:[#allocation2 + $0x24] sm:$0xf] %vm826, %v776
      %837 = vst.msk [vmem:[#allocation2 + $0x28] sm:$0xf] %vm826, %v778
      %838 = vst.msk [vmem:[#allocation2 + $0x2c] sm:$0xf] %vm826, %v780
      %839 = vst.msk [vmem:[#allocation2 + $0x30] sm:$0xf] %vm826, %v782
      %840 = vst.msk [vmem:[#allocation2 + $0x34] sm:$0xf] %vm826, %v784
      %841 = vst.msk [vmem:[#allocation2 + $0x38] sm:$0xf] %vm826, %v786
      %842 = vst.msk [vmem:[#allocation2 + $0x3c] sm:$0xf] %vm826, %v788
      %843 = vst.msk [vmem:[#allocation2 + $0x40] sm:$0xf] %vm826, %v790
      %844 = vst.msk [vmem:[#allocation2 + $0x44] sm:$0xf] %vm826, %v792
      %845 = vst.msk [vmem:[#allocation2 + $0x48] sm:$0xf] %vm826, %v794
      %846 = vst.msk [vmem:[#allocation2 + $0x4c] sm:$0xf] %vm826, %v796
      %847 = vst.msk [vmem:[#allocation2 + $0x50] sm:$0xf] %vm826, %v798
      %848 = vst.msk [vmem:[#allocation2 + $0x54] sm:$0xf] %vm826, %v800
      %vm849 = vcmask 91200
      %850 = vst.msk [vmem:[#allocation2 + $0x58] sm:$0x3] %vm849, %v802
      %s851 = sadd.s32 %s330, 18
      %s852 = scalar_lea.vmem %s318, %s851
      %v853 = vld [vmem:[%s852] sm:$0xff]
      %v854 = vld [vmem:[%s852 + $0x8] sm:$0xff]
      %v855 = vld [vmem:[%s852 + $0x10] sm:$0xff]
      %v856 = vld [vmem:[%s852 + $0x18] sm:$0xff]
      %v857 = vld [vmem:[%s852 + $0x20] sm:$0xff]
      %v858 = vld [vmem:[%s852 + $0x28] sm:$0xff]
      %v859 = vld [vmem:[%s852 + $0x30] sm:$0xff]
      %v860 = vld [vmem:[%s852 + $0x38] sm:$0xff]
      %v861 = vld [vmem:[%s852 + $0x40] sm:$0xff]
      %v862 = vld [vmem:[%s852 + $0x48] sm:$0xff]
      %v863 = vld [vmem:[%s852 + $0x50] sm:$0xff]
      %v864 = vld [vmem:[%s852 + $0x58] sm:$0xff]
      %v865 = vld [vmem:[%s852 + $0x60] sm:$0xff]
      %v866 = vld [vmem:[%s852 + $0x68] sm:$0xff]
      %v867 = vld [vmem:[%s852 + $0x70] sm:$0xff]
      %v868 = vld [vmem:[%s852 + $0x78] sm:$0xff]
      %v869 = vld [vmem:[%s852 + $0x80] sm:$0xff]
      %v870 = vld [vmem:[%s852 + $0x88] sm:$0xff]
      %v871 = vld [vmem:[%s852 + $0x90] sm:$0xff]
      %v872 = vld [vmem:[%s852 + $0x98] sm:$0xff]
      %v873 = vld [vmem:[%s852 + $0xa0] sm:$0xff]
      %v874 = vld [vmem:[%s852 + $0xa8] sm:$0xff]
      %v875 = vld [vmem:[%s852 + $0xb0] sm:$0xf]
      %v876 = vpack.c.bf16 %v854, %v853
      %v877 = vpack.c.bf16 %v856, %v855
      %v878 = vpack.c.bf16 %v858, %v857
      %v879 = vpack.c.bf16 %v860, %v859
      %v880 = vpack.c.bf16 %v862, %v861
      %v881 = vpack.c.bf16 %v864, %v863
      %v882 = vpack.c.bf16 %v866, %v865
      %v883 = vpack.c.bf16 %v868, %v867
      %v884 = vpack.c.bf16 %v870, %v869
      %v885 = vpack.c.bf16 %v872, %v871
      %v886 = vpack.c.bf16 %v874, %v873
      %v887 = vpack.c.bf16 %v875, %v875
      %v900 = vunpack.c.l.b16 %v876
      %v901 = vunpack.c.h.b16 %v876
      %v902 = vunpack.c.l.b16 %v877
      %v903 = vunpack.c.h.b16 %v877
      %v904 = vunpack.c.l.b16 %v878
      %v905 = vunpack.c.h.b16 %v878
      %v906 = vunpack.c.l.b16 %v879
      %v907 = vunpack.c.h.b16 %v879
      %v908 = vunpack.c.l.b16 %v880
      %v909 = vunpack.c.h.b16 %v880
      %v910 = vunpack.c.l.b16 %v881
      %v911 = vunpack.c.h.b16 %v881
      %v912 = vunpack.c.l.b16 %v882
      %v913 = vunpack.c.h.b16 %v882
      %v914 = vunpack.c.l.b16 %v883
      %v915 = vunpack.c.h.b16 %v883
      %v916 = vunpack.c.l.b16 %v884
      %v917 = vunpack.c.h.b16 %v884
      %v918 = vunpack.c.l.b16 %v885
      %v919 = vunpack.c.h.b16 %v885
      %v920 = vunpack.c.l.b16 %v886
      %v921 = vunpack.c.h.b16 %v886
      %v922 = vunpack.c.l.b16 %v887
      %v923 = vpack.c.b16 %v900, %v900
      %v924 = vpack.c.b16 %v901, %v901
      %v925 = vpack.c.b16 %v902, %v902
      %v926 = vpack.c.b16 %v903, %v903
      %v927 = vpack.c.b16 %v904, %v904
      %v928 = vpack.c.b16 %v905, %v905
      %v929 = vpack.c.b16 %v906, %v906
      %v930 = vpack.c.b16 %v907, %v907
      %v931 = vpack.c.b16 %v908, %v908
      %v932 = vpack.c.b16 %v909, %v909
      %v933 = vpack.c.b16 %v910, %v910
      %v934 = vpack.c.b16 %v911, %v911
      %v935 = vpack.c.b16 %v912, %v912
      %v936 = vpack.c.b16 %v913, %v913
      %v937 = vpack.c.b16 %v914, %v914
      %v938 = vpack.c.b16 %v915, %v915
      %v939 = vpack.c.b16 %v916, %v916
      %v940 = vpack.c.b16 %v917, %v917
      %v941 = vpack.c.b16 %v918, %v918
      %v942 = vpack.c.b16 %v919, %v919
      %v943 = vpack.c.b16 %v920, %v920
      %v944 = vpack.c.b16 %v921, %v921
      %v945 = vpack.c.b16 %v922, %v922
      %946 = vrot.lane.b32.xlu0 %v923, 12
      %v947 = vpop.permute.xlu0 %946
      %948 = vrot.lane.b32.xlu0 %v924, 12
      %v949 = vpop.permute.xlu0 %948
      %950 = vrot.lane.b32.xlu0 %v925, 12
      %v951 = vpop.permute.xlu0 %950
      %952 = vrot.lane.b32.xlu0 %v926, 12
      %v953 = vpop.permute.xlu0 %952
      %954 = vrot.lane.b32.xlu0 %v927, 12
      %v955 = vpop.permute.xlu0 %954
      %956 = vrot.lane.b32.xlu0 %v928, 12
      %v957 = vpop.permute.xlu0 %956
      %958 = vrot.lane.b32.xlu0 %v929, 12
      %v959 = vpop.permute.xlu0 %958
      %960 = vrot.lane.b32.xlu0 %v930, 12
      %v961 = vpop.permute.xlu0 %960
      %962 = vrot.lane.b32.xlu0 %v931, 12
      %v963 = vpop.permute.xlu0 %962
      %964 = vrot.lane.b32.xlu0 %v932, 12
      %v965 = vpop.permute.xlu0 %964
      %966 = vrot.lane.b32.xlu0 %v933, 12
      %v967 = vpop.permute.xlu0 %966
      %968 = vrot.lane.b32.xlu0 %v934, 12
      %v969 = vpop.permute.xlu0 %968
      %970 = vrot.lane.b32.xlu0 %v935, 12
      %v971 = vpop.permute.xlu0 %970
      %972 = vrot.lane.b32.xlu0 %v936, 12
      %v973 = vpop.permute.xlu0 %972
      %974 = vrot.lane.b32.xlu0 %v937, 12
      %v975 = vpop.permute.xlu0 %974
      %976 = vrot.lane.b32.xlu0 %v938, 12
      %v977 = vpop.permute.xlu0 %976
      %978 = vrot.lane.b32.xlu0 %v939, 12
      %v979 = vpop.permute.xlu0 %978
      %980 = vrot.lane.b32.xlu0 %v940, 12
      %v981 = vpop.permute.xlu0 %980
      %982 = vrot.lane.b32.xlu0 %v941, 12
      %v983 = vpop.permute.xlu0 %982
      %984 = vrot.lane.b32.xlu0 %v942, 12
      %v985 = vpop.permute.xlu0 %984
      %986 = vrot.lane.b32.xlu0 %v943, 12
      %v987 = vpop.permute.xlu0 %986
      %988 = vrot.lane.b32.xlu0 %v944, 12
      %v989 = vpop.permute.xlu0 %988
      %990 = vrot.lane.b32.xlu0 %v945, 12
      %v991 = vpop.permute.xlu0 %990
      %vm1015 = vcmask 126048
      %1016 = vst.msk [vmem:[#allocation2] sm:$0xf] %vm1015, %v947
      %1017 = vst.msk [vmem:[#allocation2 + $0x4] sm:$0xf] %vm1015, %v949
      %1018 = vst.msk [vmem:[#allocation2 + $0x8] sm:$0xf] %vm1015, %v951
      %1019 = vst.msk [vmem:[#allocation2 + $0xc] sm:$0xf] %vm1015, %v953
      %1020 = vst.msk [vmem:[#allocation2 + $0x10] sm:$0xf] %vm1015, %v955
      %1021 = vst.msk [vmem:[#allocation2 + $0x14] sm:$0xf] %vm1015, %v957
      %1022 = vst.msk [vmem:[#allocation2 + $0x18] sm:$0xf] %vm1015, %v959
      %1023 = vst.msk [vmem:[#allocation2 + $0x1c] sm:$0xf] %vm1015, %v961
      %1024 = vst.msk [vmem:[#allocation2 + $0x20] sm:$0xf] %vm1015, %v963
      %1025 = vst.msk [vmem:[#allocation2 + $0x24] sm:$0xf] %vm1015, %v965
      %1026 = vst.msk [vmem:[#allocation2 + $0x28] sm:$0xf] %vm1015, %v967
      %1027 = vst.msk [vmem:[#allocation2 + $0x2c] sm:$0xf] %vm1015, %v969
      %1028 = vst.msk [vmem:[#allocation2 + $0x30] sm:$0xf] %vm1015, %v971
      %1029 = vst.msk [vmem:[#allocation2 + $0x34] sm:$0xf] %vm1015, %v973
      %1030 = vst.msk [vmem:[#allocation2 + $0x38] sm:$0xf] %vm1015, %v975
      %1031 = vst.msk [vmem:[#allocation2 + $0x3c] sm:$0xf] %vm1015, %v977
      %1032 = vst.msk [vmem:[#allocation2 + $0x40] sm:$0xf] %vm1015, %v979
      %1033 = vst.msk [vmem:[#allocation2 + $0x44] sm:$0xf] %vm1015, %v981
      %1034 = vst.msk [vmem:[#allocation2 + $0x48] sm:$0xf] %vm1015, %v983
      %1035 = vst.msk [vmem:[#allocation2 + $0x4c] sm:$0xf] %vm1015, %v985
      %1036 = vst.msk [vmem:[#allocation2 + $0x50] sm:$0xf] %vm1015, %v987
      %1037 = vst.msk [vmem:[#allocation2 + $0x54] sm:$0xf] %vm1015, %v989
      %vm1038 = vcmask 124000
      %1039 = vst.msk [vmem:[#allocation2 + $0x58] sm:$0x3] %vm1038, %v991
      %s1040 = sadd.s32 %s330, 19
      %s1041 = scalar_lea.vmem %s318, %s1040
      %v1042 = vld [vmem:[%s1041] sm:$0xff]
      %v1043 = vld [vmem:[%s1041 + $0x8] sm:$0xff]
      %v1044 = vld [vmem:[%s1041 + $0x10] sm:$0xff]
      %v1045 = vld [vmem:[%s1041 + $0x18] sm:$0xff]
      %v1046 = vld [vmem:[%s1041 + $0x20] sm:$0xff]
      %v1047 = vld [vmem:[%s1041 + $0x28] sm:$0xff]
      %v1048 = vld [vmem:[%s1041 + $0x30] sm:$0xff]
      %v1049 = vld [vmem:[%s1041 + $0x38] sm:$0xff]
      %v1050 = vld [vmem:[%s1041 + $0x40] sm:$0xff]
      %v1051 = vld [vmem:[%s1041 + $0x48] sm:$0xff]
      %v1052 = vld [vmem:[%s1041 + $0x50] sm:$0xff]
      %v1053 = vld [vmem:[%s1041 + $0x58] sm:$0xff]
      %v1054 = vld [vmem:[%s1041 + $0x60] sm:$0xff]
      %v1055 = vld [vmem:[%s1041 + $0x68] sm:$0xff]
      %v1056 = vld [vmem:[%s1041 + $0x70] sm:$0xff]
      %v1057 = vld [vmem:[%s1041 + $0x78] sm:$0xff]
      %v1058 = vld [vmem:[%s1041 + $0x80] sm:$0xff]
      %v1059 = vld [vmem:[%s1041 + $0x88] sm:$0xff]
      %v1060 = vld [vmem:[%s1041 + $0x90] sm:$0xff]
      %v1061 = vld [vmem:[%s1041 + $0x98] sm:$0xff]
      %v1062 = vld [vmem:[%s1041 + $0xa0] sm:$0xff]
      %v1063 = vld [vmem:[%s1041 + $0xa8] sm:$0xff]
      %v1064 = vld [vmem:[%s1041 + $0xb0] sm:$0xf]
      %v1065 = vpack.c.bf16 %v1043, %v1042
      %v1066 = vpack.c.bf16 %v1045, %v1044
      %v1067 = vpack.c.bf16 %v1047, %v1046
      %v1068 = vpack.c.bf16 %v1049, %v1048
      %v1069 = vpack.c.bf16 %v1051, %v1050
      %v1070 = vpack.c.bf16 %v1053, %v1052
      %v1071 = vpack.c.bf16 %v1055, %v1054
      %v1072 = vpack.c.bf16 %v1057, %v1056
      %v1073 = vpack.c.bf16 %v1059, %v1058
      %v1074 = vpack.c.bf16 %v1061, %v1060
      %v1075 = vpack.c.bf16 %v1063, %v1062
      %v1076 = vpack.c.bf16 %v1064, %v1064
      %v1089 = vunpack.c.l.b16 %v1065
      %v1090 = vunpack.c.h.b16 %v1065
      %v1091 = vunpack.c.l.b16 %v1066
      %v1092 = vunpack.c.h.b16 %v1066
      %v1093 = vunpack.c.l.b16 %v1067
      %v1094 = vunpack.c.h.b16 %v1067
      %v1095 = vunpack.c.l.b16 %v1068
      %v1096 = vunpack.c.h.b16 %v1068
      %v1097 = vunpack.c.l.b16 %v1069
      %v1098 = vunpack.c.h.b16 %v1069
      %v1099 = vunpack.c.l.b16 %v1070
      %v1100 = vunpack.c.h.b16 %v1070
      %v1101 = vunpack.c.l.b16 %v1071
      %v1102 = vunpack.c.h.b16 %v1071
      %v1103 = vunpack.c.l.b16 %v1072
      %v1104 = vunpack.c.h.b16 %v1072
      %v1105 = vunpack.c.l.b16 %v1073
      %v1106 = vunpack.c.h.b16 %v1073
      %v1107 = vunpack.c.l.b16 %v1074
      %v1108 = vunpack.c.h.b16 %v1074
      %v1109 = vunpack.c.l.b16 %v1075
      %v1110 = vunpack.c.h.b16 %v1075
      %v1111 = vunpack.c.l.b16 %v1076
      %v1112 = vpack.c.b16 %v1089, %v1089
      %v1113 = vpack.c.b16 %v1090, %v1090
      %v1114 = vpack.c.b16 %v1091, %v1091
      %v1115 = vpack.c.b16 %v1092, %v1092
      %v1116 = vpack.c.b16 %v1093, %v1093
      %v1117 = vpack.c.b16 %v1094, %v1094
      %v1118 = vpack.c.b16 %v1095, %v1095
      %v1119 = vpack.c.b16 %v1096, %v1096
      %v1120 = vpack.c.b16 %v1097, %v1097
      %v1121 = vpack.c.b16 %v1098, %v1098
      %v1122 = vpack.c.b16 %v1099, %v1099
      %v1123 = vpack.c.b16 %v1100, %v1100
      %v1124 = vpack.c.b16 %v1101, %v1101
      %v1125 = vpack.c.b16 %v1102, %v1102
      %v1126 = vpack.c.b16 %v1103, %v1103
      %v1127 = vpack.c.b16 %v1104, %v1104
      %v1128 = vpack.c.b16 %v1105, %v1105
      %v1129 = vpack.c.b16 %v1106, %v1106
      %v1130 = vpack.c.b16 %v1107, %v1107
      %v1131 = vpack.c.b16 %v1108, %v1108
      %v1132 = vpack.c.b16 %v1109, %v1109
      %v1133 = vpack.c.b16 %v1110, %v1110
      %v1134 = vpack.c.b16 %v1111, %v1111
      %1135 = vrot.lane.b32.xlu0 %v1112, 16
      %v1136 = vpop.permute.xlu0 %1135
      %1137 = vrot.lane.b32.xlu0 %v1113, 16
      %v1138 = vpop.permute.xlu0 %1137
      %1139 = vrot.lane.b32.xlu0 %v1114, 16
      %v1140 = vpop.permute.xlu0 %1139
      %1141 = vrot.lane.b32.xlu0 %v1115, 16
      %v1142 = vpop.permute.xlu0 %1141
      %1143 = vrot.lane.b32.xlu0 %v1116, 16
      %v1144 = vpop.permute.xlu0 %1143
      %1145 = vrot.lane.b32.xlu0 %v1117, 16
      %v1146 = vpop.permute.xlu0 %1145
      %1147 = vrot.lane.b32.xlu0 %v1118, 16
      %v1148 = vpop.permute.xlu0 %1147
      %1149 = vrot.lane.b32.xlu0 %v1119, 16
      %v1150 = vpop.permute.xlu0 %1149
      %1151 = vrot.lane.b32.xlu0 %v1120, 16
      %v1152 = vpop.permute.xlu0 %1151
      %1153 = vrot.lane.b32.xlu0 %v1121, 16
      %v1154 = vpop.permute.xlu0 %1153
      %1155 = vrot.lane.b32.xlu0 %v1122, 16
      %v1156 = vpop.permute.xlu0 %1155
      %1157 = vrot.lane.b32.xlu0 %v1123, 16
      %v1158 = vpop.permute.xlu0 %1157
      %1159 = vrot.lane.b32.xlu0 %v1124, 16
      %v1160 = vpop.permute.xlu0 %1159
      %1161 = vrot.lane.b32.xlu0 %v1125, 16
      %v1162 = vpop.permute.xlu0 %1161
      %1163 = vrot.lane.b32.xlu0 %v1126, 16
      %v1164 = vpop.permute.xlu0 %1163
      %1165 = vrot.lane.b32.xlu0 %v1127, 16
      %v1166 = vpop.permute.xlu0 %1165
      %1167 = vrot.lane.b32.xlu0 %v1128, 16
      %v1168 = vpop.permute.xlu0 %1167
      %1169 = vrot.lane.b32.xlu0 %v1129, 16
      %v1170 = vpop.permute.xlu0 %1169
      %1171 = vrot.lane.b32.xlu0 %v1130, 16
      %v1172 = vpop.permute.xlu0 %1171
      %1173 = vrot.lane.b32.xlu0 %v1131, 16
      %v1174 = vpop.permute.xlu0 %1173
      %1175 = vrot.lane.b32.xlu0 %v1132, 16
      %v1176 = vpop.permute.xlu0 %1175
      %1177 = vrot.lane.b32.xlu0 %v1133, 16
      %v1178 = vpop.permute.xlu0 %1177
      %1179 = vrot.lane.b32.xlu0 %v1134, 16
      %v1180 = vpop.permute.xlu0 %1179
      %vm1204 = vcmask 158848
      %1205 = vst.msk [vmem:[#allocation2] sm:$0xf] %vm1204, %v1136
      %1206 = vst.msk [vmem:[#allocation2 + $0x4] sm:$0xf] %vm1204, %v1138
      %1207 = vst.msk [vmem:[#allocation2 + $0x8] sm:$0xf] %vm1204, %v1140
      %1208 = vst.msk [vmem:[#allocation2 + $0xc] sm:$0xf] %vm1204, %v1142
      %1209 = vst.msk [vmem:[#allocation2 + $0x10] sm:$0xf] %vm1204, %v1144
      %1210 = vst.msk [vmem:[#allocation2 + $0x14] sm:$0xf] %vm1204, %v1146
      %1211 = vst.msk [vmem:[#allocation2 + $0x18] sm:$0xf] %vm1204, %v1148
      %1212 = vst.msk [vmem:[#allocation2 + $0x1c] sm:$0xf] %vm1204, %v1150
      %1213 = vst.msk [vmem:[#allocation2 + $0x20] sm:$0xf] %vm1204, %v1152
      %1214 = vst.msk [vmem:[#allocation2 + $0x24] sm:$0xf] %vm1204, %v1154
      %1215 = vst.msk [vmem:[#allocation2 + $0x28] sm:$0xf] %vm1204, %v1156
      %1216 = vst.msk [vmem:[#allocation2 + $0x2c] sm:$0xf] %vm1204, %v1158
      %1217 = vst.msk [vmem:[#allocation2 + $0x30] sm:$0xf] %vm1204, %v1160
      %1218 = vst.msk [vmem:[#allocation2 + $0x34] sm:$0xf] %vm1204, %v1162
      %1219 = vst.msk [vmem:[#allocation2 + $0x38] sm:$0xf] %vm1204, %v1164
      %1220 = vst.msk [vmem:[#allocation2 + $0x3c] sm:$0xf] %vm1204, %v1166
      %1221 = vst.msk [vmem:[#allocation2 + $0x40] sm:$0xf] %vm1204, %v1168
      %1222 = vst.msk [vmem:[#allocation2 + $0x44] sm:$0xf] %vm1204, %v1170
      %1223 = vst.msk [vmem:[#allocation2 + $0x48] sm:$0xf] %vm1204, %v1172
      %1224 = vst.msk [vmem:[#allocation2 + $0x4c] sm:$0xf] %vm1204, %v1174
      %1225 = vst.msk [vmem:[#allocation2 + $0x50] sm:$0xf] %vm1204, %v1176
      %1226 = vst.msk [vmem:[#allocation2 + $0x54] sm:$0xf] %vm1204, %v1178
      %vm1227 = vcmask 156800
      %1228 = vst.msk [vmem:[#allocation2 + $0x58] sm:$0x3] %vm1227, %v1180
      %s1229 = sadd.s32 %s330, 20
      %s1230 = scalar_lea.vmem %s318, %s1229
      %v1231 = vld [vmem:[%s1230] sm:$0xff]
      %v1232 = vld [vmem:[%s1230 + $0x8] sm:$0xff]
      %v1233 = vld [vmem:[%s1230 + $0x10] sm:$0xff]
      %v1234 = vld [vmem:[%s1230 + $0x18] sm:$0xff]
      %v1235 = vld [vmem:[%s1230 + $0x20] sm:$0xff]
      %v1236 = vld [vmem:[%s1230 + $0x28] sm:$0xff]
      %v1237 = vld [vmem:[%s1230 + $0x30] sm:$0xff]
      %v1238 = vld [vmem:[%s1230 + $0x38] sm:$0xff]
      %v1239 = vld [vmem:[%s1230 + $0x40] sm:$0xff]
      %v1240 = vld [vmem:[%s1230 + $0x48] sm:$0xff]
      %v1241 = vld [vmem:[%s1230 + $0x50] sm:$0xff]
      %v1242 = vld [vmem:[%s1230 + $0x58] sm:$0xff]
      %v1243 = vld [vmem:[%s1230 + $0x60] sm:$0xff]
      %v1244 = vld [vmem:[%s1230 + $0x68] sm:$0xff]
      %v1245 = vld [vmem:[%s1230 + $0x70] sm:$0xff]
      %v1246 = vld [vmem:[%s1230 + $0x78] sm:$0xff]
      %v1247 = vld [vmem:[%s1230 + $0x80] sm:$0xff]
      %v1248 = vld [vmem:[%s1230 + $0x88] sm:$0xff]
      %v1249 = vld [vmem:[%s1230 + $0x90] sm:$0xff]
      %v1250 = vld [vmem:[%s1230 + $0x98] sm:$0xff]
      %v1251 = vld [vmem:[%s1230 + $0xa0] sm:$0xff]
      %v1252 = vld [vmem:[%s1230 + $0xa8] sm:$0xff]
      %v1253 = vld [vmem:[%s1230 + $0xb0] sm:$0xf]
      %v1254 = vpack.c.bf16 %v1232, %v1231
      %v1255 = vpack.c.bf16 %v1234, %v1233
      %v1256 = vpack.c.bf16 %v1236, %v1235
      %v1257 = vpack.c.bf16 %v1238, %v1237
      %v1258 = vpack.c.bf16 %v1240, %v1239
      %v1259 = vpack.c.bf16 %v1242, %v1241
      %v1260 = vpack.c.bf16 %v1244, %v1243
      %v1261 = vpack.c.bf16 %v1246, %v1245
      %v1262 = vpack.c.bf16 %v1248, %v1247
      %v1263 = vpack.c.bf16 %v1250, %v1249
      %v1264 = vpack.c.bf16 %v1252, %v1251
      %v1265 = vpack.c.bf16 %v1253, %v1253
      %v1278 = vunpack.c.l.b16 %v1254
      %v1279 = vunpack.c.h.b16 %v1254
      %v1280 = vunpack.c.l.b16 %v1255
      %v1281 = vunpack.c.h.b16 %v1255
      %v1282 = vunpack.c.l.b16 %v1256
      %v1283 = vunpack.c.h.b16 %v1256
      %v1284 = vunpack.c.l.b16 %v1257
      %v1285 = vunpack.c.h.b16 %v1257
      %v1286 = vunpack.c.l.b16 %v1258
      %v1287 = vunpack.c.h.b16 %v1258
      %v1288 = vunpack.c.l.b16 %v1259
      %v1289 = vunpack.c.h.b16 %v1259
      %v1290 = vunpack.c.l.b16 %v1260
      %v1291 = vunpack.c.h.b16 %v1260
      %v1292 = vunpack.c.l.b16 %v1261
      %v1293 = vunpack.c.h.b16 %v1261
      %v1294 = vunpack.c.l.b16 %v1262
      %v1295 = vunpack.c.h.b16 %v1262
      %v1296 = vunpack.c.l.b16 %v1263
      %v1297 = vunpack.c.h.b16 %v1263
      %v1298 = vunpack.c.l.b16 %v1264
      %v1299 = vunpack.c.h.b16 %v1264
      %v1300 = vunpack.c.l.b16 %v1265
      %v1301 = vpack.c.b16 %v1278, %v1278
      %v1302 = vpack.c.b16 %v1279, %v1279
      %v1303 = vpack.c.b16 %v1280, %v1280
      %v1304 = vpack.c.b16 %v1281, %v1281
      %v1305 = vpack.c.b16 %v1282, %v1282
      %v1306 = vpack.c.b16 %v1283, %v1283
      %v1307 = vpack.c.b16 %v1284, %v1284
      %v1308 = vpack.c.b16 %v1285, %v1285
      %v1309 = vpack.c.b16 %v1286, %v1286
      %v1310 = vpack.c.b16 %v1287, %v1287
      %v1311 = vpack.c.b16 %v1288, %v1288
      %v1312 = vpack.c.b16 %v1289, %v1289
      %v1313 = vpack.c.b16 %v1290, %v1290
      %v1314 = vpack.c.b16 %v1291, %v1291
      %v1315 = vpack.c.b16 %v1292, %v1292
      %v1316 = vpack.c.b16 %v1293, %v1293
      %v1317 = vpack.c.b16 %v1294, %v1294
      %v1318 = vpack.c.b16 %v1295, %v1295
      %v1319 = vpack.c.b16 %v1296, %v1296
      %v1320 = vpack.c.b16 %v1297, %v1297
      %v1321 = vpack.c.b16 %v1298, %v1298
      %v1322 = vpack.c.b16 %v1299, %v1299
      %v1323 = vpack.c.b16 %v1300, %v1300
      %1324 = vrot.lane.b32.xlu0 %v1301, 20
      %v1325 = vpop.permute.xlu0 %1324
      %1326 = vrot.lane.b32.xlu0 %v1302, 20
      %v1327 = vpop.permute.xlu0 %1326
      %1328 = vrot.lane.b32.xlu0 %v1303, 20
      %v1329 = vpop.permute.xlu0 %1328
      %1330 = vrot.lane.b32.xlu0 %v1304, 20
      %v1331 = vpop.permute.xlu0 %1330
      %1332 = vrot.lane.b32.xlu0 %v1305, 20
      %v1333 = vpop.permute.xlu0 %1332
      %1334 = vrot.lane.b32.xlu0 %v1306, 20
      %v1335 = vpop.permute.xlu0 %1334
      %1336 = vrot.lane.b32.xlu0 %v1307, 20
      %v1337 = vpop.permute.xlu0 %1336
      %1338 = vrot.lane.b32.xlu0 %v1308, 20
      %v1339 = vpop.permute.xlu0 %1338
      %1340 = vrot.lane.b32.xlu0 %v1309, 20
      %v1341 = vpop.permute.xlu0 %1340
      %1342 = vrot.lane.b32.xlu0 %v1310, 20
      %v1343 = vpop.permute.xlu0 %1342
      %1344 = vrot.lane.b32.xlu0 %v1311, 20
      %v1345 = vpop.permute.xlu0 %1344
      %1346 = vrot.lane.b32.xlu0 %v1312, 20
      %v1347 = vpop.permute.xlu0 %1346
      %1348 = vrot.lane.b32.xlu0 %v1313, 20
      %v1349 = vpop.permute.xlu0 %1348
      %1350 = vrot.lane.b32.xlu0 %v1314, 20
      %v1351 = vpop.permute.xlu0 %1350
      %1352 = vrot.lane.b32.xlu0 %v1315, 20
      %v1353 = vpop.permute.xlu0 %1352
      %1354 = vrot.lane.b32.xlu0 %v1316, 20
      %v1355 = vpop.permute.xlu0 %1354
      %1356 = vrot.lane.b32.xlu0 %v1317, 20
      %v1357 = vpop.permute.xlu0 %1356
      %1358 = vrot.lane.b32.xlu0 %v1318, 20
      %v1359 = vpop.permute.xlu0 %1358
      %1360 = vrot.lane.b32.xlu0 %v1319, 20
      %v1361 = vpop.permute.xlu0 %1360
      %1362 = vrot.lane.b32.xlu0 %v1320, 20
      %v1363 = vpop.permute.xlu0 %1362
      %1364 = vrot.lane.b32.xlu0 %v1321, 20
      %v1365 = vpop.permute.xlu0 %1364
      %1366 = vrot.lane.b32.xlu0 %v1322, 20
      %v1367 = vpop.permute.xlu0 %1366
      %1368 = vrot.lane.b32.xlu0 %v1323, 20
      %v1369 = vpop.permute.xlu0 %1368
      %vm1393 = vcmask 191648
      %1394 = vst.msk [vmem:[#allocation2] sm:$0xf] %vm1393, %v1325
      %1395 = vst.msk [vmem:[#allocation2 + $0x4] sm:$0xf] %vm1393, %v1327
      %1396 = vst.msk [vmem:[#allocation2 + $0x8] sm:$0xf] %vm1393, %v1329
      %1397 = vst.msk [vmem:[#allocation2 + $0xc] sm:$0xf] %vm1393, %v1331
      %1398 = vst.msk [vmem:[#allocation2 + $0x10] sm:$0xf] %vm1393, %v1333
      %1399 = vst.msk [vmem:[#allocation2 + $0x14] sm:$0xf] %vm1393, %v1335
      %1400 = vst.msk [vmem:[#allocation2 + $0x18] sm:$0xf] %vm1393, %v1337
      %1401 = vst.msk [vmem:[#allocation2 + $0x1c] sm:$0xf] %vm1393, %v1339
      %1402 = vst.msk [vmem:[#allocation2 + $0x20] sm:$0xf] %vm1393, %v1341
      %1403 = vst.msk [vmem:[#allocation2 + $0x24] sm:$0xf] %vm1393, %v1343
      %1404 = vst.msk [vmem:[#allocation2 + $0x28] sm:$0xf] %vm1393, %v1345
      %1405 = vst.msk [vmem:[#allocation2 + $0x2c] sm:$0xf] %vm1393, %v1347
      %1406 = vst.msk [vmem:[#allocation2 + $0x30] sm:$0xf] %vm1393, %v1349
      %1407 = vst.msk [vmem:[#allocation2 + $0x34] sm:$0xf] %vm1393, %v1351
      %1408 = vst.msk [vmem:[#allocation2 + $0x38] sm:$0xf] %vm1393, %v1353
      %1409 = vst.msk [vmem:[#allocation2 + $0x3c] sm:$0xf] %vm1393, %v1355
      %1410 = vst.msk [vmem:[#allocation2 + $0x40] sm:$0xf] %vm1393, %v1357
      %1411 = vst.msk [vmem:[#allocation2 + $0x44] sm:$0xf] %vm1393, %v1359
      %1412 = vst.msk [vmem:[#allocation2 + $0x48] sm:$0xf] %vm1393, %v1361
      %1413 = vst.msk [vmem:[#allocation2 + $0x4c] sm:$0xf] %vm1393, %v1363
      %1414 = vst.msk [vmem:[#allocation2 + $0x50] sm:$0xf] %vm1393, %v1365
      %1415 = vst.msk [vmem:[#allocation2 + $0x54] sm:$0xf] %vm1393, %v1367
      %vm1416 = vcmask 189600
      %1417 = vst.msk [vmem:[#allocation2 + $0x58] sm:$0x3] %vm1416, %v1369
      %s1418 = sadd.s32 %s330, 36
      %s1419 = scalar_lea.vmem %s318, %s1418
      %v1420 = vld [vmem:[%s1419] sm:$0xff]
      %v1421 = vld [vmem:[%s1419 + $0x8] sm:$0xff]
      %v1422 = vld [vmem:[%s1419 + $0x10] sm:$0xff]
      %v1423 = vld [vmem:[%s1419 + $0x18] sm:$0xff]
      %v1424 = vld [vmem:[%s1419 + $0x20] sm:$0xff]
      %v1425 = vld [vmem:[%s1419 + $0x28] sm:$0xff]
      %v1426 = vld [vmem:[%s1419 + $0x30] sm:$0xff]
      %v1427 = vld [vmem:[%s1419 + $0x38] sm:$0xff]
      %v1428 = vld [vmem:[%s1419 + $0x40] sm:$0xff]
      %v1429 = vld [vmem:[%s1419 + $0x48] sm:$0xff]
      %v1430 = vld [vmem:[%s1419 + $0x50] sm:$0xff]
      %v1431 = vld [vmem:[%s1419 + $0x58] sm:$0xff]
      %v1432 = vld [vmem:[%s1419 + $0x60] sm:$0xff]
      %v1433 = vld [vmem:[%s1419 + $0x68] sm:$0xff]
      %v1434 = vld [vmem:[%s1419 + $0x70] sm:$0xff]
      %v1435 = vld [vmem:[%s1419 + $0x78] sm:$0xff]
      %v1436 = vld [vmem:[%s1419 + $0x80] sm:$0xff]
      %v1437 = vld [vmem:[%s1419 + $0x88] sm:$0xff]
      %v1438 = vld [vmem:[%s1419 + $0x90] sm:$0xff]
      %v1439 = vld [vmem:[%s1419 + $0x98] sm:$0xff]
      %v1440 = vld [vmem:[%s1419 + $0xa0] sm:$0xff]
      %v1441 = vld [vmem:[%s1419 + $0xa8] sm:$0xff]
      %v1442 = vld [vmem:[%s1419 + $0xb0] sm:$0xf]
      %v1443 = vpack.c.bf16 %v1421, %v1420
      %v1444 = vpack.c.bf16 %v1423, %v1422
      %v1445 = vpack.c.bf16 %v1425, %v1424
      %v1446 = vpack.c.bf16 %v1427, %v1426
      %v1447 = vpack.c.bf16 %v1429, %v1428
      %v1448 = vpack.c.bf16 %v1431, %v1430
      %v1449 = vpack.c.bf16 %v1433, %v1432
      %v1450 = vpack.c.bf16 %v1435, %v1434
      %v1451 = vpack.c.bf16 %v1437, %v1436
      %v1452 = vpack.c.bf16 %v1439, %v1438
      %v1453 = vpack.c.bf16 %v1441, %v1440
      %v1454 = vpack.c.bf16 %v1442, %v1442
      %v1467 = vunpack.c.l.b16 %v1443
      %v1468 = vunpack.c.h.b16 %v1443
      %v1469 = vunpack.c.l.b16 %v1444
      %v1470 = vunpack.c.h.b16 %v1444
      %v1471 = vunpack.c.l.b16 %v1445
      %v1472 = vunpack.c.h.b16 %v1445
      %v1473 = vunpack.c.l.b16 %v1446
      %v1474 = vunpack.c.h.b16 %v1446
      %v1475 = vunpack.c.l.b16 %v1447
      %v1476 = vunpack.c.h.b16 %v1447
      %v1477 = vunpack.c.l.b16 %v1448
      %v1478 = vunpack.c.h.b16 %v1448
      %v1479 = vunpack.c.l.b16 %v1449
      %v1480 = vunpack.c.h.b16 %v1449
      %v1481 = vunpack.c.l.b16 %v1450
      %v1482 = vunpack.c.h.b16 %v1450
      %v1483 = vunpack.c.l.b16 %v1451
      %v1484 = vunpack.c.h.b16 %v1451
      %v1485 = vunpack.c.l.b16 %v1452
      %v1486 = vunpack.c.h.b16 %v1452
      %v1487 = vunpack.c.l.b16 %v1453
      %v1488 = vunpack.c.h.b16 %v1453
      %v1489 = vunpack.c.l.b16 %v1454
      %v1490 = vpack.c.b16 %v1467, %v1467
      %v1491 = vpack.c.b16 %v1468, %v1468
      %v1492 = vpack.c.b16 %v1469, %v1469
      %v1493 = vpack.c.b16 %v1470, %v1470
      %v1494 = vpack.c.b16 %v1471, %v1471
      %v1495 = vpack.c.b16 %v1472, %v1472
      %v1496 = vpack.c.b16 %v1473, %v1473
      %v1497 = vpack.c.b16 %v1474, %v1474
      %v1498 = vpack.c.b16 %v1475, %v1475
      %v1499 = vpack.c.b16 %v1476, %v1476
      %v1500 = vpack.c.b16 %v1477, %v1477
      %v1501 = vpack.c.b16 %v1478, %v1478
      %v1502 = vpack.c.b16 %v1479, %v1479
      %v1503 = vpack.c.b16 %v1480, %v1480
      %v1504 = vpack.c.b16 %v1481, %v1481
      %v1505 = vpack.c.b16 %v1482, %v1482
      %v1506 = vpack.c.b16 %v1483, %v1483
      %v1507 = vpack.c.b16 %v1484, %v1484
      %v1508 = vpack.c.b16 %v1485, %v1485
      %v1509 = vpack.c.b16 %v1486, %v1486
      %v1510 = vpack.c.b16 %v1487, %v1487
      %v1511 = vpack.c.b16 %v1488, %v1488
      %v1512 = vpack.c.b16 %v1489, %v1489
      %1513 = vrot.lane.b32.xlu0 %v1490, 24
      %v1514 = vpop.permute.xlu0 %1513
      %1515 = vrot.lane.b32.xlu0 %v1491, 24
      %v1516 = vpop.permute.xlu0 %1515
      %1517 = vrot.lane.b32.xlu0 %v1492, 24
      %v1518 = vpop.permute.xlu0 %1517
      %1519 = vrot.lane.b32.xlu0 %v1493, 24
      %v1520 = vpop.permute.xlu0 %1519
      %1521 = vrot.lane.b32.xlu0 %v1494, 24
      %v1522 = vpop.permute.xlu0 %1521
      %1523 = vrot.lane.b32.xlu0 %v1495, 24
      %v1524 = vpop.permute.xlu0 %1523
      %1525 = vrot.lane.b32.xlu0 %v1496, 24
      %v1526 = vpop.permute.xlu0 %1525
      %1527 = vrot.lane.b32.xlu0 %v1497, 24
      %v1528 = vpop.permute.xlu0 %1527
      %1529 = vrot.lane.b32.xlu0 %v1498, 24
      %v1530 = vpop.permute.xlu0 %1529
      %1531 = vrot.lane.b32.xlu0 %v1499, 24
      %v1532 = vpop.permute.xlu0 %1531
      %1533 = vrot.lane.b32.xlu0 %v1500, 24
      %v1534 = vpop.permute.xlu0 %1533
      %1535 = vrot.lane.b32.xlu0 %v1501, 24
      %v1536 = vpop.permute.xlu0 %1535
      %1537 = vrot.lane.b32.xlu0 %v1502, 24
      %v1538 = vpop.permute.xlu0 %1537
      %1539 = vrot.lane.b32.xlu0 %v1503, 24
      %v1540 = vpop.permute.xlu0 %1539
      %1541 = vrot.lane.b32.xlu0 %v1504, 24
      %v1542 = vpop.permute.xlu0 %1541
      %1543 = vrot.lane.b32.xlu0 %v1505, 24
      %v1544 = vpop.permute.xlu0 %1543
      %1545 = vrot.lane.b32.xlu0 %v1506, 24
      %v1546 = vpop.permute.xlu0 %1545
      %1547 = vrot.lane.b32.xlu0 %v1507, 24
      %v1548 = vpop.permute.xlu0 %1547
      %1549 = vrot.lane.b32.xlu0 %v1508, 24
      %v1550 = vpop.permute.xlu0 %1549
      %1551 = vrot.lane.b32.xlu0 %v1509, 24
      %v1552 = vpop.permute.xlu0 %1551
      %1553 = vrot.lane.b32.xlu0 %v1510, 24
      %v1554 = vpop.permute.xlu0 %1553
      %1555 = vrot.lane.b32.xlu0 %v1511, 24
      %v1556 = vpop.permute.xlu0 %1555
      %1557 = vrot.lane.b32.xlu0 %v1512, 24
      %v1558 = vpop.permute.xlu0 %1557
      %vm1582 = vcmask 224448
      %1583 = vst.msk [vmem:[#allocation2] sm:$0xf] %vm1582, %v1514
      %1584 = vst.msk [vmem:[#allocation2 + $0x4] sm:$0xf] %vm1582, %v1516
      %1585 = vst.msk [vmem:[#allocation2 + $0x8] sm:$0xf] %vm1582, %v1518
      %1586 = vst.msk [vmem:[#allocation2 + $0xc] sm:$0xf] %vm1582, %v1520
      %1587 = vst.msk [vmem:[#allocation2 + $0x10] sm:$0xf] %vm1582, %v1522
      %1588 = vst.msk [vmem:[#allocation2 + $0x14] sm:$0xf] %vm1582, %v1524
      %1589 = vst.msk [vmem:[#allocation2 + $0x18] sm:$0xf] %vm1582, %v1526
      %1590 = vst.msk [vmem:[#allocation2 + $0x1c] sm:$0xf] %vm1582, %v1528
      %1591 = vst.msk [vmem:[#allocation2 + $0x20] sm:$0xf] %vm1582, %v1530
      %1592 = vst.msk [vmem:[#allocation2 + $0x24] sm:$0xf] %vm1582, %v1532
      %1593 = vst.msk [vmem:[#allocation2 + $0x28] sm:$0xf] %vm1582, %v1534
      %1594 = vst.msk [vmem:[#allocation2 + $0x2c] sm:$0xf] %vm1582, %v1536
      %1595 = vst.msk [vmem:[#allocation2 + $0x30] sm:$0xf] %vm1582, %v1538
      %1596 = vst.msk [vmem:[#allocation2 + $0x34] sm:$0xf] %vm1582, %v1540
      %1597 = vst.msk [vmem:[#allocation2 + $0x38] sm:$0xf] %vm1582, %v1542
      %1598 = vst.msk [vmem:[#allocation2 + $0x3c] sm:$0xf] %vm1582, %v1544
      %1599 = vst.msk [vmem:[#allocation2 + $0x40] sm:$0xf] %vm1582, %v1546
      %1600 = vst.msk [vmem:[#allocation2 + $0x44] sm:$0xf] %vm1582, %v1548
      %1601 = vst.msk [vmem:[#allocation2 + $0x48] sm:$0xf] %vm1582, %v1550
      %1602 = vst.msk [vmem:[#allocation2 + $0x4c] sm:$0xf] %vm1582, %v1552
      %1603 = vst.msk [vmem:[#allocation2 + $0x50] sm:$0xf] %vm1582, %v1554
      %1604 = vst.msk [vmem:[#allocation2 + $0x54] sm:$0xf] %vm1582, %v1556
      %vm1605 = vcmask 222400
      %1606 = vst.msk [vmem:[#allocation2 + $0x58] sm:$0x3] %vm1605, %v1558
      %s1607 = sadd.s32 %s330, 37
      %s1608 = scalar_lea.vmem %s318, %s1607
      %v1609 = vld [vmem:[%s1608] sm:$0xff]
      %v1610 = vld [vmem:[%s1608 + $0x8] sm:$0xff]
      %v1611 = vld [vmem:[%s1608 + $0x10] sm:$0xff]
      %v1612 = vld [vmem:[%s1608 + $0x18] sm:$0xff]
      %v1613 = vld [vmem:[%s1608 + $0x20] sm:$0xff]
      %v1614 = vld [vmem:[%s1608 + $0x28] sm:$0xff]
      %v1615 = vld [vmem:[%s1608 + $0x30] sm:$0xff]
      %v1616 = vld [vmem:[%s1608 + $0x38] sm:$0xff]
      %v1617 = vld [vmem:[%s1608 + $0x40] sm:$0xff]
      %v1618 = vld [vmem:[%s1608 + $0x48] sm:$0xff]
      %v1619 = vld [vmem:[%s1608 + $0x50] sm:$0xff]
      %v1620 = vld [vmem:[%s1608 + $0x58] sm:$0xff]
      %v1621 = vld [vmem:[%s1608 + $0x60] sm:$0xff]
      %v1622 = vld [vmem:[%s1608 + $0x68] sm:$0xff]
      %v1623 = vld [vmem:[%s1608 + $0x70] sm:$0xff]
      %v1624 = vld [vmem:[%s1608 + $0x78] sm:$0xff]
      %v1625 = vld [vmem:[%s1608 + $0x80] sm:$0xff]
      %v1626 = vld [vmem:[%s1608 + $0x88] sm:$0xff]
      %v1627 = vld [vmem:[%s1608 + $0x90] sm:$0xff]
      %v1628 = vld [vmem:[%s1608 + $0x98] sm:$0xff]
      %v1629 = vld [vmem:[%s1608 + $0xa0] sm:$0xff]
      %v1630 = vld [vmem:[%s1608 + $0xa8] sm:$0xff]
      %v1631 = vld [vmem:[%s1608 + $0xb0] sm:$0xf]
      %v1632 = vpack.c.bf16 %v1610, %v1609
      %v1633 = vpack.c.bf16 %v1612, %v1611
      %v1634 = vpack.c.bf16 %v1614, %v1613
      %v1635 = vpack.c.bf16 %v1616, %v1615
      %v1636 = vpack.c.bf16 %v1618, %v1617
      %v1637 = vpack.c.bf16 %v1620, %v1619
      %v1638 = vpack.c.bf16 %v1622, %v1621
      %v1639 = vpack.c.bf16 %v1624, %v1623
      %v1640 = vpack.c.bf16 %v1626, %v1625
      %v1641 = vpack.c.bf16 %v1628, %v1627
      %v1642 = vpack.c.bf16 %v1630, %v1629
      %v1643 = vpack.c.bf16 %v1631, %v1631
      %v1656 = vunpack.c.l.b16 %v1632
      %v1657 = vunpack.c.h.b16 %v1632
      %v1658 = vunpack.c.l.b16 %v1633
      %v1659 = vunpack.c.h.b16 %v1633
      %v1660 = vunpack.c.l.b16 %v1634
      %v1661 = vunpack.c.h.b16 %v1634
      %v1662 = vunpack.c.l.b16 %v1635
      %v1663 = vunpack.c.h.b16 %v1635
      %v1664 = vunpack.c.l.b16 %v1636
      %v1665 = vunpack.c.h.b16 %v1636
      %v1666 = vunpack.c.l.b16 %v1637
      %v1667 = vunpack.c.h.b16 %v1637
      %v1668 = vunpack.c.l.b16 %v1638
      %v1669 = vunpack.c.h.b16 %v1638
      %v1670 = vunpack.c.l.b16 %v1639
      %v1671 = vunpack.c.h.b16 %v1639
      %v1672 = vunpack.c.l.b16 %v1640
      %v1673 = vunpack.c.h.b16 %v1640
      %v1674 = vunpack.c.l.b16 %v1641
      %v1675 = vunpack.c.h.b16 %v1641
      %v1676 = vunpack.c.l.b16 %v1642
      %v1677 = vunpack.c.h.b16 %v1642
      %v1678 = vunpack.c.l.b16 %v1643
      %v1679 = vpack.c.b16 %v1656, %v1656
      %v1680 = vpack.c.b16 %v1657, %v1657
      %v1681 = vpack.c.b16 %v1658, %v1658
      %v1682 = vpack.c.b16 %v1659, %v1659
      %v1683 = vpack.c.b16 %v1660, %v1660
      %v1684 = vpack.c.b16 %v1661, %v1661
      %v1685 = vpack.c.b16 %v1662, %v1662
      %v1686 = vpack.c.b16 %v1663, %v1663
      %v1687 = vpack.c.b16 %v1664, %v1664
      %v1688 = vpack.c.b16 %v1665, %v1665
      %v1689 = vpack.c.b16 %v1666, %v1666
      %v1690 = vpack.c.b16 %v1667, %v1667
      %v1691 = vpack.c.b16 %v1668, %v1668
      %v1692 = vpack.c.b16 %v1669, %v1669
      %v1693 = vpack.c.b16 %v1670, %v1670
      %v1694 = vpack.c.b16 %v1671, %v1671
      %v1695 = vpack.c.b16 %v1672, %v1672
      %v1696 = vpack.c.b16 %v1673, %v1673
      %v1697 = vpack.c.b16 %v1674, %v1674
      %v1698 = vpack.c.b16 %v1675, %v1675
      %v1699 = vpack.c.b16 %v1676, %v1676
      %v1700 = vpack.c.b16 %v1677, %v1677
      %v1701 = vpack.c.b16 %v1678, %v1678
      %1702 = vrot.lane.b32.xlu0 %v1679, 28
      %v1703 = vpop.permute.xlu0 %1702
      %1704 = vrot.lane.b32.xlu0 %v1680, 28
      %v1705 = vpop.permute.xlu0 %1704
      %1706 = vrot.lane.b32.xlu0 %v1681, 28
      %v1707 = vpop.permute.xlu0 %1706
      %1708 = vrot.lane.b32.xlu0 %v1682, 28
      %v1709 = vpop.permute.xlu0 %1708
      %1710 = vrot.lane.b32.xlu0 %v1683, 28
      %v1711 = vpop.permute.xlu0 %1710
      %1712 = vrot.lane.b32.xlu0 %v1684, 28
      %v1713 = vpop.permute.xlu0 %1712
      %1714 = vrot.lane.b32.xlu0 %v1685, 28
      %v1715 = vpop.permute.xlu0 %1714
      %1716 = vrot.lane.b32.xlu0 %v1686, 28
      %v1717 = vpop.permute.xlu0 %1716
      %1718 = vrot.lane.b32.xlu0 %v1687, 28
      %v1719 = vpop.permute.xlu0 %1718
      %1720 = vrot.lane.b32.xlu0 %v1688, 28
      %v1721 = vpop.permute.xlu0 %1720
      %1722 = vrot.lane.b32.xlu0 %v1689, 28
      %v1723 = vpop.permute.xlu0 %1722
      %1724 = vrot.lane.b32.xlu0 %v1690, 28
      %v1725 = vpop.permute.xlu0 %1724
      %1726 = vrot.lane.b32.xlu0 %v1691, 28
      %v1727 = vpop.permute.xlu0 %1726
      %1728 = vrot.lane.b32.xlu0 %v1692, 28
      %v1729 = vpop.permute.xlu0 %1728
      %1730 = vrot.lane.b32.xlu0 %v1693, 28
      %v1731 = vpop.permute.xlu0 %1730
      %1732 = vrot.lane.b32.xlu0 %v1694, 28
      %v1733 = vpop.permute.xlu0 %1732
      %1734 = vrot.lane.b32.xlu0 %v1695, 28
      %v1735 = vpop.permute.xlu0 %1734
      %1736 = vrot.lane.b32.xlu0 %v1696, 28
      %v1737 = vpop.permute.xlu0 %1736
      %1738 = vrot.lane.b32.xlu0 %v1697, 28
      %v1739 = vpop.permute.xlu0 %1738
      %1740 = vrot.lane.b32.xlu0 %v1698, 28
      %v1741 = vpop.permute.xlu0 %1740
      %1742 = vrot.lane.b32.xlu0 %v1699, 28
      %v1743 = vpop.permute.xlu0 %1742
      %1744 = vrot.lane.b32.xlu0 %v1700, 28
      %v1745 = vpop.permute.xlu0 %1744
      %1746 = vrot.lane.b32.xlu0 %v1701, 28
      %v1747 = vpop.permute.xlu0 %1746
      %vm1771 = vcmask 257248
      %1772 = vst.msk [vmem:[#allocation2] sm:$0xf] %vm1771, %v1703
      %1773 = vst.msk [vmem:[#allocation2 + $0x4] sm:$0xf] %vm1771, %v1705
      %1774 = vst.msk [vmem:[#allocation2 + $0x8] sm:$0xf] %vm1771, %v1707
      %1775 = vst.msk [vmem:[#allocation2 + $0xc] sm:$0xf] %vm1771, %v1709
      %1776 = vst.msk [vmem:[#allocation2 + $0x10] sm:$0xf] %vm1771, %v1711
      %1777 = vst.msk [vmem:[#allocation2 + $0x14] sm:$0xf] %vm1771, %v1713
      %1778 = vst.msk [vmem:[#allocation2 + $0x18] sm:$0xf] %vm1771, %v1715
      %1779 = vst.msk [vmem:[#allocation2 + $0x1c] sm:$0xf] %vm1771, %v1717
      %1780 = vst.msk [vmem:[#allocation2 + $0x20] sm:$0xf] %vm1771, %v1719
      %1781 = vst.msk [vmem:[#allocation2 + $0x24] sm:$0xf] %vm1771, %v1721
      %1782 = vst.msk [vmem:[#allocation2 + $0x28] sm:$0xf] %vm1771, %v1723
      %1783 = vst.msk [vmem:[#allocation2 + $0x2c] sm:$0xf] %vm1771, %v1725
      %1784 = vst.msk [vmem:[#allocation2 + $0x30] sm:$0xf] %vm1771, %v1727
      %1785 = vst.msk [vmem:[#allocation2 + $0x34] sm:$0xf] %vm1771, %v1729
      %1786 = vst.msk [vmem:[#allocation2 + $0x38] sm:$0xf] %vm1771, %v1731
      %1787 = vst.msk [vmem:[#allocation2 + $0x3c] sm:$0xf] %vm1771, %v1733
      %1788 = vst.msk [vmem:[#allocation2 + $0x40] sm:$0xf] %vm1771, %v1735
      %1789 = vst.msk [vmem:[#allocation2 + $0x44] sm:$0xf] %vm1771, %v1737
      %1790 = vst.msk [vmem:[#allocation2 + $0x48] sm:$0xf] %vm1771, %v1739
      %1791 = vst.msk [vmem:[#allocation2 + $0x4c] sm:$0xf] %vm1771, %v1741
      %1792 = vst.msk [vmem:[#allocation2 + $0x50] sm:$0xf] %vm1771, %v1743
      %1793 = vst.msk [vmem:[#allocation2 + $0x54] sm:$0xf] %vm1771, %v1745
      %vm1794 = vcmask 255200
      %1795 = vst.msk [vmem:[#allocation2 + $0x58] sm:$0x3] %vm1794, %v1747
      %s1796 = sadd.s32 %s330, 38
      %s1797 = scalar_lea.vmem %s318, %s1796
      %v1798 = vld [vmem:[%s1797] sm:$0xff]
      %v1799 = vld [vmem:[%s1797 + $0x8] sm:$0xff]
      %v1800 = vld [vmem:[%s1797 + $0x10] sm:$0xff]
      %v1801 = vld [vmem:[%s1797 + $0x18] sm:$0xff]
      %v1802 = vld [vmem:[%s1797 + $0x20] sm:$0xff]
      %v1803 = vld [vmem:[%s1797 + $0x28] sm:$0xff]
      %v1804 = vld [vmem:[%s1797 + $0x30] sm:$0xff]
      %v1805 = vld [vmem:[%s1797 + $0x38] sm:$0xff]
      %v1806 = vld [vmem:[%s1797 + $0x40] sm:$0xff]
      %v1807 = vld [vmem:[%s1797 + $0x48] sm:$0xff]
      %v1808 = vld [vmem:[%s1797 + $0x50] sm:$0xff]
      %v1809 = vld [vmem:[%s1797 + $0x58] sm:$0xff]
      %v1810 = vld [vmem:[%s1797 + $0x60] sm:$0xff]
      %v1811 = vld [vmem:[%s1797 + $0x68] sm:$0xff]
      %v1812 = vld [vmem:[%s1797 + $0x70] sm:$0xff]
      %v1813 = vld [vmem:[%s1797 + $0x78] sm:$0xff]
      %v1814 = vld [vmem:[%s1797 + $0x80] sm:$0xff]
      %v1815 = vld [vmem:[%s1797 + $0x88] sm:$0xff]
      %v1816 = vld [vmem:[%s1797 + $0x90] sm:$0xff]
      %v1817 = vld [vmem:[%s1797 + $0x98] sm:$0xff]
      %v1818 = vld [vmem:[%s1797 + $0xa0] sm:$0xff]
      %v1819 = vld [vmem:[%s1797 + $0xa8] sm:$0xff]
      %v1820 = vld [vmem:[%s1797 + $0xb0] sm:$0xf]
      %v1821 = vpack.c.bf16 %v1799, %v1798
      %v1822 = vpack.c.bf16 %v1801, %v1800
      %v1823 = vpack.c.bf16 %v1803, %v1802
      %v1824 = vpack.c.bf16 %v1805, %v1804
      %v1825 = vpack.c.bf16 %v1807, %v1806
      %v1826 = vpack.c.bf16 %v1809, %v1808
      %v1827 = vpack.c.bf16 %v1811, %v1810
      %v1828 = vpack.c.bf16 %v1813, %v1812
      %v1829 = vpack.c.bf16 %v1815, %v1814
      %v1830 = vpack.c.bf16 %v1817, %v1816
      %v1831 = vpack.c.bf16 %v1819, %v1818
      %v1832 = vpack.c.bf16 %v1820, %v1820
      %v1845 = vunpack.c.l.b16 %v1821
      %v1846 = vunpack.c.h.b16 %v1821
      %v1847 = vunpack.c.l.b16 %v1822
      %v1848 = vunpack.c.h.b16 %v1822
      %v1849 = vunpack.c.l.b16 %v1823
      %v1850 = vunpack.c.h.b16 %v1823
      %v1851 = vunpack.c.l.b16 %v1824
      %v1852 = vunpack.c.h.b16 %v1824
      %v1853 = vunpack.c.l.b16 %v1825
      %v1854 = vunpack.c.h.b16 %v1825
      %v1855 = vunpack.c.l.b16 %v1826
      %v1856 = vunpack.c.h.b16 %v1826
      %v1857 = vunpack.c.l.b16 %v1827
      %v1858 = vunpack.c.h.b16 %v1827
      %v1859 = vunpack.c.l.b16 %v1828
      %v1860 = vunpack.c.h.b16 %v1828
      %v1861 = vunpack.c.l.b16 %v1829
      %v1862 = vunpack.c.h.b16 %v1829
      %v1863 = vunpack.c.l.b16 %v1830
      %v1864 = vunpack.c.h.b16 %v1830
      %v1865 = vunpack.c.l.b16 %v1831
      %v1866 = vunpack.c.h.b16 %v1831
      %v1867 = vunpack.c.l.b16 %v1832
      %v1868 = vpack.c.b16 %v1845, %v1845
      %v1869 = vpack.c.b16 %v1846, %v1846
      %v1870 = vpack.c.b16 %v1847, %v1847
      %v1871 = vpack.c.b16 %v1848, %v1848
      %v1872 = vpack.c.b16 %v1849, %v1849
      %v1873 = vpack.c.b16 %v1850, %v1850
      %v1874 = vpack.c.b16 %v1851, %v1851
      %v1875 = vpack.c.b16 %v1852, %v1852
      %v1876 = vpack.c.b16 %v1853, %v1853
      %v1877 = vpack.c.b16 %v1854, %v1854
      %v1878 = vpack.c.b16 %v1855, %v1855
      %v1879 = vpack.c.b16 %v1856, %v1856
      %v1880 = vpack.c.b16 %v1857, %v1857
      %v1881 = vpack.c.b16 %v1858, %v1858
      %v1882 = vpack.c.b16 %v1859, %v1859
      %v1883 = vpack.c.b16 %v1860, %v1860
      %v1884 = vpack.c.b16 %v1861, %v1861
      %v1885 = vpack.c.b16 %v1862, %v1862
      %v1886 = vpack.c.b16 %v1863, %v1863
      %v1887 = vpack.c.b16 %v1864, %v1864
      %v1888 = vpack.c.b16 %v1865, %v1865
      %v1889 = vpack.c.b16 %v1866, %v1866
      %v1890 = vpack.c.b16 %v1867, %v1867
      %1891 = vrot.lane.b32.xlu0 %v1868, 32
      %v1892 = vpop.permute.xlu0 %1891
      %1893 = vrot.lane.b32.xlu0 %v1869, 32
      %v1894 = vpop.permute.xlu0 %1893
      %1895 = vrot.lane.b32.xlu0 %v1870, 32
      %v1896 = vpop.permute.xlu0 %1895
      %1897 = vrot.lane.b32.xlu0 %v1871, 32
      %v1898 = vpop.permute.xlu0 %1897
      %1899 = vrot.lane.b32.xlu0 %v1872, 32
      %v1900 = vpop.permute.xlu0 %1899
      %1901 = vrot.lane.b32.xlu0 %v1873, 32
      %v1902 = vpop.permute.xlu0 %1901
      %1903 = vrot.lane.b32.xlu0 %v1874, 32
      %v1904 = vpop.permute.xlu0 %1903
      %1905 = vrot.lane.b32.xlu0 %v1875, 32
      %v1906 = vpop.permute.xlu0 %1905
      %1907 = vrot.lane.b32.xlu0 %v1876, 32
      %v1908 = vpop.permute.xlu0 %1907
      %1909 = vrot.lane.b32.xlu0 %v1877, 32
      %v1910 = vpop.permute.xlu0 %1909
      %1911 = vrot.lane.b32.xlu0 %v1878, 32
      %v1912 = vpop.permute.xlu0 %1911
      %1913 = vrot.lane.b32.xlu0 %v1879, 32
      %v1914 = vpop.permute.xlu0 %1913
      %1915 = vrot.lane.b32.xlu0 %v1880, 32
      %v1916 = vpop.permute.xlu0 %1915
      %1917 = vrot.lane.b32.xlu0 %v1881, 32
      %v1918 = vpop.permute.xlu0 %1917
      %1919 = vrot.lane.b32.xlu0 %v1882, 32
      %v1920 = vpop.permute.xlu0 %1919
      %1921 = vrot.lane.b32.xlu0 %v1883, 32
      %v1922 = vpop.permute.xlu0 %1921
      %1923 = vrot.lane.b32.xlu0 %v1884, 32
      %v1924 = vpop.permute.xlu0 %1923
      %1925 = vrot.lane.b32.xlu0 %v1885, 32
      %v1926 = vpop.permute.xlu0 %1925
      %1927 = vrot.lane.b32.xlu0 %v1886, 32
      %v1928 = vpop.permute.xlu0 %1927
      %1929 = vrot.lane.b32.xlu0 %v1887, 32
      %v1930 = vpop.permute.xlu0 %1929
      %1931 = vrot.lane.b32.xlu0 %v1888, 32
      %v1932 = vpop.permute.xlu0 %1931
      %1933 = vrot.lane.b32.xlu0 %v1889, 32
      %v1934 = vpop.permute.xlu0 %1933
      %1935 = vrot.lane.b32.xlu0 %v1890, 32
      %v1936 = vpop.permute.xlu0 %1935
      %vm1960 = vcmask 290048
      %1961 = vst.msk [vmem:[#allocation2] sm:$0xf] %vm1960, %v1892
      %1962 = vst.msk [vmem:[#allocation2 + $0x4] sm:$0xf] %vm1960, %v1894
      %1963 = vst.msk [vmem:[#allocation2 + $0x8] sm:$0xf] %vm1960, %v1896
      %1964 = vst.msk [vmem:[#allocation2 + $0xc] sm:$0xf] %vm1960, %v1898
      %1965 = vst.msk [vmem:[#allocation2 + $0x10] sm:$0xf] %vm1960, %v1900
      %1966 = vst.msk [vmem:[#allocation2 + $0x14] sm:$0xf] %vm1960, %v1902
      %1967 = vst.msk [vmem:[#allocation2 + $0x18] sm:$0xf] %vm1960, %v1904
      %1968 = vst.msk [vmem:[#allocation2 + $0x1c] sm:$0xf] %vm1960, %v1906
      %1969 = vst.msk [vmem:[#allocation2 + $0x20] sm:$0xf] %vm1960, %v1908
      %1970 = vst.msk [vmem:[#allocation2 + $0x24] sm:$0xf] %vm1960, %v1910
      %1971 = vst.msk [vmem:[#allocation2 + $0x28] sm:$0xf] %vm1960, %v1912
      %1972 = vst.msk [vmem:[#allocation2 + $0x2c] sm:$0xf] %vm1960, %v1914
      %1973 = vst.msk [vmem:[#allocation2 + $0x30] sm:$0xf] %vm1960, %v1916
      %1974 = vst.msk [vmem:[#allocation2 + $0x34] sm:$0xf] %vm1960, %v1918
      %1975 = vst.msk [vmem:[#allocation2 + $0x38] sm:$0xf] %vm1960, %v1920
      %1976 = vst.msk [vmem:[#allocation2 + $0x3c] sm:$0xf] %vm1960, %v1922
      %1977 = vst.msk [vmem:[#allocation2 + $0x40] sm:$0xf] %vm1960, %v1924
      %1978 = vst.msk [vmem:[#allocation2 + $0x44] sm:$0xf] %vm1960, %v1926
      %1979 = vst.msk [vmem:[#allocation2 + $0x48] sm:$0xf] %vm1960, %v1928
      %1980 = vst.msk [vmem:[#allocation2 + $0x4c] sm:$0xf] %vm1960, %v1930
      %1981 = vst.msk [vmem:[#allocation2 + $0x50] sm:$0xf] %vm1960, %v1932
      %1982 = vst.msk [vmem:[#allocation2 + $0x54] sm:$0xf] %vm1960, %v1934
      %vm1983 = vcmask 288000
      %1984 = vst.msk [vmem:[#allocation2 + $0x58] sm:$0x3] %vm1983, %v1936
      %v1985 = vld [vmem:[#allocation2] sm:$0xf]
      %v1986 = vld [vmem:[#allocation2 + $0x4] sm:$0xf]
      %v1987 = vld [vmem:[#allocation2 + $0x8] sm:$0xf]
      %v1988 = vld [vmem:[#allocation2 + $0xc] sm:$0xf]
      %v1989 = vld [vmem:[#allocation2 + $0x10] sm:$0xf]
      %v1990 = vld [vmem:[#allocation2 + $0x14] sm:$0xf]
      %v1991 = vld [vmem:[#allocation2 + $0x18] sm:$0xf]
      %v1992 = vld [vmem:[#allocation2 + $0x1c] sm:$0xf]
      %v1993 = vld [vmem:[#allocation2 + $0x20] sm:$0xf]
      %v1994 = vld [vmem:[#allocation2 + $0x24] sm:$0xf]
      %v1995 = vld [vmem:[#allocation2 + $0x28] sm:$0xf]
      %v1996 = vld [vmem:[#allocation2 + $0x2c] sm:$0xf]
      %v1997 = vld [vmem:[#allocation2 + $0x30] sm:$0xf]
      %v1998 = vld [vmem:[#allocation2 + $0x34] sm:$0xf]
      %v1999 = vld [vmem:[#allocation2 + $0x38] sm:$0xf]
      %v2000 = vld [vmem:[#allocation2 + $0x3c] sm:$0xf]
      %v2001 = vld [vmem:[#allocation2 + $0x40] sm:$0xf]
      %v2002 = vld [vmem:[#allocation2 + $0x44] sm:$0xf]
      %v2003 = vld [vmem:[#allocation2 + $0x48] sm:$0xf]
      %v2004 = vld [vmem:[#allocation2 + $0x4c] sm:$0xf]
      %v2005 = vld [vmem:[#allocation2 + $0x50] sm:$0xf]
      %v2006 = vld [vmem:[#allocation2 + $0x54] sm:$0xf]
      %v2007 = vld [vmem:[#allocation2 + $0x58] sm:$0x3]
      %v2008 = vld [vmem:[%s2] sm:$0xf]
      %v2009 = vld [vmem:[%s2 + $0x4] sm:$0xf]
      %v2010 = vld [vmem:[%s2 + $0x8] sm:$0xf]
      %v2011 = vld [vmem:[%s2 + $0xc] sm:$0xf]
      %v2012 = vld [vmem:[%s2 + $0x10] sm:$0x3]
      %v2036 = vunpack.c.l.b16 %v1985
      %v2037 = vunpack.c.l.b16 %v1986
      %v2038 = vunpack.c.l.b16 %v1987
      %v2039 = vunpack.c.l.b16 %v1988
      %v2040 = vunpack.c.l.b16 %v1989
      %v2041 = vunpack.c.l.b16 %v1990
      %v2042 = vunpack.c.l.b16 %v1991
      %v2043 = vunpack.c.l.b16 %v1992
      %v2044 = vunpack.c.l.b16 %v1993
      %v2045 = vunpack.c.l.b16 %v1994
      %v2046 = vunpack.c.l.b16 %v1995
      %v2047 = vunpack.c.l.b16 %v1996
      %v2048 = vunpack.c.l.b16 %v1997
      %v2049 = vunpack.c.l.b16 %v1998
      %v2050 = vunpack.c.l.b16 %v1999
      %v2051 = vunpack.c.l.b16 %v2000
      %v2052 = vunpack.c.l.b16 %v2001
      %v2053 = vunpack.c.l.b16 %v2002
      %v2054 = vunpack.c.l.b16 %v2003
      %v2055 = vunpack.c.l.b16 %v2004
      %v2056 = vunpack.c.l.b16 %v2005
      %v2057 = vunpack.c.l.b16 %v2006
      %v2058 = vunpack.c.l.b16 %v2007
      %v2059 = vpack.c.b16 %v2037, %v2036
      %v2060 = vpack.c.b16 %v2039, %v2038
      %v2061 = vpack.c.b16 %v2041, %v2040
      %v2062 = vpack.c.b16 %v2043, %v2042
      %v2063 = vpack.c.b16 %v2045, %v2044
      %v2064 = vpack.c.b16 %v2047, %v2046
      %v2065 = vpack.c.b16 %v2049, %v2048
      %v2066 = vpack.c.b16 %v2051, %v2050
      %v2067 = vpack.c.b16 %v2053, %v2052
      %v2068 = vpack.c.b16 %v2055, %v2054
      %v2069 = vpack.c.b16 %v2057, %v2056
      %v2070 = vpack.c.b16 %v2058, %v2058
      %v2076 = vunpack.c.l.b16 %v2008
      %v2077 = vunpack.c.l.b16 %v2009
      %v2078 = vunpack.c.l.b16 %v2010
      %v2079 = vunpack.c.l.b16 %v2011
      %v2080 = vunpack.c.l.b16 %v2012
      %v2081 = vpack.c.b16 %v2077, %v2076
      %v2082 = vpack.c.b16 %v2079, %v2078
      %v2083 = vpack.c.b16 %v2080, %v2080
      %vm2086 = vcmask 293888
      %v2088 = vsel %vm2086, %v2059, 0
      %v2091 = vsel %vm2086, %v2060, 0
      %v2094 = vsel %vm2086, %v2061, 0
      %v2097 = vsel %vm2086, %v2062, 0
      %v2100 = vsel %vm2086, %v2063, 0
      %v2103 = vsel %vm2086, %v2064, 0
      %v2106 = vsel %vm2086, %v2065, 0
      %v2109 = vsel %vm2086, %v2066, 0
      %v2112 = vsel %vm2086, %v2067, 0
      %v2115 = vsel %vm2086, %v2068, 0
      %v2118 = vsel %vm2086, %v2069, 0
      %v2121 = vsel %vm2086, %v2070, 0
      %vm2123 = vcmask 1041408
      %v2125 = vsel %vm2123, %v2083, 0
      %2127 = vmatprep.subr.bf16.mxu0 0
      %2128 = vmatpush1.bf16.msra.mxu0 %v2081
      %2129 = vmatprep.subr.bf16.mxu0 0
      %2130 = vmatpush1.bf16.msra.mxu0 %v2082
      %2131 = vmatprep.subr.bf16.mxu0 0
      %2132 = vmatpush1.bf16.msra.mxu0 %v2125
      %2133 = vmatprep.subr.bf16.mxu0 0
      %2134 = vmatpush1.bf16.msra.mxu0 0
      %2135 = vmatprep.subr.bf16.mxu0 0
      %2136 = vmatpush1.bf16.msra.mxu0 0
      %2137 = vmatprep.subr.bf16.mxu0 0
      %2138 = vmatpush1.bf16.msra.mxu0 0
      %2139 = vmatprep.subr.bf16.mxu0 0
      %2140 = vmatpush1.bf16.msra.mxu0 0
      %2141 = vmatprep.subr.bf16.mxu0 0
      %2142 = vmatpush1.bf16.msra.mxu0 0
      %2143 = vmatprep.subr.bf16.mxu0 0
      %2144 = vmatpush1.bf16.msra.mxu0 0
      %2145 = vmatprep.subr.bf16.mxu0 0
      %2146 = vmatpush1.bf16.msra.mxu0 0
      %2147 = vmatprep.subr.bf16.mxu0 0
      %2148 = vmatpush1.bf16.msra.mxu0 0
      %2149 = vmatprep.subr.bf16.mxu0 0
      %2150 = vmatpush1.bf16.msra.mxu0 0
      %2151 = vmatprep.subr.bf16.mxu0 0
      %2152 = vmatpush1.bf16.msra.mxu0 0
      %2153 = vmatprep.subr.bf16.mxu0 0
      %2154 = vmatpush1.bf16.msra.mxu0 0
      %2155 = vmatprep.subr.bf16.mxu0 0
      %2156 = vmatpush1.bf16.msra.mxu0 0
      %2157 = vmatprep.subr.bf16.mxu0 0
      %2158 = vmatpush1.bf16.msra.mxu0 0
      %2159 = vmatprep.mubr.bf16.mxu0 0
      %2160 = vmatmul.mubr.bf16.gmra.mrb[0].mxu0 %v2088
      %v2161 = vpop.f32.mrb[0].mxu0
      %v2162 = vadd.f32 0.0, %v2161
      %v2163 = vpop.f32.mrb[0].mxu0
      %v2164 = vpop.f32.mrb[0].mxu0
      %v2165 = vadd.f32 0.0, %v2164
      %v2166 = vpop.f32.mrb[0].mxu0
      %2167 = vmatprep.mubr.bf16.mxu0 0
      %2168 = vmatmul.mubr.bf16.gmra.mrb[0].mxu0 %v2091
      %v2169 = vpop.f32.mrb[0].mxu0
      %v2170 = vadd.f32 0.0, %v2169
      %v2171 = vpop.f32.mrb[0].mxu0
      %v2172 = vpop.f32.mrb[0].mxu0
      %v2173 = vadd.f32 0.0, %v2172
      %v2174 = vpop.f32.mrb[0].mxu0
      %2175 = vmatprep.mubr.bf16.mxu0 0
      %2176 = vmatmul.mubr.bf16.gmra.mrb[0].mxu0 %v2094
      %v2177 = vpop.f32.mrb[0].mxu0
      %v2178 = vadd.f32 0.0, %v2177
      %v2179 = vpop.f32.mrb[0].mxu0
      %v2180 = vpop.f32.mrb[0].mxu0
      %v2181 = vadd.f32 0.0, %v2180
      %v2182 = vpop.f32.mrb[0].mxu0
      %2183 = vmatprep.mubr.bf16.mxu0 0
      %2184 = vmatmul.mubr.bf16.gmra.mrb[0].mxu0 %v2097
      %v2185 = vpop.f32.mrb[0].mxu0
      %v2186 = vadd.f32 0.0, %v2185
      %v2187 = vpop.f32.mrb[0].mxu0
      %v2188 = vpop.f32.mrb[0].mxu0
      %v2189 = vadd.f32 0.0, %v2188
      %v2190 = vpop.f32.mrb[0].mxu0
      %2191 = vmatprep.mubr.bf16.mxu0 0
      %2192 = vmatmul.mubr.bf16.gmra.mrb[0].mxu0 %v2100
      %v2193 = vpop.f32.mrb[0].mxu0
      %v2194 = vadd.f32 0.0, %v2193
      %v2195 = vpop.f32.mrb[0].mxu0
      %v2196 = vpop.f32.mrb[0].mxu0
      %v2197 = vadd.f32 0.0, %v2196
      %v2198 = vpop.f32.mrb[0].mxu0
      %2199 = vmatprep.mubr.bf16.mxu0 0
      %2200 = vmatmul.mubr.bf16.gmra.mrb[0].mxu0 %v2103
      %v2201 = vpop.f32.mrb[0].mxu0
      %v2202 = vadd.f32 0.0, %v2201
      %v2203 = vpop.f32.mrb[0].mxu0
      %v2204 = vpop.f32.mrb[0].mxu0
      %v2205 = vadd.f32 0.0, %v2204
      %v2206 = vpop.f32.mrb[0].mxu0
      %2207 = vmatprep.mubr.bf16.mxu0 0
      %2208 = vmatmul.mubr.bf16.gmra.mrb[0].mxu0 %v2106
      %v2209 = vpop.f32.mrb[0].mxu0
      %v2210 = vadd.f32 0.0, %v2209
      %v2211 = vpop.f32.mrb[0].mxu0
      %v2212 = vpop.f32.mrb[0].mxu0
      %v2213 = vadd.f32 0.0, %v2212
      %v2214 = vpop.f32.mrb[0].mxu0
      %2215 = vmatprep.mubr.bf16.mxu0 0
      %2216 = vmatmul.mubr.bf16.gmra.mrb[0].mxu0 %v2109
      %v2217 = vpop.f32.mrb[0].mxu0
      %v2218 = vadd.f32 0.0, %v2217
      %v2219 = vpop.f32.mrb[0].mxu0
      %v2220 = vpop.f32.mrb[0].mxu0
      %v2221 = vadd.f32 0.0, %v2220
      %v2222 = vpop.f32.mrb[0].mxu0
      %2223 = vmatprep.mubr.bf16.mxu0 0
      %2224 = vmatmul.mubr.bf16.gmra.mrb[0].mxu0 %v2112
      %v2225 = vpop.f32.mrb[0].mxu0
      %v2226 = vadd.f32 0.0, %v2225
      %v2227 = vpop.f32.mrb[0].mxu0
      %v2228 = vpop.f32.mrb[0].mxu0
      %v2229 = vadd.f32 0.0, %v2228
      %v2230 = vpop.f32.mrb[0].mxu0
      %2231 = vmatprep.mubr.bf16.mxu0 0
      %2232 = vmatmul.mubr.bf16.gmra.mrb[0].mxu0 %v2115
      %v2233 = vpop.f32.mrb[0].mxu0
      %v2234 = vadd.f32 0.0, %v2233
      %v2235 = vpop.f32.mrb[0].mxu0
      %v2236 = vpop.f32.mrb[0].mxu0
      %v2237 = vadd.f32 0.0, %v2236
      %v2238 = vpop.f32.mrb[0].mxu0
      %2239 = vmatprep.mubr.bf16.mxu0 0
      %2240 = vmatmul.mubr.bf16.gmra.mrb[0].mxu0 %v2118
      %v2241 = vpop.f32.mrb[0].mxu0
      %v2242 = vadd.f32 0.0, %v2241
      %v2243 = vpop.f32.mrb[0].mxu0
      %v2244 = vpop.f32.mrb[0].mxu0
      %v2245 = vadd.f32 0.0, %v2244
      %v2246 = vpop.f32.mrb[0].mxu0
      %2247 = vmatprep.mubr.bf16.mxu0 0
      %2248 = vmatmul.mubr.bf16.gmra.mrb[0].mxu0 %v2121
      %v2249 = vpop.f32.mrb[0].mxu0
      %v2250 = vadd.f32 0.0, %v2249
      %v2251 = vpop.f32.mrb[0].mxu0
      %v2252 = vpop.f32.mrb[0].mxu0
      %v2253 = vpop.f32.mrb[0].mxu0
      %2254 = vdwg.mxu0
      %v2255 = vld [vmem:[%s3] sm:$0x1]
      %v2257 = vlaneseq
      %v2258 = vshrl.u32 %v2257, 7
      %v2259 = vsub.s32 0, %v2258
      %v2260 = vrot.slane %v2255, %v2259
      %v2262 = vmul.f32 %v2162, %v2260
      %v2263 = vmul.f32 %v2165, %v2260
      %v2264 = vmul.f32 %v2170, %v2260
      %v2265 = vmul.f32 %v2173, %v2260
      %v2266 = vmul.f32 %v2178, %v2260
      %v2267 = vmul.f32 %v2181, %v2260
      %v2268 = vmul.f32 %v2186, %v2260
      %v2269 = vmul.f32 %v2189, %v2260
      %v2270 = vmul.f32 %v2194, %v2260
      %v2271 = vmul.f32 %v2197, %v2260
      %v2272 = vmul.f32 %v2202, %v2260
      %v2273 = vmul.f32 %v2205, %v2260
      %v2274 = vmul.f32 %v2210, %v2260
      %v2275 = vmul.f32 %v2213, %v2260
      %v2276 = vmul.f32 %v2218, %v2260
      %v2277 = vmul.f32 %v2221, %v2260
      %v2278 = vmul.f32 %v2226, %v2260
      %v2279 = vmul.f32 %v2229, %v2260
      %v2280 = vmul.f32 %v2234, %v2260
      %v2281 = vmul.f32 %v2237, %v2260
      %v2282 = vmul.f32 %v2242, %v2260
      %v2283 = vmul.f32 %v2245, %v2260
      %v2284 = vmul.f32 %v2250, %v2260
      %v2285 = vld [vmem:[%s4] sm:$0x1]
      %v2287 = vlaneseq
      %v2288 = vshrl.u32 %v2287, 7
      %v2289 = vsub.s32 0, %v2288
      %v2290 = vrot.slane %v2285, %v2289
      %v2292 = vadd.f32 %v2262, %v2290
      %v2293 = vadd.f32 %v2263, %v2290
      %v2294 = vadd.f32 %v2264, %v2290
      %v2295 = vadd.f32 %v2265, %v2290
      %v2296 = vadd.f32 %v2266, %v2290
      %v2297 = vadd.f32 %v2267, %v2290
      %v2298 = vadd.f32 %v2268, %v2290
      %v2299 = vadd.f32 %v2269, %v2290
      %v2300 = vadd.f32 %v2270, %v2290
      %v2301 = vadd.f32 %v2271, %v2290
      %v2302 = vadd.f32 %v2272, %v2290
      %v2303 = vadd.f32 %v2273, %v2290
      %v2304 = vadd.f32 %v2274, %v2290
      %v2305 = vadd.f32 %v2275, %v2290
      %v2306 = vadd.f32 %v2276, %v2290
      %v2307 = vadd.f32 %v2277, %v2290
      %v2308 = vadd.f32 %v2278, %v2290
      %v2309 = vadd.f32 %v2279, %v2290
      %v2310 = vadd.f32 %v2280, %v2290
      %v2311 = vadd.f32 %v2281, %v2290
      %v2312 = vadd.f32 %v2282, %v2290
      %v2313 = vadd.f32 %v2283, %v2290
      %v2314 = vadd.f32 %v2284, %v2290
      %v2315 = vmax.f32 %v2292, 0.0
      %v2316 = vmax.f32 %v2293, 0.0
      %v2317 = vmax.f32 %v2294, 0.0
      %v2318 = vmax.f32 %v2295, 0.0
      %v2319 = vmax.f32 %v2296, 0.0
      %v2320 = vmax.f32 %v2297, 0.0
      %v2321 = vmax.f32 %v2298, 0.0
      %v2322 = vmax.f32 %v2299, 0.0
      %v2323 = vmax.f32 %v2300, 0.0
      %v2324 = vmax.f32 %v2301, 0.0
      %v2325 = vmax.f32 %v2302, 0.0
      %v2326 = vmax.f32 %v2303, 0.0
      %v2327 = vmax.f32 %v2304, 0.0
      %v2328 = vmax.f32 %v2305, 0.0
      %v2329 = vmax.f32 %v2306, 0.0
      %v2330 = vmax.f32 %v2307, 0.0
      %v2331 = vmax.f32 %v2308, 0.0
      %v2332 = vmax.f32 %v2309, 0.0
      %v2333 = vmax.f32 %v2310, 0.0
      %v2334 = vmax.f32 %v2311, 0.0
      %v2335 = vmax.f32 %v2312, 0.0
      %v2336 = vmax.f32 %v2313, 0.0
      %v2337 = vmax.f32 %v2314, 0.0
      %s2338 = scalar_lea.vmem %s1, %s330
      %v2339 = vld [vmem:[%s2338] sm:$0xff]
      %v2340 = vld [vmem:[%s2338 + $0x8] sm:$0xff]
      %v2341 = vld [vmem:[%s2338 + $0x10] sm:$0xff]
      %v2342 = vld [vmem:[%s2338 + $0x18] sm:$0xff]
      %v2343 = vld [vmem:[%s2338 + $0x20] sm:$0xff]
      %v2344 = vld [vmem:[%s2338 + $0x28] sm:$0xff]
      %v2345 = vld [vmem:[%s2338 + $0x30] sm:$0xff]
      %v2346 = vld [vmem:[%s2338 + $0x38] sm:$0xff]
      %v2347 = vld [vmem:[%s2338 + $0x40] sm:$0xff]
      %v2348 = vld [vmem:[%s2338 + $0x48] sm:$0xff]
      %v2349 = vld [vmem:[%s2338 + $0x50] sm:$0xff]
      %v2350 = vld [vmem:[%s2338 + $0x58] sm:$0xff]
      %v2351 = vld [vmem:[%s2338 + $0x60] sm:$0xff]
      %v2352 = vld [vmem:[%s2338 + $0x68] sm:$0xff]
      %v2353 = vld [vmem:[%s2338 + $0x70] sm:$0xff]
      %v2354 = vld [vmem:[%s2338 + $0x78] sm:$0xff]
      %v2355 = vld [vmem:[%s2338 + $0x80] sm:$0xff]
      %v2356 = vld [vmem:[%s2338 + $0x88] sm:$0xff]
      %v2357 = vld [vmem:[%s2338 + $0x90] sm:$0xff]
      %v2358 = vld [vmem:[%s2338 + $0x98] sm:$0xff]
      %v2359 = vld [vmem:[%s2338 + $0xa0] sm:$0xff]
      %v2360 = vld [vmem:[%s2338 + $0xa8] sm:$0xff]
      %v2361 = vld [vmem:[%s2338 + $0xb0] sm:$0xf]
      %2363 = vset.pattern.permute.xlu0 0
      %2364 = vperm.xlu0 %2363, %v2339
      %v2365 = vpop.permute.xlu0 %2364
      %2368 = vset.pattern.permute.xlu0 0
      %2369 = vperm.xlu0 %2368, %v2340
      %v2370 = vpop.permute.xlu0 %2369
      %2373 = vset.pattern.permute.xlu0 0
      %2374 = vperm.xlu0 %2373, %v2341
      %v2375 = vpop.permute.xlu0 %2374
      %2378 = vset.pattern.permute.xlu0 0
      %2379 = vperm.xlu0 %2378, %v2342
      %v2380 = vpop.permute.xlu0 %2379
      %2383 = vset.pattern.permute.xlu0 0
      %2384 = vperm.xlu0 %2383, %v2343
      %v2385 = vpop.permute.xlu0 %2384
      %2388 = vset.pattern.permute.xlu0 0
      %2389 = vperm.xlu0 %2388, %v2344
      %v2390 = vpop.permute.xlu0 %2389
      %2393 = vset.pattern.permute.xlu0 0
      %2394 = vperm.xlu0 %2393, %v2345
      %v2395 = vpop.permute.xlu0 %2394
      %2398 = vset.pattern.permute.xlu0 0
      %2399 = vperm.xlu0 %2398, %v2346
      %v2400 = vpop.permute.xlu0 %2399
      %2403 = vset.pattern.permute.xlu0 0
      %2404 = vperm.xlu0 %2403, %v2347
      %v2405 = vpop.permute.xlu0 %2404
      %2408 = vset.pattern.permute.xlu0 0
      %2409 = vperm.xlu0 %2408, %v2348
      %v2410 = vpop.permute.xlu0 %2409
      %2413 = vset.pattern.permute.xlu0 0
      %2414 = vperm.xlu0 %2413, %v2349
      %v2415 = vpop.permute.xlu0 %2414
      %2418 = vset.pattern.permute.xlu0 0
      %2419 = vperm.xlu0 %2418, %v2350
      %v2420 = vpop.permute.xlu0 %2419
      %2423 = vset.pattern.permute.xlu0 0
      %2424 = vperm.xlu0 %2423, %v2351
      %v2425 = vpop.permute.xlu0 %2424
      %2428 = vset.pattern.permute.xlu0 0
      %2429 = vperm.xlu0 %2428, %v2352
      %v2430 = vpop.permute.xlu0 %2429
      %2433 = vset.pattern.permute.xlu0 0
      %2434 = vperm.xlu0 %2433, %v2353
      %v2435 = vpop.permute.xlu0 %2434
      %2438 = vset.pattern.permute.xlu0 0
      %2439 = vperm.xlu0 %2438, %v2354
      %v2440 = vpop.permute.xlu0 %2439
      %2443 = vset.pattern.permute.xlu0 0
      %2444 = vperm.xlu0 %2443, %v2355
      %v2445 = vpop.permute.xlu0 %2444
      %2448 = vset.pattern.permute.xlu0 0
      %2449 = vperm.xlu0 %2448, %v2356
      %v2450 = vpop.permute.xlu0 %2449
      %2453 = vset.pattern.permute.xlu0 0
      %2454 = vperm.xlu0 %2453, %v2357
      %v2455 = vpop.permute.xlu0 %2454
      %2458 = vset.pattern.permute.xlu0 0
      %2459 = vperm.xlu0 %2458, %v2358
      %v2460 = vpop.permute.xlu0 %2459
      %2463 = vset.pattern.permute.xlu0 0
      %2464 = vperm.xlu0 %2463, %v2359
      %v2465 = vpop.permute.xlu0 %2464
      %2468 = vset.pattern.permute.xlu0 0
      %2469 = vperm.xlu0 %2468, %v2360
      %v2470 = vpop.permute.xlu0 %2469
      %2473 = vset.pattern.permute.xlu0 0
      %2474 = vperm.xlu0 %2473, %v2361
      %v2475 = vpop.permute.xlu0 %2474
      %v2477 = vmul.f32 %v2315, %v2365
      %v2478 = vmul.f32 %v2316, %v2370
      %v2479 = vmul.f32 %v2317, %v2375
      %v2480 = vmul.f32 %v2318, %v2380
      %v2481 = vmul.f32 %v2319, %v2385
      %v2482 = vmul.f32 %v2320, %v2390
      %v2483 = vmul.f32 %v2321, %v2395
      %v2484 = vmul.f32 %v2322, %v2400
      %v2485 = vmul.f32 %v2323, %v2405
      %v2486 = vmul.f32 %v2324, %v2410
      %v2487 = vmul.f32 %v2325, %v2415
      %v2488 = vmul.f32 %v2326, %v2420
      %v2489 = vmul.f32 %v2327, %v2425
      %v2490 = vmul.f32 %v2328, %v2430
      %v2491 = vmul.f32 %v2329, %v2435
      %v2492 = vmul.f32 %v2330, %v2440
      %v2493 = vmul.f32 %v2331, %v2445
      %v2494 = vmul.f32 %v2332, %v2450
      %v2495 = vmul.f32 %v2333, %v2455
      %v2496 = vmul.f32 %v2334, %v2460
      %v2497 = vmul.f32 %v2335, %v2465
      %v2498 = vmul.f32 %v2336, %v2470
      %v2499 = vmul.f32 %v2337, %v2475
      %vm2500 = vcmask 261120
      %2501 = vst.msk [vmem:[#allocation3] sm:$0xff] %vm2500, 0.0
      %2502 = vst.msk [vmem:[#allocation3 + $0xbc] sm:$0xff] %vm2500, 0.0
      %2503 = vst.msk [vmem:[#allocation3 + $0x8] sm:$0xff] %vm2500, %v2477
      %2504 = vst.msk [vmem:[#allocation3 + $0x10] sm:$0xff] %vm2500, %v2478
      %2505 = vst.msk [vmem:[#allocation3 + $0x18] sm:$0xff] %vm2500, %v2479
      %2506 = vst.msk [vmem:[#allocation3 + $0x20] sm:$0xff] %vm2500, %v2480
      %2507 = vst.msk [vmem:[#allocation3 + $0x28] sm:$0xff] %vm2500, %v2481
      %2508 = vst.msk [vmem:[#allocation3 + $0x30] sm:$0xff] %vm2500, %v2482
      %2509 = vst.msk [vmem:[#allocation3 + $0x38] sm:$0xff] %vm2500, %v2483
      %2510 = vst.msk [vmem:[#allocation3 + $0x40] sm:$0xff] %vm2500, %v2484
      %2511 = vst.msk [vmem:[#allocation3 + $0x48] sm:$0xff] %vm2500, %v2485
      %2512 = vst.msk [vmem:[#allocation3 + $0x50] sm:$0xff] %vm2500, %v2486
      %2513 = vst.msk [vmem:[#allocation3 + $0x58] sm:$0xff] %vm2500, %v2487
      %2514 = vst.msk [vmem:[#allocation3 + $0x60] sm:$0xff] %vm2500, %v2488
      %2515 = vst.msk [vmem:[#allocation3 + $0x68] sm:$0xff] %vm2500, %v2489
      %2516 = vst.msk [vmem:[#allocation3 + $0x70] sm:$0xff] %vm2500, %v2490
      %2517 = vst.msk [vmem:[#allocation3 + $0x78] sm:$0xff] %vm2500, %v2491
      %2518 = vst.msk [vmem:[#allocation3 + $0x80] sm:$0xff] %vm2500, %v2492
      %2519 = vst.msk [vmem:[#allocation3 + $0x88] sm:$0xff] %vm2500, %v2493
      %2520 = vst.msk [vmem:[#allocation3 + $0x90] sm:$0xff] %vm2500, %v2494
      %2521 = vst.msk [vmem:[#allocation3 + $0x98] sm:$0xff] %vm2500, %v2495
      %2522 = vst.msk [vmem:[#allocation3 + $0xa0] sm:$0xff] %vm2500, %v2496
      %2523 = vst.msk [vmem:[#allocation3 + $0xa8] sm:$0xff] %vm2500, %v2497
      %2524 = vst.msk [vmem:[#allocation3 + $0xb0] sm:$0xff] %vm2500, %v2498
      %vm2525 = vcmask 257024
      %2526 = vst.msk [vmem:[#allocation3 + $0xb8] sm:$0xf] %vm2525, %v2499
      %v2527 = vld [vmem:[#allocation3 + $0x7] sm:$0xff]
      %v2528 = vld [vmem:[#allocation3 + $0xf] sm:$0xff]
      %v2529 = vld [vmem:[#allocation3 + $0x17] sm:$0xff]
      %v2530 = vld [vmem:[#allocation3 + $0x1f] sm:$0xff]
      %v2531 = vld [vmem:[#allocation3 + $0x27] sm:$0xff]
      %v2532 = vld [vmem:[#allocation3 + $0x2f] sm:$0xff]
      %v2533 = vld [vmem:[#allocation3 + $0x37] sm:$0xff]
      %v2534 = vld [vmem:[#allocation3 + $0x3f] sm:$0xff]
      %v2535 = vld [vmem:[#allocation3 + $0x47] sm:$0xff]
      %v2536 = vld [vmem:[#allocation3 + $0x4f] sm:$0xff]
      %v2537 = vld [vmem:[#allocation3 + $0x57] sm:$0xff]
      %v2538 = vld [vmem:[#allocation3 + $0x5f] sm:$0xff]
      %v2539 = vld [vmem:[#allocation3 + $0x67] sm:$0xff]
      %v2540 = vld [vmem:[#allocation3 + $0x6f] sm:$0xff]
      %v2541 = vld [vmem:[#allocation3 + $0x77] sm:$0xff]
      %v2542 = vld [vmem:[#allocation3 + $0x7f] sm:$0xff]
      %v2543 = vld [vmem:[#allocation3 + $0x87] sm:$0xff]
      %v2544 = vld [vmem:[#allocation3 + $0x8f] sm:$0xff]
      %v2545 = vpack.c.bf16 %v2528, %v2527
      %v2546 = vpack.c.bf16 %v2530, %v2529
      %v2547 = vpack.c.bf16 %v2532, %v2531
      %v2548 = vpack.c.bf16 %v2534, %v2533
      %v2549 = vpack.c.bf16 %v2536, %v2535
      %v2550 = vpack.c.bf16 %v2538, %v2537
      %v2551 = vpack.c.bf16 %v2540, %v2539
      %v2552 = vpack.c.bf16 %v2542, %v2541
      %v2553 = vpack.c.bf16 %v2544, %v2543
      %2554 = vst.msk [vmem:[#allocation4] sm:$0xff] %vm2500, %v2545
      %2555 = vst.msk [vmem:[#allocation4 + $0x18] sm:$0xff] %vm2500, %v2546
      %2556 = vst.msk [vmem:[#allocation4 + $0x30] sm:$0xff] %vm2500, %v2547
      %2557 = vst.msk [vmem:[#allocation4 + $0x48] sm:$0xff] %vm2500, %v2548
      %2558 = vst.msk [vmem:[#allocation4 + $0x60] sm:$0xff] %vm2500, %v2549
      %2559 = vst.msk [vmem:[#allocation4 + $0x78] sm:$0xff] %vm2500, %v2550
      %2560 = vst.msk [vmem:[#allocation4 + $0x90] sm:$0xff] %vm2500, %v2551
      %2561 = vst.msk [vmem:[#allocation4 + $0xa8] sm:$0xff] %vm2500, %v2552
      %2562 = vst.msk [vmem:[#allocation4 + $0xc0] sm:$0xff] %vm2500, %v2553
      %v2563 = vld [vmem:[#allocation3 + $0x8] sm:$0xff]
      %v2564 = vld [vmem:[#allocation3 + $0x10] sm:$0xff]
      %v2565 = vld [vmem:[#allocation3 + $0x18] sm:$0xff]
      %v2566 = vld [vmem:[#allocation3 + $0x20] sm:$0xff]
      %v2567 = vld [vmem:[#allocation3 + $0x28] sm:$0xff]
      %v2568 = vld [vmem:[#allocation3 + $0x30] sm:$0xff]
      %v2569 = vld [vmem:[#allocation3 + $0x38] sm:$0xff]
      %v2570 = vld [vmem:[#allocation3 + $0x40] sm:$0xff]
      %v2571 = vld [vmem:[#allocation3 + $0x48] sm:$0xff]
      %v2572 = vld [vmem:[#allocation3 + $0x50] sm:$0xff]
      %v2573 = vld [vmem:[#allocation3 + $0x58] sm:$0xff]
      %v2574 = vld [vmem:[#allocation3 + $0x60] sm:$0xff]
      %v2575 = vld [vmem:[#allocation3 + $0x68] sm:$0xff]
      %v2576 = vld [vmem:[#allocation3 + $0x70] sm:$0xff]
      %v2577 = vld [vmem:[#allocation3 + $0x78] sm:$0xff]
      %v2578 = vld [vmem:[#allocation3 + $0x80] sm:$0xff]
      %v2579 = vld [vmem:[#allocation3 + $0x88] sm:$0xff]
      %v2580 = vld [vmem:[#allocation3 + $0x90] sm:$0xff]
      %v2581 = vpack.c.bf16 %v2564, %v2563
      %v2582 = vpack.c.bf16 %v2566, %v2565
      %v2583 = vpack.c.bf16 %v2568, %v2567
      %v2584 = vpack.c.bf16 %v2570, %v2569
      %v2585 = vpack.c.bf16 %v2572, %v2571
      %v2586 = vpack.c.bf16 %v2574, %v2573
      %v2587 = vpack.c.bf16 %v2576, %v2575
      %v2588 = vpack.c.bf16 %v2578, %v2577
      %v2589 = vpack.c.bf16 %v2580, %v2579
      %2599 = vrot.lane.b32.xlu0 %v2581, 32
      %v2600 = vpop.permute.xlu0 %2599
      %2601 = vrot.lane.b32.xlu0 %v2582, 32
      %v2602 = vpop.permute.xlu0 %2601
      %2603 = vrot.lane.b32.xlu0 %v2583, 32
      %v2604 = vpop.permute.xlu0 %2603
      %2605 = vrot.lane.b32.xlu0 %v2584, 32
      %v2606 = vpop.permute.xlu0 %2605
      %2607 = vrot.lane.b32.xlu0 %v2585, 32
      %v2608 = vpop.permute.xlu0 %2607
      %2609 = vrot.lane.b32.xlu0 %v2586, 32
      %v2610 = vpop.permute.xlu0 %2609
      %2611 = vrot.lane.b32.xlu0 %v2587, 32
      %v2612 = vpop.permute.xlu0 %2611
      %2613 = vrot.lane.b32.xlu0 %v2588, 32
      %v2614 = vpop.permute.xlu0 %2613
      %2615 = vrot.lane.b32.xlu0 %v2589, 32
      %v2616 = vpop.permute.xlu0 %2615
      %vm2626 = vcmask 523520
      %2627 = vst.msk [vmem:[#allocation4] sm:$0xff] %vm2626, %v2600
      %2628 = vst.msk [vmem:[#allocation4 + $0x18] sm:$0xff] %vm2626, %v2602
      %2629 = vst.msk [vmem:[#allocation4 + $0x30] sm:$0xff] %vm2626, %v2604
      %2630 = vst.msk [vmem:[#allocation4 + $0x48] sm:$0xff] %vm2626, %v2606
      %2631 = vst.msk [vmem:[#allocation4 + $0x60] sm:$0xff] %vm2626, %v2608
      %2632 = vst.msk [vmem:[#allocation4 + $0x78] sm:$0xff] %vm2626, %v2610
      %2633 = vst.msk [vmem:[#allocation4 + $0x90] sm:$0xff] %vm2626, %v2612
      %2634 = vst.msk [vmem:[#allocation4 + $0xa8] sm:$0xff] %vm2626, %v2614
      %2635 = vst.msk [vmem:[#allocation4 + $0xc0] sm:$0xff] %vm2626, %v2616
      %v2636 = vld [vmem:[#allocation3 + $0x9] sm:$0xff]
      %v2637 = vld [vmem:[#allocation3 + $0x11] sm:$0xff]
      %v2638 = vld [vmem:[#allocation3 + $0x19] sm:$0xff]
      %v2639 = vld [vmem:[#allocation3 + $0x21] sm:$0xff]
      %v2640 = vld [vmem:[#allocation3 + $0x29] sm:$0xff]
      %v2641 = vld [vmem:[#allocation3 + $0x31] sm:$0xff]
      %v2642 = vld [vmem:[#allocation3 + $0x39] sm:$0xff]
      %v2643 = vld [vmem:[#allocation3 + $0x41] sm:$0xff]
      %v2644 = vld [vmem:[#allocation3 + $0x49] sm:$0xff]
      %v2645 = vld [vmem:[#allocation3 + $0x51] sm:$0xff]
      %v2646 = vld [vmem:[#allocation3 + $0x59] sm:$0xff]
      %v2647 = vld [vmem:[#allocation3 + $0x61] sm:$0xff]
      %v2648 = vld [vmem:[#allocation3 + $0x69] sm:$0xff]
      %v2649 = vld [vmem:[#allocation3 + $0x71] sm:$0xff]
      %v2650 = vld [vmem:[#allocation3 + $0x79] sm:$0xff]
      %v2651 = vld [vmem:[#allocation3 + $0x81] sm:$0xff]
      %v2652 = vld [vmem:[#allocation3 + $0x89] sm:$0xff]
      %v2653 = vld [vmem:[#allocation3 + $0x91] sm:$0xff]
      %v2654 = vpack.c.bf16 %v2637, %v2636
      %v2655 = vpack.c.bf16 %v2639, %v2638
      %v2656 = vpack.c.bf16 %v2641, %v2640
      %v2657 = vpack.c.bf16 %v2643, %v2642
      %v2658 = vpack.c.bf16 %v2645, %v2644
      %v2659 = vpack.c.bf16 %v2647, %v2646
      %v2660 = vpack.c.bf16 %v2649, %v2648
      %v2661 = vpack.c.bf16 %v2651, %v2650
      %v2662 = vpack.c.bf16 %v2653, %v2652
      %2672 = vrot.lane.b32.xlu0 %v2654, 64
      %v2673 = vpop.permute.xlu0 %2672
      %2674 = vrot.lane.b32.xlu0 %v2655, 64
      %v2675 = vpop.permute.xlu0 %2674
      %2676 = vrot.lane.b32.xlu0 %v2656, 64
      %v2677 = vpop.permute.xlu0 %2676
      %2678 = vrot.lane.b32.xlu0 %v2657, 64
      %v2679 = vpop.permute.xlu0 %2678
      %2680 = vrot.lane.b32.xlu0 %v2658, 64
      %v2681 = vpop.permute.xlu0 %2680
      %2682 = vrot.lane.b32.xlu0 %v2659, 64
      %v2683 = vpop.permute.xlu0 %2682
      %2684 = vrot.lane.b32.xlu0 %v2660, 64
      %v2685 = vpop.permute.xlu0 %2684
      %2686 = vrot.lane.b32.xlu0 %v2661, 64
      %v2687 = vpop.permute.xlu0 %2686
      %2688 = vrot.lane.b32.xlu0 %v2662, 64
      %v2689 = vpop.permute.xlu0 %2688
      %vm2699 = vcmask 785920
      %2700 = vst.msk [vmem:[#allocation4] sm:$0xff] %vm2699, %v2673
      %2701 = vst.msk [vmem:[#allocation4 + $0x18] sm:$0xff] %vm2699, %v2675
      %2702 = vst.msk [vmem:[#allocation4 + $0x30] sm:$0xff] %vm2699, %v2677
      %2703 = vst.msk [vmem:[#allocation4 + $0x48] sm:$0xff] %vm2699, %v2679
      %2704 = vst.msk [vmem:[#allocation4 + $0x60] sm:$0xff] %vm2699, %v2681
      %2705 = vst.msk [vmem:[#allocation4 + $0x78] sm:$0xff] %vm2699, %v2683
      %2706 = vst.msk [vmem:[#allocation4 + $0x90] sm:$0xff] %vm2699, %v2685
      %2707 = vst.msk [vmem:[#allocation4 + $0xa8] sm:$0xff] %vm2699, %v2687
      %2708 = vst.msk [vmem:[#allocation4 + $0xc0] sm:$0xff] %vm2699, %v2689
      %v2709 = vld [vmem:[#allocation3 + $0x19] sm:$0xff]
      %v2710 = vld [vmem:[#allocation3 + $0x21] sm:$0xff]
      %v2711 = vld [vmem:[#allocation3 + $0x29] sm:$0xff]
      %v2712 = vld [vmem:[#allocation3 + $0x31] sm:$0xff]
      %v2713 = vld [vmem:[#allocation3 + $0x39] sm:$0xff]
      %v2714 = vld [vmem:[#allocation3 + $0x41] sm:$0xff]
      %v2715 = vld [vmem:[#allocation3 + $0x49] sm:$0xff]
      %v2716 = vld [vmem:[#allocation3 + $0x51] sm:$0xff]
      %v2717 = vld [vmem:[#allocation3 + $0x59] sm:$0xff]
      %v2718 = vld [vmem:[#allocation3 + $0x61] sm:$0xff]
      %v2719 = vld [vmem:[#allocation3 + $0x69] sm:$0xff]
      %v2720 = vld [vmem:[#allocation3 + $0x71] sm:$0xff]
      %v2721 = vld [vmem:[#allocation3 + $0x79] sm:$0xff]
      %v2722 = vld [vmem:[#allocation3 + $0x81] sm:$0xff]
      %v2723 = vld [vmem:[#allocation3 + $0x89] sm:$0xff]
      %v2724 = vld [vmem:[#allocation3 + $0x91] sm:$0xff]
      %v2725 = vld [vmem:[#allocation3 + $0x99] sm:$0xff]
      %v2726 = vld [vmem:[#allocation3 + $0xa1] sm:$0xff]
      %v2727 = vpack.c.bf16 %v2710, %v2709
      %v2728 = vpack.c.bf16 %v2712, %v2711
      %v2729 = vpack.c.bf16 %v2714, %v2713
      %v2730 = vpack.c.bf16 %v2716, %v2715
      %v2731 = vpack.c.bf16 %v2718, %v2717
      %v2732 = vpack.c.bf16 %v2720, %v2719
      %v2733 = vpack.c.bf16 %v2722, %v2721
      %v2734 = vpack.c.bf16 %v2724, %v2723
      %v2735 = vpack.c.bf16 %v2726, %v2725
      %2745 = vrot.lane.b32.xlu0 %v2727, 96
      %v2746 = vpop.permute.xlu0 %2745
      %2747 = vrot.lane.b32.xlu0 %v2728, 96
      %v2748 = vpop.permute.xlu0 %2747
      %2749 = vrot.lane.b32.xlu0 %v2729, 96
      %v2750 = vpop.permute.xlu0 %2749
      %2751 = vrot.lane.b32.xlu0 %v2730, 96
      %v2752 = vpop.permute.xlu0 %2751
      %2753 = vrot.lane.b32.xlu0 %v2731, 96
      %v2754 = vpop.permute.xlu0 %2753
      %2755 = vrot.lane.b32.xlu0 %v2732, 96
      %v2756 = vpop.permute.xlu0 %2755
      %2757 = vrot.lane.b32.xlu0 %v2733, 96
      %v2758 = vpop.permute.xlu0 %2757
      %2759 = vrot.lane.b32.xlu0 %v2734, 96
      %v2760 = vpop.permute.xlu0 %2759
      %2761 = vrot.lane.b32.xlu0 %v2735, 96
      %v2762 = vpop.permute.xlu0 %2761
      %vm2772 = vcmask 1048320
      %2773 = vst.msk [vmem:[#allocation4] sm:$0xff] %vm2772, %v2746
      %2774 = vst.msk [vmem:[#allocation4 + $0x18] sm:$0xff] %vm2772, %v2748
      %2775 = vst.msk [vmem:[#allocation4 + $0x30] sm:$0xff] %vm2772, %v2750
      %2776 = vst.msk [vmem:[#allocation4 + $0x48] sm:$0xff] %vm2772, %v2752
      %2777 = vst.msk [vmem:[#allocation4 + $0x60] sm:$0xff] %vm2772, %v2754
      %2778 = vst.msk [vmem:[#allocation4 + $0x78] sm:$0xff] %vm2772, %v2756
      %2779 = vst.msk [vmem:[#allocation4 + $0x90] sm:$0xff] %vm2772, %v2758
      %2780 = vst.msk [vmem:[#allocation4 + $0xa8] sm:$0xff] %vm2772, %v2760
      %2781 = vst.msk [vmem:[#allocation4 + $0xc0] sm:$0xff] %vm2772, %v2762
      %v2782 = vld [vmem:[#allocation3 + $0x1a] sm:$0xff]
      %v2783 = vld [vmem:[#allocation3 + $0x22] sm:$0xff]
      %v2784 = vld [vmem:[#allocation3 + $0x2a] sm:$0xff]
      %v2785 = vld [vmem:[#allocation3 + $0x32] sm:$0xff]
      %v2786 = vld [vmem:[#allocation3 + $0x3a] sm:$0xff]
      %v2787 = vld [vmem:[#allocation3 + $0x42] sm:$0xff]
      %v2788 = vld [vmem:[#allocation3 + $0x4a] sm:$0xff]
      %v2789 = vld [vmem:[#allocation3 + $0x52] sm:$0xff]
      %v2790 = vld [vmem:[#allocation3 + $0x5a] sm:$0xff]
      %v2791 = vld [vmem:[#allocation3 + $0x62] sm:$0xff]
      %v2792 = vld [vmem:[#allocation3 + $0x6a] sm:$0xff]
      %v2793 = vld [vmem:[#allocation3 + $0x72] sm:$0xff]
      %v2794 = vld [vmem:[#allocation3 + $0x7a] sm:$0xff]
      %v2795 = vld [vmem:[#allocation3 + $0x82] sm:$0xff]
      %v2796 = vld [vmem:[#allocation3 + $0x8a] sm:$0xff]
      %v2797 = vld [vmem:[#allocation3 + $0x92] sm:$0xff]
      %v2798 = vld [vmem:[#allocation3 + $0x9a] sm:$0xff]
      %v2799 = vld [vmem:[#allocation3 + $0xa2] sm:$0xff]
      %v2800 = vpack.c.bf16 %v2783, %v2782
      %v2801 = vpack.c.bf16 %v2785, %v2784
      %v2802 = vpack.c.bf16 %v2787, %v2786
      %v2803 = vpack.c.bf16 %v2789, %v2788
      %v2804 = vpack.c.bf16 %v2791, %v2790
      %v2805 = vpack.c.bf16 %v2793, %v2792
      %v2806 = vpack.c.bf16 %v2795, %v2794
      %v2807 = vpack.c.bf16 %v2797, %v2796
      %v2808 = vpack.c.bf16 %v2799, %v2798
      %2809 = vst.msk [vmem:[#allocation4 + $0x8] sm:$0xff] %vm2500, %v2800
      %2810 = vst.msk [vmem:[#allocation4 + $0x20] sm:$0xff] %vm2500, %v2801
      %2811 = vst.msk [vmem:[#allocation4 + $0x38] sm:$0xff] %vm2500, %v2802
      %2812 = vst.msk [vmem:[#allocation4 + $0x50] sm:$0xff] %vm2500, %v2803
      %2813 = vst.msk [vmem:[#allocation4 + $0x68] sm:$0xff] %vm2500, %v2804
      %2814 = vst.msk [vmem:[#allocation4 + $0x80] sm:$0xff] %vm2500, %v2805
      %2815 = vst.msk [vmem:[#allocation4 + $0x98] sm:$0xff] %vm2500, %v2806
      %2816 = vst.msk [vmem:[#allocation4 + $0xb0] sm:$0xff] %vm2500, %v2807
      %2817 = vst.msk [vmem:[#allocation4 + $0xc8] sm:$0xff] %vm2500, %v2808
      %v2818 = vld [vmem:[#allocation3 + $0x1b] sm:$0xff]
      %v2819 = vld [vmem:[#allocation3 + $0x23] sm:$0xff]
      %v2820 = vld [vmem:[#allocation3 + $0x2b] sm:$0xff]
      %v2821 = vld [vmem:[#allocation3 + $0x33] sm:$0xff]
      %v2822 = vld [vmem:[#allocation3 + $0x3b] sm:$0xff]
      %v2823 = vld [vmem:[#allocation3 + $0x43] sm:$0xff]
      %v2824 = vld [vmem:[#allocation3 + $0x4b] sm:$0xff]
      %v2825 = vld [vmem:[#allocation3 + $0x53] sm:$0xff]
      %v2826 = vld [vmem:[#allocation3 + $0x5b] sm:$0xff]
      %v2827 = vld [vmem:[#allocation3 + $0x63] sm:$0xff]
      %v2828 = vld [vmem:[#allocation3 + $0x6b] sm:$0xff]
      %v2829 = vld [vmem:[#allocation3 + $0x73] sm:$0xff]
      %v2830 = vld [vmem:[#allocation3 + $0x7b] sm:$0xff]
      %v2831 = vld [vmem:[#allocation3 + $0x83] sm:$0xff]
      %v2832 = vld [vmem:[#allocation3 + $0x8b] sm:$0xff]
      %v2833 = vld [vmem:[#allocation3 + $0x93] sm:$0xff]
      %v2834 = vld [vmem:[#allocation3 + $0x9b] sm:$0xff]
      %v2835 = vld [vmem:[#allocation3 + $0xa3] sm:$0xff]
      %v2836 = vpack.c.bf16 %v2819, %v2818
      %v2837 = vpack.c.bf16 %v2821, %v2820
      %v2838 = vpack.c.bf16 %v2823, %v2822
      %v2839 = vpack.c.bf16 %v2825, %v2824
      %v2840 = vpack.c.bf16 %v2827, %v2826
      %v2841 = vpack.c.bf16 %v2829, %v2828
      %v2842 = vpack.c.bf16 %v2831, %v2830
      %v2843 = vpack.c.bf16 %v2833, %v2832
      %v2844 = vpack.c.bf16 %v2835, %v2834
      %2854 = vrot.lane.b32.xlu0 %v2836, 32
      %v2855 = vpop.permute.xlu0 %2854
      %2856 = vrot.lane.b32.xlu0 %v2837, 32
      %v2857 = vpop.permute.xlu0 %2856
      %2858 = vrot.lane.b32.xlu0 %v2838, 32
      %v2859 = vpop.permute.xlu0 %2858
      %2860 = vrot.lane.b32.xlu0 %v2839, 32
      %v2861 = vpop.permute.xlu0 %2860
      %2862 = vrot.lane.b32.xlu0 %v2840, 32
      %v2863 = vpop.permute.xlu0 %2862
      %2864 = vrot.lane.b32.xlu0 %v2841, 32
      %v2865 = vpop.permute.xlu0 %2864
      %2866 = vrot.lane.b32.xlu0 %v2842, 32
      %v2867 = vpop.permute.xlu0 %2866
      %2868 = vrot.lane.b32.xlu0 %v2843, 32
      %v2869 = vpop.permute.xlu0 %2868
      %2870 = vrot.lane.b32.xlu0 %v2844, 32
      %v2871 = vpop.permute.xlu0 %2870
      %2881 = vst.msk [vmem:[#allocation4 + $0x8] sm:$0xff] %vm2626, %v2855
      %2882 = vst.msk [vmem:[#allocation4 + $0x20] sm:$0xff] %vm2626, %v2857
      %2883 = vst.msk [vmem:[#allocation4 + $0x38] sm:$0xff] %vm2626, %v2859
      %2884 = vst.msk [vmem:[#allocation4 + $0x50] sm:$0xff] %vm2626, %v2861
      %2885 = vst.msk [vmem:[#allocation4 + $0x68] sm:$0xff] %vm2626, %v2863
      %2886 = vst.msk [vmem:[#allocation4 + $0x80] sm:$0xff] %vm2626, %v2865
      %2887 = vst.msk [vmem:[#allocation4 + $0x98] sm:$0xff] %vm2626, %v2867
      %2888 = vst.msk [vmem:[#allocation4 + $0xb0] sm:$0xff] %vm2626, %v2869
      %2889 = vst.msk [vmem:[#allocation4 + $0xc8] sm:$0xff] %vm2626, %v2871
      %v2890 = vld [vmem:[#allocation3 + $0x2b] sm:$0xff]
      %v2891 = vld [vmem:[#allocation3 + $0x33] sm:$0xff]
      %v2892 = vld [vmem:[#allocation3 + $0x3b] sm:$0xff]
      %v2893 = vld [vmem:[#allocation3 + $0x43] sm:$0xff]
      %v2894 = vld [vmem:[#allocation3 + $0x4b] sm:$0xff]
      %v2895 = vld [vmem:[#allocation3 + $0x53] sm:$0xff]
      %v2896 = vld [vmem:[#allocation3 + $0x5b] sm:$0xff]
      %v2897 = vld [vmem:[#allocation3 + $0x63] sm:$0xff]
      %v2898 = vld [vmem:[#allocation3 + $0x6b] sm:$0xff]
      %v2899 = vld [vmem:[#allocation3 + $0x73] sm:$0xff]
      %v2900 = vld [vmem:[#allocation3 + $0x7b] sm:$0xff]
      %v2901 = vld [vmem:[#allocation3 + $0x83] sm:$0xff]
      %v2902 = vld [vmem:[#allocation3 + $0x8b] sm:$0xff]
      %v2903 = vld [vmem:[#allocation3 + $0x93] sm:$0xff]
      %v2904 = vld [vmem:[#allocation3 + $0x9b] sm:$0xff]
      %v2905 = vld [vmem:[#allocation3 + $0xa3] sm:$0xff]
      %v2906 = vld [vmem:[#allocation3 + $0xab] sm:$0xff]
      %v2907 = vld [vmem:[#allocation3 + $0xb3] sm:$0xff]
      %v2908 = vpack.c.bf16 %v2891, %v2890
      %v2909 = vpack.c.bf16 %v2893, %v2892
      %v2910 = vpack.c.bf16 %v2895, %v2894
      %v2911 = vpack.c.bf16 %v2897, %v2896
      %v2912 = vpack.c.bf16 %v2899, %v2898
      %v2913 = vpack.c.bf16 %v2901, %v2900
      %v2914 = vpack.c.bf16 %v2903, %v2902
      %v2915 = vpack.c.bf16 %v2905, %v2904
      %v2916 = vpack.c.bf16 %v2907, %v2906
      %2926 = vrot.lane.b32.xlu0 %v2908, 64
      %v2927 = vpop.permute.xlu0 %2926
      %2928 = vrot.lane.b32.xlu0 %v2909, 64
      %v2929 = vpop.permute.xlu0 %2928
      %2930 = vrot.lane.b32.xlu0 %v2910, 64
      %v2931 = vpop.permute.xlu0 %2930
      %2932 = vrot.lane.b32.xlu0 %v2911, 64
      %v2933 = vpop.permute.xlu0 %2932
      %2934 = vrot.lane.b32.xlu0 %v2912, 64
      %v2935 = vpop.permute.xlu0 %2934
      %2936 = vrot.lane.b32.xlu0 %v2913, 64
      %v2937 = vpop.permute.xlu0 %2936
      %2938 = vrot.lane.b32.xlu0 %v2914, 64
      %v2939 = vpop.permute.xlu0 %2938
      %2940 = vrot.lane.b32.xlu0 %v2915, 64
      %v2941 = vpop.permute.xlu0 %2940
      %2942 = vrot.lane.b32.xlu0 %v2916, 64
      %v2943 = vpop.permute.xlu0 %2942
      %2953 = vst.msk [vmem:[#allocation4 + $0x8] sm:$0xff] %vm2699, %v2927
      %2954 = vst.msk [vmem:[#allocation4 + $0x20] sm:$0xff] %vm2699, %v2929
      %2955 = vst.msk [vmem:[#allocation4 + $0x38] sm:$0xff] %vm2699, %v2931
      %2956 = vst.msk [vmem:[#allocation4 + $0x50] sm:$0xff] %vm2699, %v2933
      %2957 = vst.msk [vmem:[#allocation4 + $0x68] sm:$0xff] %vm2699, %v2935
      %2958 = vst.msk [vmem:[#allocation4 + $0x80] sm:$0xff] %vm2699, %v2937
      %2959 = vst.msk [vmem:[#allocation4 + $0x98] sm:$0xff] %vm2699, %v2939
      %2960 = vst.msk [vmem:[#allocation4 + $0xb0] sm:$0xff] %vm2699, %v2941
      %2961 = vst.msk [vmem:[#allocation4 + $0xc8] sm:$0xff] %vm2699, %v2943
      %v2962 = vld [vmem:[#allocation3 + $0x2c] sm:$0xff]
      %v2963 = vld [vmem:[#allocation3 + $0x34] sm:$0xff]
      %v2964 = vld [vmem:[#allocation3 + $0x3c] sm:$0xff]
      %v2965 = vld [vmem:[#allocation3 + $0x44] sm:$0xff]
      %v2966 = vld [vmem:[#allocation3 + $0x4c] sm:$0xff]
      %v2967 = vld [vmem:[#allocation3 + $0x54] sm:$0xff]
      %v2968 = vld [vmem:[#allocation3 + $0x5c] sm:$0xff]
      %v2969 = vld [vmem:[#allocation3 + $0x64] sm:$0xff]
      %v2970 = vld [vmem:[#allocation3 + $0x6c] sm:$0xff]
      %v2971 = vld [vmem:[#allocation3 + $0x74] sm:$0xff]
      %v2972 = vld [vmem:[#allocation3 + $0x7c] sm:$0xff]
      %v2973 = vld [vmem:[#allocation3 + $0x84] sm:$0xff]
      %v2974 = vld [vmem:[#allocation3 + $0x8c] sm:$0xff]
      %v2975 = vld [vmem:[#allocation3 + $0x94] sm:$0xff]
      %v2976 = vld [vmem:[#allocation3 + $0x9c] sm:$0xff]
      %v2977 = vld [vmem:[#allocation3 + $0xa4] sm:$0xff]
      %v2978 = vld [vmem:[#allocation3 + $0xac] sm:$0xff]
      %v2979 = vld [vmem:[#allocation3 + $0xb4] sm:$0xff]
      %v2980 = vpack.c.bf16 %v2963, %v2962
      %v2981 = vpack.c.bf16 %v2965, %v2964
      %v2982 = vpack.c.bf16 %v2967, %v2966
      %v2983 = vpack.c.bf16 %v2969, %v2968
      %v2984 = vpack.c.bf16 %v2971, %v2970
      %v2985 = vpack.c.bf16 %v2973, %v2972
      %v2986 = vpack.c.bf16 %v2975, %v2974
      %v2987 = vpack.c.bf16 %v2977, %v2976
      %v2988 = vpack.c.bf16 %v2979, %v2978
      %2998 = vrot.lane.b32.xlu0 %v2980, 96
      %v2999 = vpop.permute.xlu0 %2998
      %3000 = vrot.lane.b32.xlu0 %v2981, 96
      %v3001 = vpop.permute.xlu0 %3000
      %3002 = vrot.lane.b32.xlu0 %v2982, 96
      %v3003 = vpop.permute.xlu0 %3002
      %3004 = vrot.lane.b32.xlu0 %v2983, 96
      %v3005 = vpop.permute.xlu0 %3004
      %3006 = vrot.lane.b32.xlu0 %v2984, 96
      %v3007 = vpop.permute.xlu0 %3006
      %3008 = vrot.lane.b32.xlu0 %v2985, 96
      %v3009 = vpop.permute.xlu0 %3008
      %3010 = vrot.lane.b32.xlu0 %v2986, 96
      %v3011 = vpop.permute.xlu0 %3010
      %3012 = vrot.lane.b32.xlu0 %v2987, 96
      %v3013 = vpop.permute.xlu0 %3012
      %3014 = vrot.lane.b32.xlu0 %v2988, 96
      %v3015 = vpop.permute.xlu0 %3014
      %3025 = vst.msk [vmem:[#allocation4 + $0x8] sm:$0xff] %vm2772, %v2999
      %3026 = vst.msk [vmem:[#allocation4 + $0x20] sm:$0xff] %vm2772, %v3001
      %3027 = vst.msk [vmem:[#allocation4 + $0x38] sm:$0xff] %vm2772, %v3003
      %3028 = vst.msk [vmem:[#allocation4 + $0x50] sm:$0xff] %vm2772, %v3005
      %3029 = vst.msk [vmem:[#allocation4 + $0x68] sm:$0xff] %vm2772, %v3007
      %3030 = vst.msk [vmem:[#allocation4 + $0x80] sm:$0xff] %vm2772, %v3009
      %3031 = vst.msk [vmem:[#allocation4 + $0x98] sm:$0xff] %vm2772, %v3011
      %3032 = vst.msk [vmem:[#allocation4 + $0xb0] sm:$0xff] %vm2772, %v3013
      %3033 = vst.msk [vmem:[#allocation4 + $0xc8] sm:$0xff] %vm2772, %v3015
      %v3034 = vld [vmem:[#allocation3 + $0x2d] sm:$0xff]
      %v3035 = vld [vmem:[#allocation3 + $0x35] sm:$0xff]
      %v3036 = vld [vmem:[#allocation3 + $0x3d] sm:$0xff]
      %v3037 = vld [vmem:[#allocation3 + $0x45] sm:$0xff]
      %v3038 = vld [vmem:[#allocation3 + $0x4d] sm:$0xff]
      %v3039 = vld [vmem:[#allocation3 + $0x55] sm:$0xff]
      %v3040 = vld [vmem:[#allocation3 + $0x5d] sm:$0xff]
      %v3041 = vld [vmem:[#allocation3 + $0x65] sm:$0xff]
      %v3042 = vld [vmem:[#allocation3 + $0x6d] sm:$0xff]
      %v3043 = vld [vmem:[#allocation3 + $0x75] sm:$0xff]
      %v3044 = vld [vmem:[#allocation3 + $0x7d] sm:$0xff]
      %v3045 = vld [vmem:[#allocation3 + $0x85] sm:$0xff]
      %v3046 = vld [vmem:[#allocation3 + $0x8d] sm:$0xff]
      %v3047 = vld [vmem:[#allocation3 + $0x95] sm:$0xff]
      %v3048 = vld [vmem:[#allocation3 + $0x9d] sm:$0xff]
      %v3049 = vld [vmem:[#allocation3 + $0xa5] sm:$0xff]
      %v3050 = vld [vmem:[#allocation3 + $0xad] sm:$0xff]
      %v3051 = vld [vmem:[#allocation3 + $0xb5] sm:$0xff]
      %v3052 = vpack.c.bf16 %v3035, %v3034
      %v3053 = vpack.c.bf16 %v3037, %v3036
      %v3054 = vpack.c.bf16 %v3039, %v3038
      %v3055 = vpack.c.bf16 %v3041, %v3040
      %v3056 = vpack.c.bf16 %v3043, %v3042
      %v3057 = vpack.c.bf16 %v3045, %v3044
      %v3058 = vpack.c.bf16 %v3047, %v3046
      %v3059 = vpack.c.bf16 %v3049, %v3048
      %v3060 = vpack.c.bf16 %v3051, %v3050
      %3061 = vst.msk [vmem:[#allocation4 + $0x10] sm:$0xff] %vm2500, %v3052
      %3062 = vst.msk [vmem:[#allocation4 + $0x28] sm:$0xff] %vm2500, %v3053
      %3063 = vst.msk [vmem:[#allocation4 + $0x40] sm:$0xff] %vm2500, %v3054
      %3064 = vst.msk [vmem:[#allocation4 + $0x58] sm:$0xff] %vm2500, %v3055
      %3065 = vst.msk [vmem:[#allocation4 + $0x70] sm:$0xff] %vm2500, %v3056
      %3066 = vst.msk [vmem:[#allocation4 + $0x88] sm:$0xff] %vm2500, %v3057
      %3067 = vst.msk [vmem:[#allocation4 + $0xa0] sm:$0xff] %vm2500, %v3058
      %3068 = vst.msk [vmem:[#allocation4 + $0xb8] sm:$0xff] %vm2500, %v3059
      %3069 = vst.msk [vmem:[#allocation4 + $0xd0] sm:$0xff] %vm2500, %v3060
      %v3070 = vld [vmem:[#allocation4] sm:$0xff]
      %v3071 = vld [vmem:[#allocation4 + $0x8] sm:$0xff]
      %v3072 = vld [vmem:[#allocation4 + $0x10] sm:$0xff]
      %v3073 = vld [vmem:[#allocation4 + $0x18] sm:$0xff]
      %v3074 = vld [vmem:[#allocation4 + $0x20] sm:$0xff]
      %v3075 = vld [vmem:[#allocation4 + $0x28] sm:$0xff]
      %v3076 = vld [vmem:[#allocation4 + $0x30] sm:$0xff]
      %v3077 = vld [vmem:[#allocation4 + $0x38] sm:$0xff]
      %v3078 = vld [vmem:[#allocation4 + $0x40] sm:$0xff]
      %v3079 = vld [vmem:[#allocation4 + $0x48] sm:$0xff]
      %v3080 = vld [vmem:[#allocation4 + $0x50] sm:$0xff]
      %v3081 = vld [vmem:[#allocation4 + $0x58] sm:$0xff]
      %v3082 = vld [vmem:[#allocation4 + $0x60] sm:$0xff]
      %v3083 = vld [vmem:[#allocation4 + $0x68] sm:$0xff]
      %v3084 = vld [vmem:[#allocation4 + $0x70] sm:$0xff]
      %v3085 = vld [vmem:[#allocation4 + $0x78] sm:$0xff]
      %v3086 = vld [vmem:[#allocation4 + $0x80] sm:$0xff]
      %v3087 = vld [vmem:[#allocation4 + $0x88] sm:$0xff]
      %v3088 = vld [vmem:[#allocation4 + $0x90] sm:$0xff]
      %v3089 = vld [vmem:[#allocation4 + $0x98] sm:$0xff]
      %v3090 = vld [vmem:[#allocation4 + $0xa0] sm:$0xff]
      %v3091 = vld [vmem:[#allocation4 + $0xa8] sm:$0xff]
      %v3092 = vld [vmem:[#allocation4 + $0xb0] sm:$0xff]
      %v3093 = vld [vmem:[#allocation4 + $0xb8] sm:$0xff]
      %v3094 = vld [vmem:[#allocation4 + $0xc0] sm:$0xff]
      %v3095 = vld [vmem:[#allocation4 + $0xc8] sm:$0xff]
      %v3096 = vld [vmem:[#allocation4 + $0xd0] sm:$0xff]
      %v3097 = vld [vmem:[%s5] sm:$0xf]
      %v3098 = vld [vmem:[%s5 + $0x4] sm:$0xf]
      %v3099 = vld [vmem:[%s5 + $0x8] sm:$0xf]
      %v3100 = vld [vmem:[%s5 + $0xc] sm:$0xf]
      %v3101 = vld [vmem:[%s5 + $0x10] sm:$0xf]
      %v3102 = vld [vmem:[%s5 + $0x14] sm:$0xf]
      %v3103 = vld [vmem:[%s5 + $0x18] sm:$0xf]
      %v3104 = vld [vmem:[%s5 + $0x1c] sm:$0xf]
      %v3105 = vld [vmem:[%s5 + $0x20] sm:$0xf]
      %v3106 = vld [vmem:[%s5 + $0x24] sm:$0xf]
      %v3107 = vld [vmem:[%s5 + $0x28] sm:$0xf]
      %v3108 = vld [vmem:[%s5 + $0x2c] sm:$0xf]
      %v3109 = vld [vmem:[%s5 + $0x30] sm:$0xf]
      %v3110 = vld [vmem:[%s5 + $0x34] sm:$0xf]
      %v3111 = vld [vmem:[%s5 + $0x38] sm:$0xf]
      %v3112 = vld [vmem:[%s5 + $0x3c] sm:$0xf]
      %v3113 = vld [vmem:[%s5 + $0x40] sm:$0xf]
      %v3114 = vld [vmem:[%s5 + $0x44] sm:$0xf]
      %v3115 = vld [vmem:[%s5 + $0x48] sm:$0xf]
      %v3116 = vld [vmem:[%s5 + $0x4c] sm:$0xf]
      %v3117 = vld [vmem:[%s5 + $0x50] sm:$0xf]
      %v3118 = vld [vmem:[%s5 + $0x54] sm:$0xf]
      %v3119 = vld [vmem:[%s5 + $0x58] sm:$0xf]
      %v3120 = vld [vmem:[%s5 + $0x5c] sm:$0xf]
      %v3121 = vld [vmem:[%s5 + $0x60] sm:$0xf]
      %v3122 = vld [vmem:[%s5 + $0x64] sm:$0xf]
      %v3123 = vld [vmem:[%s5 + $0x68] sm:$0xf]
      %v3124 = vld [vmem:[%s5 + $0x6c] sm:$0xf]
      %v3125 = vld [vmem:[%s5 + $0x70] sm:$0xf]
      %v3126 = vld [vmem:[%s5 + $0x74] sm:$0xf]
      %v3127 = vld [vmem:[%s5 + $0x78] sm:$0xf]
      %v3128 = vld [vmem:[%s5 + $0x7c] sm:$0xf]
      %v3129 = vld [vmem:[%s5 + $0x80] sm:$0xf]
      %v3130 = vld [vmem:[%s5 + $0x84] sm:$0xf]
      %v3131 = vld [vmem:[%s5 + $0x88] sm:$0xf]
      %v3132 = vld [vmem:[%s5 + $0x8c] sm:$0xf]
      %v3169 = vunpack.c.l.b16 %v3097
      %v3170 = vunpack.c.l.b16 %v3098
      %v3171 = vunpack.c.l.b16 %v3099
      %v3172 = vunpack.c.l.b16 %v3100
      %v3173 = vunpack.c.l.b16 %v3101
      %v3174 = vunpack.c.l.b16 %v3102
      %v3175 = vunpack.c.l.b16 %v3103
      %v3176 = vunpack.c.l.b16 %v3104
      %v3177 = vunpack.c.l.b16 %v3105
      %v3178 = vunpack.c.l.b16 %v3106
      %v3179 = vunpack.c.l.b16 %v3107
      %v3180 = vunpack.c.l.b16 %v3108
      %v3181 = vunpack.c.l.b16 %v3109
      %v3182 = vunpack.c.l.b16 %v3110
      %v3183 = vunpack.c.l.b16 %v3111
      %v3184 = vunpack.c.l.b16 %v3112
      %v3185 = vunpack.c.l.b16 %v3113
      %v3186 = vunpack.c.l.b16 %v3114
      %v3187 = vunpack.c.l.b16 %v3115
      %v3188 = vunpack.c.l.b16 %v3116
      %v3189 = vunpack.c.l.b16 %v3117
      %v3190 = vunpack.c.l.b16 %v3118
      %v3191 = vunpack.c.l.b16 %v3119
      %v3192 = vunpack.c.l.b16 %v3120
      %v3193 = vunpack.c.l.b16 %v3121
      %v3194 = vunpack.c.l.b16 %v3122
      %v3195 = vunpack.c.l.b16 %v3123
      %v3196 = vunpack.c.l.b16 %v3124
      %v3197 = vunpack.c.l.b16 %v3125
      %v3198 = vunpack.c.l.b16 %v3126
      %v3199 = vunpack.c.l.b16 %v3127
      %v3200 = vunpack.c.l.b16 %v3128
      %v3201 = vunpack.c.l.b16 %v3129
      %v3202 = vunpack.c.l.b16 %v3130
      %v3203 = vunpack.c.l.b16 %v3131
      %v3204 = vunpack.c.l.b16 %v3132
      %v3205 = vpack.c.b16 %v3170, %v3169
      %v3206 = vpack.c.b16 %v3172, %v3171
      %v3207 = vpack.c.b16 %v3174, %v3173
      %v3208 = vpack.c.b16 %v3176, %v3175
      %v3209 = vpack.c.b16 %v3178, %v3177
      %v3210 = vpack.c.b16 %v3180, %v3179
      %v3211 = vpack.c.b16 %v3182, %v3181
      %v3212 = vpack.c.b16 %v3184, %v3183
      %v3213 = vpack.c.b16 %v3186, %v3185
      %v3214 = vpack.c.b16 %v3188, %v3187
      %v3215 = vpack.c.b16 %v3190, %v3189
      %v3216 = vpack.c.b16 %v3192, %v3191
      %v3217 = vpack.c.b16 %v3194, %v3193
      %v3218 = vpack.c.b16 %v3196, %v3195
      %v3219 = vpack.c.b16 %v3198, %v3197
      %v3220 = vpack.c.b16 %v3200, %v3199
      %v3221 = vpack.c.b16 %v3202, %v3201
      %v3222 = vpack.c.b16 %v3204, %v3203
      %v3242 = vsel %vm2500, %v3072, 0
      %v3245 = vsel %vm2500, %v3075, 0
      %v3248 = vsel %vm2500, %v3078, 0
      %v3251 = vsel %vm2500, %v3081, 0
      %v3254 = vsel %vm2500, %v3084, 0
      %v3257 = vsel %vm2500, %v3087, 0
      %v3260 = vsel %vm2500, %v3090, 0
      %v3263 = vsel %vm2500, %v3093, 0
      %v3266 = vsel %vm2500, %v3096, 0
      %3268 = vmatprep.subr.bf16.mxu0 0
      %3269 = vmatpush1.bf16.msra.mxu0 %v3205
      %3270 = vmatprep.subr.bf16.mxu0 0
      %3271 = vmatpush1.bf16.msra.mxu0 %v3206
      %3272 = vmatprep.subr.bf16.mxu0 0
      %3273 = vmatpush1.bf16.msra.mxu0 %v3207
      %3274 = vmatprep.subr.bf16.mxu0 0
      %3275 = vmatpush1.bf16.msra.mxu0 %v3208
      %3276 = vmatprep.subr.bf16.mxu0 0
      %3277 = vmatpush1.bf16.msra.mxu0 %v3209
      %3278 = vmatprep.subr.bf16.mxu0 0
      %3279 = vmatpush1.bf16.msra.mxu0 %v3210
      %3280 = vmatprep.subr.bf16.mxu0 0
      %3281 = vmatpush1.bf16.msra.mxu0 %v3211
      %3282 = vmatprep.subr.bf16.mxu0 0
      %3283 = vmatpush1.bf16.msra.mxu0 %v3212
      %3284 = vmatprep.subr.bf16.mxu0 0
      %3285 = vmatpush1.bf16.msra.mxu0 %v3213
      %3286 = vmatprep.subr.bf16.mxu0 0
      %3287 = vmatpush1.bf16.msra.mxu0 %v3214
      %3288 = vmatprep.subr.bf16.mxu0 0
      %3289 = vmatpush1.bf16.msra.mxu0 %v3215
      %3290 = vmatprep.subr.bf16.mxu0 0
      %3291 = vmatpush1.bf16.msra.mxu0 %v3216
      %3292 = vmatprep.subr.bf16.mxu0 0
      %3293 = vmatpush1.bf16.msra.mxu0 %v3217
      %3294 = vmatprep.subr.bf16.mxu0 0
      %3295 = vmatpush1.bf16.msra.mxu0 %v3218
      %3296 = vmatprep.subr.bf16.mxu0 0
      %3297 = vmatpush1.bf16.msra.mxu0 %v3219
      %3298 = vmatprep.subr.bf16.mxu0 0
      %3299 = vmatpush1.bf16.msra.mxu0 %v3220
      %3300 = vmatprep.mubr.bf16.mxu0 %v3071
      %3301 = vmatmul.mubr.bf16.gmra.mrb[0].mxu0 %v3070
      %v3302 = vpop.f32.mrb[0].mxu0
      %v3303 = vadd.f32 0.0, %v3302
      %v3304 = vpop.f32.mrb[0].mxu0
      %v3305 = vpop.f32.mrb[0].mxu0
      %v3306 = vadd.f32 0.0, %v3305
      %v3307 = vpop.f32.mrb[0].mxu0
      %3308 = vmatprep.mubr.bf16.mxu0 %v3074
      %3309 = vmatmul.mubr.bf16.gmra.mrb[0].mxu0 %v3073
      %v3310 = vpop.f32.mrb[0].mxu0
      %v3311 = vadd.f32 0.0, %v3310
      %v3312 = vpop.f32.mrb[0].mxu0
      %v3313 = vpop.f32.mrb[0].mxu0
      %v3314 = vadd.f32 0.0, %v3313
      %v3315 = vpop.f32.mrb[0].mxu0
      %3316 = vmatprep.mubr.bf16.mxu0 %v3077
      %3317 = vmatmul.mubr.bf16.gmra.mrb[0].mxu0 %v3076
      %v3318 = vpop.f32.mrb[0].mxu0
      %v3319 = vadd.f32 0.0, %v3318
      %v3320 = vpop.f32.mrb[0].mxu0
      %v3321 = vpop.f32.mrb[0].mxu0
      %v3322 = vadd.f32 0.0, %v3321
      %v3323 = vpop.f32.mrb[0].mxu0
      %3324 = vmatprep.mubr.bf16.mxu0 %v3080
      %3325 = vmatmul.mubr.bf16.gmra.mrb[0].mxu0 %v3079
      %v3326 = vpop.f32.mrb[0].mxu0
      %v3327 = vadd.f32 0.0, %v3326
      %v3328 = vpop.f32.mrb[0].mxu0
      %v3329 = vpop.f32.mrb[0].mxu0
      %v3330 = vadd.f32 0.0, %v3329
      %v3331 = vpop.f32.mrb[0].mxu0
      %3332 = vmatprep.mubr.bf16.mxu0 %v3083
      %3333 = vmatmul.mubr.bf16.gmra.mrb[0].mxu0 %v3082
      %v3334 = vpop.f32.mrb[0].mxu0
      %v3335 = vadd.f32 0.0, %v3334
      %v3336 = vpop.f32.mrb[0].mxu0
      %v3337 = vpop.f32.mrb[0].mxu0
      %v3338 = vadd.f32 0.0, %v3337
      %v3339 = vpop.f32.mrb[0].mxu0
      %3340 = vmatprep.mubr.bf16.mxu0 %v3086
      %3341 = vmatmul.mubr.bf16.gmra.mrb[0].mxu0 %v3085
      %v3342 = vpop.f32.mrb[0].mxu0
      %v3343 = vadd.f32 0.0, %v3342
      %v3344 = vpop.f32.mrb[0].mxu0
      %v3345 = vpop.f32.mrb[0].mxu0
      %v3346 = vadd.f32 0.0, %v3345
      %v3347 = vpop.f32.mrb[0].mxu0
      %3348 = vmatprep.mubr.bf16.mxu0 %v3089
      %3349 = vmatmul.mubr.bf16.gmra.mrb[0].mxu0 %v3088
      %v3350 = vpop.f32.mrb[0].mxu0
      %v3351 = vadd.f32 0.0, %v3350
      %v3352 = vpop.f32.mrb[0].mxu0
      %v3353 = vpop.f32.mrb[0].mxu0
      %v3354 = vadd.f32 0.0, %v3353
      %v3355 = vpop.f32.mrb[0].mxu0
      %3356 = vmatprep.mubr.bf16.mxu0 %v3092
      %3357 = vmatmul.mubr.bf16.gmra.mrb[0].mxu0 %v3091
      %v3358 = vpop.f32.mrb[0].mxu0
      %v3359 = vadd.f32 0.0, %v3358
      %v3360 = vpop.f32.mrb[0].mxu0
      %v3361 = vpop.f32.mrb[0].mxu0
      %v3362 = vadd.f32 0.0, %v3361
      %v3363 = vpop.f32.mrb[0].mxu0
      %3364 = vmatprep.mubr.bf16.mxu0 %v3095
      %3365 = vmatmul.mubr.bf16.gmra.mrb[0].mxu0 %v3094
      %v3366 = vpop.f32.mrb[0].mxu0
      %v3367 = vadd.f32 0.0, %v3366
      %v3368 = vpop.f32.mrb[0].mxu0
      %v3369 = vpop.f32.mrb[0].mxu0
      %v3370 = vadd.f32 0.0, %v3369
      %v3371 = vpop.f32.mrb[0].mxu0
      %3372 = vdwg.mxu0
      %3373 = vmatprep.subr.bf16.mxu0 0
      %3374 = vmatpush1.bf16.msra.mxu0 %v3221
      %3375 = vmatprep.subr.bf16.mxu0 0
      %3376 = vmatpush1.bf16.msra.mxu0 %v3222
      %3377 = vmatprep.subr.bf16.mxu0 0
      %3378 = vmatpush1.bf16.msra.mxu0 0
      %3379 = vmatprep.subr.bf16.mxu0 0
      %3380 = vmatpush1.bf16.msra.mxu0 0
      %3381 = vmatprep.subr.bf16.mxu0 0
      %3382 = vmatpush1.bf16.msra.mxu0 0
      %3383 = vmatprep.subr.bf16.mxu0 0
      %3384 = vmatpush1.bf16.msra.mxu0 0
      %3385 = vmatprep.subr.bf16.mxu0 0
      %3386 = vmatpush1.bf16.msra.mxu0 0
      %3387 = vmatprep.subr.bf16.mxu0 0
      %3388 = vmatpush1.bf16.msra.mxu0 0
      %3389 = vmatprep.subr.bf16.mxu0 0
      %3390 = vmatpush1.bf16.msra.mxu0 0
      %3391 = vmatprep.subr.bf16.mxu0 0
      %3392 = vmatpush1.bf16.msra.mxu0 0
      %3393 = vmatprep.subr.bf16.mxu0 0
      %3394 = vmatpush1.bf16.msra.mxu0 0
      %3395 = vmatprep.subr.bf16.mxu0 0
      %3396 = vmatpush1.bf16.msra.mxu0 0
      %3397 = vmatprep.subr.bf16.mxu0 0
      %3398 = vmatpush1.bf16.msra.mxu0 0
      %3399 = vmatprep.subr.bf16.mxu0 0
      %3400 = vmatpush1.bf16.msra.mxu0 0
      %3401 = vmatprep.subr.bf16.mxu0 0
      %3402 = vmatpush1.bf16.msra.mxu0 0
      %3403 = vmatprep.subr.bf16.mxu0 0
      %3404 = vmatpush1.bf16.msra.mxu0 0
      %3405 = vmatprep.mubr.bf16.mxu0 0
      %3406 = vmatmul.mubr.bf16.gmra.mrb[0].mxu0 %v3242
      %v3407 = vpop.f32.mrb[0].mxu0
      %v3408 = vadd.f32 %v3303, %v3407
      %v3409 = vpop.f32.mrb[0].mxu0
      %v3410 = vpop.f32.mrb[0].mxu0
      %v3411 = vadd.f32 %v3306, %v3410
      %v3412 = vpop.f32.mrb[0].mxu0
      %3413 = vmatprep.mubr.bf16.mxu0 0
      %3414 = vmatmul.mubr.bf16.gmra.mrb[0].mxu0 %v3245
      %v3415 = vpop.f32.mrb[0].mxu0
      %v3416 = vadd.f32 %v3311, %v3415
      %v3417 = vpop.f32.mrb[0].mxu0
      %v3418 = vpop.f32.mrb[0].mxu0
      %v3419 = vadd.f32 %v3314, %v3418
      %v3420 = vpop.f32.mrb[0].mxu0
      %3421 = vmatprep.mubr.bf16.mxu0 0
      %3422 = vmatmul.mubr.bf16.gmra.mrb[0].mxu0 %v3248
      %v3423 = vpop.f32.mrb[0].mxu0
      %v3424 = vadd.f32 %v3319, %v3423
      %v3425 = vpop.f32.mrb[0].mxu0
      %v3426 = vpop.f32.mrb[0].mxu0
      %v3427 = vadd.f32 %v3322, %v3426
      %v3428 = vpop.f32.mrb[0].mxu0
      %3429 = vmatprep.mubr.bf16.mxu0 0
      %3430 = vmatmul.mubr.bf16.gmra.mrb[0].mxu0 %v3251
      %v3431 = vpop.f32.mrb[0].mxu0
      %v3432 = vadd.f32 %v3327, %v3431
      %v3433 = vpop.f32.mrb[0].mxu0
      %v3434 = vpop.f32.mrb[0].mxu0
      %v3435 = vadd.f32 %v3330, %v3434
      %v3436 = vpop.f32.mrb[0].mxu0
      %3437 = vmatprep.mubr.bf16.mxu0 0
      %3438 = vmatmul.mubr.bf16.gmra.mrb[0].mxu0 %v3254
      %v3439 = vpop.f32.mrb[0].mxu0
      %v3440 = vadd.f32 %v3335, %v3439
      %v3441 = vpop.f32.mrb[0].mxu0
      %v3442 = vpop.f32.mrb[0].mxu0
      %v3443 = vadd.f32 %v3338, %v3442
      %v3444 = vpop.f32.mrb[0].mxu0
      %3445 = vmatprep.mubr.bf16.mxu0 0
      %3446 = vmatmul.mubr.bf16.gmra.mrb[0].mxu0 %v3257
      %v3447 = vpop.f32.mrb[0].mxu0
      %v3448 = vadd.f32 %v3343, %v3447
      %v3449 = vpop.f32.mrb[0].mxu0
      %v3450 = vpop.f32.mrb[0].mxu0
      %v3451 = vadd.f32 %v3346, %v3450
      %v3452 = vpop.f32.mrb[0].mxu0
      %3453 = vmatprep.mubr.bf16.mxu0 0
      %3454 = vmatmul.mubr.bf16.gmra.mrb[0].mxu0 %v3260
      %v3455 = vpop.f32.mrb[0].mxu0
      %v3456 = vadd.f32 %v3351, %v3455
      %v3457 = vpop.f32.mrb[0].mxu0
      %v3458 = vpop.f32.mrb[0].mxu0
      %v3459 = vadd.f32 %v3354, %v3458
      %v3460 = vpop.f32.mrb[0].mxu0
      %3461 = vmatprep.mubr.bf16.mxu0 0
      %3462 = vmatmul.mubr.bf16.gmra.mrb[0].mxu0 %v3263
      %v3463 = vpop.f32.mrb[0].mxu0
      %v3464 = vadd.f32 %v3359, %v3463
      %v3465 = vpop.f32.mrb[0].mxu0
      %v3466 = vpop.f32.mrb[0].mxu0
      %v3467 = vadd.f32 %v3362, %v3466
      %v3468 = vpop.f32.mrb[0].mxu0
      %3469 = vmatprep.mubr.bf16.mxu0 0
      %3470 = vmatmul.mubr.bf16.gmra.mrb[0].mxu0 %v3266
      %v3471 = vpop.f32.mrb[0].mxu0
      %v3472 = vadd.f32 %v3367, %v3471
      %v3473 = vpop.f32.mrb[0].mxu0
      %v3474 = vpop.f32.mrb[0].mxu0
      %v3475 = vadd.f32 %v3370, %v3474
      %v3476 = vpop.f32.mrb[0].mxu0
      %3477 = vdwg.mxu0
      %v3478 = vld [vmem:[%s6] sm:$0x1]
      %v3480 = vlaneseq
      %v3481 = vshrl.u32 %v3480, 7
      %v3482 = vsub.s32 0, %v3481
      %v3483 = vrot.slane %v3478, %v3482
      %v3485 = vmul.f32 %v3408, %v3483
      %v3486 = vmul.f32 %v3411, %v3483
      %v3487 = vmul.f32 %v3416, %v3483
      %v3488 = vmul.f32 %v3419, %v3483
      %v3489 = vmul.f32 %v3424, %v3483
      %v3490 = vmul.f32 %v3427, %v3483
      %v3491 = vmul.f32 %v3432, %v3483
      %v3492 = vmul.f32 %v3435, %v3483
      %v3493 = vmul.f32 %v3440, %v3483
      %v3494 = vmul.f32 %v3443, %v3483
      %v3495 = vmul.f32 %v3448, %v3483
      %v3496 = vmul.f32 %v3451, %v3483
      %v3497 = vmul.f32 %v3456, %v3483
      %v3498 = vmul.f32 %v3459, %v3483
      %v3499 = vmul.f32 %v3464, %v3483
      %v3500 = vmul.f32 %v3467, %v3483
      %v3501 = vmul.f32 %v3472, %v3483
      %v3502 = vmul.f32 %v3475, %v3483
      %v3503 = vld [vmem:[%s7] sm:$0x1]
      %v3505 = vlaneseq
      %v3506 = vshrl.u32 %v3505, 7
      %v3507 = vsub.s32 0, %v3506
      %v3508 = vrot.slane %v3503, %v3507
      %v3510 = vadd.f32 %v3485, %v3508
      %v3511 = vadd.f32 %v3486, %v3508
      %v3512 = vadd.f32 %v3487, %v3508
      %v3513 = vadd.f32 %v3488, %v3508
      %v3514 = vadd.f32 %v3489, %v3508
      %v3515 = vadd.f32 %v3490, %v3508
      %v3516 = vadd.f32 %v3491, %v3508
      %v3517 = vadd.f32 %v3492, %v3508
      %v3518 = vadd.f32 %v3493, %v3508
      %v3519 = vadd.f32 %v3494, %v3508
      %v3520 = vadd.f32 %v3495, %v3508
      %v3521 = vadd.f32 %v3496, %v3508
      %v3522 = vadd.f32 %v3497, %v3508
      %v3523 = vadd.f32 %v3498, %v3508
      %v3524 = vadd.f32 %v3499, %v3508
      %v3525 = vadd.f32 %v3500, %v3508
      %v3526 = vadd.f32 %v3501, %v3508
      %v3527 = vadd.f32 %v3502, %v3508
      %v3528 = vmax.f32 %v3510, 0.0
      %v3529 = vmax.f32 %v3511, 0.0
      %v3530 = vmax.f32 %v3512, 0.0
      %v3531 = vmax.f32 %v3513, 0.0
      %v3532 = vmax.f32 %v3514, 0.0
      %v3533 = vmax.f32 %v3515, 0.0
      %v3534 = vmax.f32 %v3516, 0.0
      %v3535 = vmax.f32 %v3517, 0.0
      %v3536 = vmax.f32 %v3518, 0.0
      %v3537 = vmax.f32 %v3519, 0.0
      %v3538 = vmax.f32 %v3520, 0.0
      %v3539 = vmax.f32 %v3521, 0.0
      %v3540 = vmax.f32 %v3522, 0.0
      %v3541 = vmax.f32 %v3523, 0.0
      %v3542 = vmax.f32 %v3524, 0.0
      %v3543 = vmax.f32 %v3525, 0.0
      %v3544 = vmax.f32 %v3526, 0.0
      %v3545 = vmax.f32 %v3527, 0.0
      %3546 = vst.msk [vmem:[%s327] sm:$0xff] %vm2500, %v3528
      %3547 = vst.msk [vmem:[%s327 + $0x8] sm:$0xff] %vm2500, %v3529
      %3548 = vst.msk [vmem:[%s327 + $0x10] sm:$0xff] %vm2500, %v3530
      %3549 = vst.msk [vmem:[%s327 + $0x18] sm:$0xff] %vm2500, %v3531
      %3550 = vst.msk [vmem:[%s327 + $0x20] sm:$0xff] %vm2500, %v3532
      %3551 = vst.msk [vmem:[%s327 + $0x28] sm:$0xff] %vm2500, %v3533
      %3552 = vst.msk [vmem:[%s327 + $0x30] sm:$0xff] %vm2500, %v3534
      %3553 = vst.msk [vmem:[%s327 + $0x38] sm:$0xff] %vm2500, %v3535
      %3554 = vst.msk [vmem:[%s327 + $0x40] sm:$0xff] %vm2500, %v3536
      %3555 = vst.msk [vmem:[%s327 + $0x48] sm:$0xff] %vm2500, %v3537
      %3556 = vst.msk [vmem:[%s327 + $0x50] sm:$0xff] %vm2500, %v3538
      %3557 = vst.msk [vmem:[%s327 + $0x58] sm:$0xff] %vm2500, %v3539
      %3558 = vst.msk [vmem:[%s327 + $0x60] sm:$0xff] %vm2500, %v3540
      %3559 = vst.msk [vmem:[%s327 + $0x68] sm:$0xff] %vm2500, %v3541
      %3560 = vst.msk [vmem:[%s327 + $0x70] sm:$0xff] %vm2500, %v3542
      %3561 = vst.msk [vmem:[%s327 + $0x78] sm:$0xff] %vm2500, %v3543
      %3562 = vst.msk [vmem:[%s327 + $0x80] sm:$0xff] %vm2500, %v3544
      %3563 = vst.msk [vmem:[%s327 + $0x88] sm:$0xff] %vm2500, %v3545
      %s3564 = smul.u32 18, %s24
      %p3565 = scmp.lt.s32.totalorder %s23, 1
      %s3566 = scalar_select %p3565, %s23, 1
      %p3567 = scmp.lt.s32.totalorder %s3564, 35
      %s3568 = scalar_select %p3567, %s3564, 35
      %s3569 = smul.addr %s3566, 36
      %s3570 = sadd.s32 %s3568, %s3569
      %s3571 = smul.addr %s3570, 8
      %s3572 = scalar_lea.vmem %s8, %s3571
      // Predicated region
      $region53: #{conv_block_forward.1} parent=51 // pred_check
        %p3573 = pneg %p224
      $region54: #{conv_block_forward.1} parent=51 // pred_check_branch
        %3575 = sbr.rel (%p3573) target = $region56
      $region55: #{conv_block_forward.1} parent=51 // pred_region
        %s3576 = smul.u32 18, %s24
      $region56: #{conv_block_forward.1} parent=51 // pred_fallthru
        _
    $region52: #{conv_block_forward.1} parent=5 // pred_fallthru
      _
    %p3577 = scmp.le.s32.totalorder 2, %s14
    // Predicated region
    $region57: #{conv_block_forward.1} parent=5 // pred_check
      %p3578 = pneg %p3577
    $region58: #{conv_block_forward.1} parent=5 // pred_check_branch
      %3580 = sbr.rel (%p3578) target = $region60
    $region59: #{conv_block_forward.1} parent=5 // pred_region
      %s3581 = ssub.s32 %s14, 2
      // Predicated region
      $region61: #{conv_block_forward.1} parent=59 // pred_check
        %p3582 = pneg %p230
      $region62: #{conv_block_forward.1} parent=59 // pred_check_branch
        %3584 = sbr.rel (%p3582) target = $region64
      $region63: #{conv_block_forward.1} parent=59 // pred_region
        %s3585 = smul.u32 18, %s26
        %p3586 = scmp.lt.s32.totalorder %s25, 1
        %s3587 = scalar_select %p3586, %s25, 1
        %p3588 = scmp.lt.s32.totalorder %s3585, 35
        %s3589 = scalar_select %p3588, %s3585, 35
        %s3590 = smul.addr %s3587, 36
        %s3591 = sadd.s32 %s3589, %s3590
        %s3592 = smul.addr %s3591, 8
        %s3593 = scalar_lea.vmem %s8, %s3592
      $region64: #{conv_block_forward.1} parent=59 // pred_fallthru
        _
    $region60: #{conv_block_forward.1} parent=5 // pred_fallthru
      _
  $region6: #{conv_block_forward.1} parent=0 // loop_footer
    %s18 = sadd.s32 1, %s14
  $region7: #{conv_block_forward.1} parent=0 // loop_footer_branch
    %13 = sbr.rel target = $region3
  $region8: #{conv_block_forward.1} parent=0 // loop_exit
    _

</llo_original>
